<compile_context>
chip_gen: v7x
topology: tpu7x:2x2x1
jax: 0.10.0
libtpu: 0.0.40
codegen_flags: <defaults>
</compile_context>

<pallas_src>
import jax
import jax.numpy as jnp
import numpy as np
from jax.experimental import pallas as pl
from jax.experimental.pallas import tpu as pltpu

HIGH = jax.lax.Precision.HIGHEST


def self_attention_kernel(x_ref, wq_ref, bq_ref, wkv_ref, bkv_ref, out_ref):
    S = x_ref.shape[0]
    H = out_ref.shape[-1]

    x = x_ref[...]                                                 # (S, D)

    # Fused K|V projection: (S, D) @ (D, 2H) -> (S, 2H), lane-dense N = 2H.
    kv = (
        jnp.dot(x, wkv_ref[...], preferred_element_type=jnp.float32,
                precision=HIGH)
        + bkv_ref[...]
    )
    k = kv[:, :H]                                                  # (S, H)
    v = kv[:, H:]                                                  # (S, H)

    # Only the last query position contributes to the module's output.
    q_last = (
        jnp.dot(x[S - 1:, :], wq_ref[...], preferred_element_type=jnp.float32,
                precision=HIGH)
        + bq_ref[...]
    )                                                              # (1, H)

    # scores = q_last @ k^T (contract over H; no explicit transpose needed).
    scores = jax.lax.dot_general(
        q_last, k, (((1,), (1,)), ((), ())),
        preferred_element_type=jnp.float32, precision=HIGH)        # (1, S)

    # Numerically stable row softmax.
    m = jnp.max(scores, axis=-1, keepdims=True)
    p = jnp.exp(scores - m)
    w = p / jnp.sum(p, axis=-1, keepdims=True)

    att = jnp.dot(w, v, preferred_element_type=jnp.float32,
                  precision=HIGH)                                  # (1, H)
    out_ref[...] = att.astype(out_ref.dtype)


def self_attention_forward(x, wq, bq, wk, bk, wv, bv):
    B, S, D = x.shape
    H = wq.shape[1]

    # Fuse the K and V projection weights (shared input) into one wide matmul.
    w_kv = jnp.concatenate([wk, wv], axis=1)           # (D, 2H)
    b_kv = jnp.concatenate([bk, bv], axis=0).reshape(1, 2 * H)
    bq2 = bq.reshape(1, H)

    def full(a):
        return pl.BlockSpec(a.shape, lambda b: (0,) * a.ndim)

    out = pl.pallas_call(
        self_attention_kernel,
        out_shape=jax.ShapeDtypeStruct((B, 1, H), x.dtype),
        grid_spec=pltpu.PrefetchScalarGridSpec(
            num_scalar_prefetch=0,
            grid=(B,),
            in_specs=[
                pl.BlockSpec((None, S, D), lambda b: (b, 0, 0)),   # x[b]
                full(wq), full(bq2), full(w_kv), full(b_kv),       # resident
            ],
            out_specs=pl.BlockSpec((None, 1, H), lambda b: (b, 0, 0)),
        ),
        compiler_params=pltpu.CompilerParams(
            dimension_semantics=("parallel",),
        ),
    )(x, wq, bq2, w_kv, b_kv)

    return out.reshape(B, H)


def self_attention_reference(x, wq, bq, wk, bk, wv, bv):
    """Plain-JAX mirror of the PyTorch forward (full attention, then slice)."""
    q = jnp.einsum("bsd,dh->bsh", x, wq, precision=HIGH) + bq
    k = jnp.einsum("bsd,dh->bsh", x, wk, precision=HIGH) + bk
    v = jnp.einsum("bsd,dh->bsh", x, wv, precision=HIGH) + bv
    scores = jnp.einsum("bsh,bth->bst", q, k, precision=HIGH)
    weights = jax.nn.softmax(scores, axis=-1)
    att = jnp.einsum("bst,bth->bsh", weights, v, precision=HIGH)
    return att[:, -1, :]


if __name__ == "__main__":
    B, S = 4, 128                 # batch, sequence length
    input_dim, hidden_dim = 64, 128

    key = jax.random.PRNGKey(0)
    kx, kwq, kwk, kwv, kbq, kbk, kbv = jax.random.split(key, 7)

    scale = 1.0 / np.sqrt(input_dim)   # nn.Linear-style init scale
    x = jax.random.normal(kx, (B, S, input_dim), jnp.float32)
    wq = scale * jax.random.normal(kwq, (input_dim, hidden_dim), jnp.float32)
    wk = scale * jax.random.normal(kwk, (input_dim, hidden_dim), jnp.float32)
    wv = scale * jax.random.normal(kwv, (input_dim, hidden_dim), jnp.float32)
    bq = scale * jax.random.normal(kbq, (hidden_dim,), jnp.float32)
    bk = scale * jax.random.normal(kbk, (hidden_dim,), jnp.float32)
    bv = scale * jax.random.normal(kbv, (hidden_dim,), jnp.float32)

    out = self_attention_forward(x, wq, bq, wk, bk, wv, bv)
    out = jax.block_until_ready(out)

    ref = self_attention_reference(x, wq, bq, wk, bk, wv, bv)
    np.testing.assert_allclose(np.asarray(out), np.asarray(ref),
                               rtol=1e-3, atol=1e-3)

    print("KERNEL_OK")
</pallas_src>

<mosaic_0001>
module attributes {stable_mosaic.version = 11 : i64} {
  func.func @self_attention_kernel(%arg0: i32, %arg1: memref<1x128x64xf32, #tpu.memory_space<vmem>>, %arg2: memref<64x128xf32, #tpu.memory_space<vmem>>, %arg3: memref<1x128xf32, #tpu.memory_space<vmem>>, %arg4: memref<64x256xf32, #tpu.memory_space<vmem>>, %arg5: memref<1x256xf32, #tpu.memory_space<vmem>>, %arg6: memref<1x1x128xf32, #tpu.memory_space<vmem>>) attributes {dimension_semantics = [#tpu.dimension_semantics<parallel>], iteration_bounds = array<i64: 4>, scalar_prefetch = 0 : i64, scratch_operands = 0 : i64, tpu.core_type = #tpu.core_type<tc>, window_params = [{transform_indices = @transform_0, window_bounds = array<i64: 1, 128, 64>}, {pipeline_mode = #tpu.pipeline_mode<synchronous>, transform_indices = @transform_1, window_bounds = array<i64: 64, 128>}, {pipeline_mode = #tpu.pipeline_mode<synchronous>, transform_indices = @transform_2, window_bounds = array<i64: 1, 128>}, {pipeline_mode = #tpu.pipeline_mode<synchronous>, transform_indices = @transform_3, window_bounds = array<i64: 64, 256>}, {pipeline_mode = #tpu.pipeline_mode<synchronous>, transform_indices = @transform_4, window_bounds = array<i64: 1, 256>}, {transform_indices = @transform_5, window_bounds = array<i64: 1, 1, 128>}]} {
    %c0 = arith.constant 0 : index
    %c0_0 = arith.constant 0 : index
    %c0_1 = arith.constant 0 : index
    %0 = vector.load %arg1[%c0, %c0_0, %c0_1] : memref<1x128x64xf32, #tpu.memory_space<vmem>>, vector<1x128x64xf32>
    %1 = vector.shape_cast %0 : vector<1x128x64xf32> to vector<128x64xf32>
    %c0_2 = arith.constant 0 : index
    %c0_3 = arith.constant 0 : index
    %2 = vector.load %arg4[%c0_2, %c0_3] : memref<64x256xf32, #tpu.memory_space<vmem>>, vector<64x256xf32>
    %cst = arith.constant dense<0.000000e+00> : vector<128x256xf32>
    %3 = tpu.matmul %1, %2, %cst {dimension_numbers = #tpu.dot_dimension_numbers<[1], [0], [0], [1], [0, 0, 1, 1], [], []>, precision = #tpu.contract_precision<fp32>} : vector<128x64xf32>, vector<64x256xf32>, vector<128x256xf32> -> vector<128x256xf32>
    %c0_4 = arith.constant 0 : index
    %c0_5 = arith.constant 0 : index
    %4 = vector.load %arg5[%c0_4, %c0_5] : memref<1x256xf32, #tpu.memory_space<vmem>>, vector<1x256xf32>
    %5 = vector.broadcast %4 : vector<1x256xf32> to vector<128x256xf32>
    %6 = arith.addf %3, %5 : vector<128x256xf32>
    %7 = vector.extract_strided_slice %6 {offsets = [0, 0], sizes = [128, 128], strides = [1, 1]} : vector<128x256xf32> to vector<128x128xf32>
    %8 = vector.extract_strided_slice %6 {offsets = [0, 128], sizes = [128, 128], strides = [1, 1]} : vector<128x256xf32> to vector<128x128xf32>
    %9 = vector.extract_strided_slice %1 {offsets = [127, 0], sizes = [1, 64], strides = [1, 1]} : vector<128x64xf32> to vector<1x64xf32>
    %c0_6 = arith.constant 0 : index
    %c0_7 = arith.constant 0 : index
    %10 = vector.load %arg2[%c0_6, %c0_7] : memref<64x128xf32, #tpu.memory_space<vmem>>, vector<64x128xf32>
    %cst_8 = arith.constant dense<0.000000e+00> : vector<1x128xf32>
    %11 = tpu.matmul %9, %10, %cst_8 {dimension_numbers = #tpu.dot_dimension_numbers<[1], [0], [0], [1], [0, 0, 1, 1], [], []>, precision = #tpu.contract_precision<fp32>} : vector<1x64xf32>, vector<64x128xf32>, vector<1x128xf32> -> vector<1x128xf32>
    %c0_9 = arith.constant 0 : index
    %c0_10 = arith.constant 0 : index
    %12 = vector.load %arg3[%c0_9, %c0_10] : memref<1x128xf32, #tpu.memory_space<vmem>>, vector<1x128xf32>
    %13 = arith.addf %11, %12 : vector<1x128xf32>
    %cst_11 = arith.constant dense<0.000000e+00> : vector<1x128xf32>
    %14 = tpu.matmul %13, %7, %cst_11 {dimension_numbers = #tpu.dot_dimension_numbers<[1], [1], [0], [0], [0, 0, 1, 0], [], []>, precision = #tpu.contract_precision<fp32>} : vector<1x128xf32>, vector<128x128xf32>, vector<1x128xf32> -> vector<1x128xf32>
    %cst_12 = arith.constant dense<0xFF800000> : vector<1xf32>
    %15 = vector.multi_reduction <maximumf>, %14, %cst_12 [1] : vector<1x128xf32> to vector<1xf32>
    %16 = vector.shape_cast %15 : vector<1xf32> to vector<1x1xf32>
    %17 = vector.broadcast %16 : vector<1x1xf32> to vector<1x128xf32>
    %18 = arith.subf %14, %17 : vector<1x128xf32>
    %19 = math.exp %18 : vector<1x128xf32>
    %cst_13 = arith.constant dense<0.000000e+00> : vector<1xf32>
    %20 = vector.multi_reduction <add>, %19, %cst_13 [1] : vector<1x128xf32> to vector<1xf32>
    %21 = vector.shape_cast %20 : vector<1xf32> to vector<1x1xf32>
    %22 = vector.broadcast %21 : vector<1x1xf32> to vector<1x128xf32>
    %23 = arith.divf %19, %22 : vector<1x128xf32>
    %cst_14 = arith.constant dense<0.000000e+00> : vector<1x128xf32>
    %24 = tpu.matmul %23, %8, %cst_14 {dimension_numbers = #tpu.dot_dimension_numbers<[1], [0], [0], [1], [0, 0, 1, 1], [], []>, precision = #tpu.contract_precision<fp32>} : vector<1x128xf32>, vector<128x128xf32>, vector<1x128xf32> -> vector<1x128xf32>
    %c0_15 = arith.constant 0 : index
    %c0_16 = arith.constant 0 : index
    %c0_17 = arith.constant 0 : index
    %25 = vector.load %arg6[%c0_15, %c0_16, %c0_17] : memref<1x1x128xf32, #tpu.memory_space<vmem>>, vector<1x1x128xf32>
    %26 = vector.shape_cast %25 : vector<1x1x128xf32> to vector<1x128xf32>
    %27 = vector.shape_cast %24 : vector<1x128xf32> to vector<1x1x128xf32>
    tpu.vector_store %arg6[%c0_15, %c0_16, %c0_17], %27 {strides = array<i32>} : memref<1x1x128xf32, #tpu.memory_space<vmem>>, vector<1x1x128xf32>,
    return
  }
  func.func @transform_0(%arg0: i32) -> (i32, i32, i32) {
    %c0_i32 = arith.constant 0 : i32
    %c0_i32_0 = arith.constant 0 : i32
    %c0_i32_1 = arith.constant 0 : i32
    return %arg0, %c0_i32, %c0_i32_0 : i32, i32, i32
  }
  func.func @transform_1(%arg0: i32) -> (i32, i32) {
    %c0_i32 = arith.constant 0 : i32
    %c0_i32_0 = arith.constant 0 : i32
    %c0_i32_1 = arith.constant 0 : i32
    return %c0_i32, %c0_i32_0 : i32, i32
  }
  func.func @transform_2(%arg0: i32) -> (i32, i32) {
    %c0_i32 = arith.constant 0 : i32
    %c0_i32_0 = arith.constant 0 : i32
    %c0_i32_1 = arith.constant 0 : i32
    return %c0_i32, %c0_i32_0 : i32, i32
  }
  func.func @transform_3(%arg0: i32) -> (i32, i32) {
    %c0_i32 = arith.constant 0 : i32
    %c0_i32_0 = arith.constant 0 : i32
    %c0_i32_1 = arith.constant 0 : i32
    return %c0_i32, %c0_i32_0 : i32, i32
  }
  func.func @transform_4(%arg0: i32) -> (i32, i32) {
    %c0_i32 = arith.constant 0 : i32
    %c0_i32_0 = arith.constant 0 : i32
    %c0_i32_1 = arith.constant 0 : i32
    return %c0_i32, %c0_i32_0 : i32, i32
  }
  func.func @transform_5(%arg0: i32) -> (i32, i32, i32) {
    %c0_i32 = arith.constant 0 : i32
    %c0_i32_0 = arith.constant 0 : i32
    %c0_i32_1 = arith.constant 0 : i32
    return %arg0, %c0_i32, %c0_i32_0 : i32, i32, i32
  }
}

</mosaic_0001>

<llo_original>
// kernel: tpu_custom_call.1
$region0: #{tpu_custom_call.1}
  #allocation0 [shape = 'u32[]', space=smem, size = 0x4, offset = 0x4, fixed_abs, tag = 'smem constant byte address 0x4 - core index']
  #allocation1 [shape = 'u32[144,128]{1,0:T(1,128)}', space=vmem, size = 0x12000, scoped, tag = 'internal scratch']
  %s0 = inlined_call_operand.vmem [shape: f32[4,128,64], index: 0, kind: input, shape index: {}]
  %s1 = inlined_call_operand.vmem [shape: f32[64,128], index: 1, kind: input, shape index: {}]
  %s2 = inlined_call_operand.vmem [shape: f32[1,128], index: 2, kind: input, shape index: {}]
  %s3 = inlined_call_operand.vmem [shape: f32[64,256], index: 3, kind: input, shape index: {}]
  %s4 = inlined_call_operand.vmem [shape: f32[1,256], index: 4, kind: input, shape index: {}]
  %s5 = inlined_call_operand.hbm [shape: f32[4,1,128], index: 5, kind: output, shape index: {}]
  %s6 = sld [smem:[#allocation0]]
  $region53: #{tpu_custom_call.1} parent=0
    _
  %s8 = ssub.s32 1, %s6
  %s9 = scalar_select 0, %s8, %s6
  $region1: #{tpu_custom_call.1} parent=0
    #allocation2 [shape = 'u8[1024]{0}', space=vmem, size = 0x400, scoped, tag = 'output window, operand 0']
    #allocation3 [shape = 's32[2]{0}', space=sflag, size = 0x8, scoped, tag = 'scoped memory for tpu_custom_call.1']
    %10 = vsyncpa [#allocation3], 0
    %s11 = scalar_lea.sflag [#allocation3], 1
    %12 = vsyncpa %s11, 0
    loop: start=0, step=1, limit=6
    $region2: #{tpu_custom_call.1} parent=1 // loop_pre_header
      _
    $region3: #{tpu_custom_call.1} parent=1 // loop_header
      %s14 = sphi 0, %s18
      %p15 = scmp.ge.s32.totalorder %s14, 6
      %s24 = sphi 0, %s26
      %s27 = sphi 0, %s24
      %s28 = sphi 0, %s27
      %s44 = sphi 0, %s28
      %s48 = sphi 0, %s48
      %s50 = sphi 0, %s48
      %s51 = sphi 0, %s50
      %s65 = sphi 0, %s51
      %s69 = sphi 0, %s69
      %s71 = sphi 0, %s69
      %s72 = sphi 0, %s71
      %s86 = sphi 0, %s72
      %s90 = sphi 0, %s90
      %s92 = sphi 0, %s90
      %s93 = sphi 0, %s92
      %s107 = sphi 0, %s93
      %s111 = sphi 0, %s111
      %s113 = sphi 0, %s111
      %s114 = sphi 0, %s113
      %s128 = sphi 0, %s114
      %s134 = sphi 0, %s136
      %s137 = sphi 0, %s134
      %s138 = sphi 0, %s137
      %s154 = sphi 0, %s138
    $region4: #{tpu_custom_call.1} parent=1 // loop_header_branch
      %17 = sbr.rel (%p15) target = $region8
    $region5: #{tpu_custom_call.1} parent=1 // loop_body
      %s19 = ssub.s32 %s14, 1
      %s20 = ssub.s32 %s14, 2
      %s21 = sadd.s32 %s14, 1
      %s22 = ssub.s32 %s14, %s21
      %p23 = scmp.eq.s32.totalorder %s22, 0
      %s25 = sadd.s32 %s24, 1
      %s26 = scalar_select %p23, %s24, %s25
      %p29 = pneg %p23
      %p30 = scmp.eq.s32.totalorder %s14, 3
      %p31 = por %p29, %p30
      %p32 = scmp.ne.s32.totalorder %s24, %s27
      %p33 = scmp.eq.s32.totalorder %s14, 0
      %p34 = por %p32, %p33
      %p35 = scmp.ne.s32.totalorder %s24, %s27
      %p36 = scmp.eq.s32.totalorder %s19, 3
      %p37 = por %p35, %p36
      %p38 = scmp.ne.s32.totalorder %s27, %s28
      %p39 = scmp.eq.s32.totalorder %s19, 0
      %p40 = por %p38, %p39
      %p41 = scmp.ne.s32.totalorder %s27, %s28
      %p42 = scmp.eq.s32.totalorder %s20, 3
      %p43 = por %p41, %p42
      %p45 = scmp.ne.s32.totalorder %s28, %s44
      %p46 = scmp.eq.s32.totalorder %s20, 0
      %p47 = por %p45, %p46
      %s49 = sadd.s32 %s48, 1
      %p52 = scmp.eq.s32.totalorder %s14, 3
      %p53 = scmp.ne.s32.totalorder %s48, %s50
      %p54 = scmp.eq.s32.totalorder %s14, 0
      %p55 = por %p53, %p54
      %p56 = scmp.ne.s32.totalorder %s48, %s50
      %p57 = scmp.eq.s32.totalorder %s19, 3
      %p58 = por %p56, %p57
      %p59 = scmp.ne.s32.totalorder %s50, %s51
      %p60 = scmp.eq.s32.totalorder %s19, 0
      %p61 = por %p59, %p60
      %p62 = scmp.ne.s32.totalorder %s50, %s51
      %p63 = scmp.eq.s32.totalorder %s20, 3
      %p64 = por %p62, %p63
      %p66 = scmp.ne.s32.totalorder %s51, %s65
      %p67 = scmp.eq.s32.totalorder %s20, 0
      %p68 = por %p66, %p67
      %s70 = sadd.s32 %s69, 1
      %p73 = scmp.eq.s32.totalorder %s14, 3
      %p74 = scmp.ne.s32.totalorder %s69, %s71
      %p75 = scmp.eq.s32.totalorder %s14, 0
      %p76 = por %p74, %p75
      %p77 = scmp.ne.s32.totalorder %s69, %s71
      %p78 = scmp.eq.s32.totalorder %s19, 3
      %p79 = por %p77, %p78
      %p80 = scmp.ne.s32.totalorder %s71, %s72
      %p81 = scmp.eq.s32.totalorder %s19, 0
      %p82 = por %p80, %p81
      %p83 = scmp.ne.s32.totalorder %s71, %s72
      %p84 = scmp.eq.s32.totalorder %s20, 3
      %p85 = por %p83, %p84
      %p87 = scmp.ne.s32.totalorder %s72, %s86
      %p88 = scmp.eq.s32.totalorder %s20, 0
      %p89 = por %p87, %p88
      %s91 = sadd.s32 %s90, 1
      %p94 = scmp.eq.s32.totalorder %s14, 3
      %p95 = scmp.ne.s32.totalorder %s90, %s92
      %p96 = scmp.eq.s32.totalorder %s14, 0
      %p97 = por %p95, %p96
      %p98 = scmp.ne.s32.totalorder %s90, %s92
      %p99 = scmp.eq.s32.totalorder %s19, 3
      %p100 = por %p98, %p99
      %p101 = scmp.ne.s32.totalorder %s92, %s93
      %p102 = scmp.eq.s32.totalorder %s19, 0
      %p103 = por %p101, %p102
      %p104 = scmp.ne.s32.totalorder %s92, %s93
      %p105 = scmp.eq.s32.totalorder %s20, 3
      %p106 = por %p104, %p105
      %p108 = scmp.ne.s32.totalorder %s93, %s107
      %p109 = scmp.eq.s32.totalorder %s20, 0
      %p110 = por %p108, %p109
      %s112 = sadd.s32 %s111, 1
      %p115 = scmp.eq.s32.totalorder %s14, 3
      %p116 = scmp.ne.s32.totalorder %s111, %s113
      %p117 = scmp.eq.s32.totalorder %s14, 0
      %p118 = por %p116, %p117
      %p119 = scmp.ne.s32.totalorder %s111, %s113
      %p120 = scmp.eq.s32.totalorder %s19, 3
      %p121 = por %p119, %p120
      %p122 = scmp.ne.s32.totalorder %s113, %s114
      %p123 = scmp.eq.s32.totalorder %s19, 0
      %p124 = por %p122, %p123
      %p125 = scmp.ne.s32.totalorder %s113, %s114
      %p126 = scmp.eq.s32.totalorder %s20, 3
      %p127 = por %p125, %p126
      %p129 = scmp.ne.s32.totalorder %s114, %s128
      %p130 = scmp.eq.s32.totalorder %s20, 0
      %p131 = por %p129, %p130
      %s132 = ssub.s32 %s14, %s21
      %p133 = scmp.eq.s32.totalorder %s132, 0
      %s135 = sadd.s32 %s134, 1
      %s136 = scalar_select %p133, %s134, %s135
      %p139 = pneg %p133
      %p140 = scmp.eq.s32.totalorder %s14, 3
      %p141 = por %p139, %p140
      %p142 = scmp.ne.s32.totalorder %s134, %s137
      %p143 = scmp.eq.s32.totalorder %s14, 0
      %p144 = por %p142, %p143
      %p145 = scmp.ne.s32.totalorder %s134, %s137
      %p146 = scmp.eq.s32.totalorder %s19, 3
      %p147 = por %p145, %p146
      %p148 = scmp.ne.s32.totalorder %s137, %s138
      %p149 = scmp.eq.s32.totalorder %s19, 0
      %p150 = por %p148, %p149
      %p151 = scmp.ne.s32.totalorder %s137, %s138
      %p152 = scmp.eq.s32.totalorder %s20, 3
      %p153 = por %p151, %p152
      %p155 = scmp.ne.s32.totalorder %s138, %s154
      %p156 = scmp.eq.s32.totalorder %s20, 0
      %p157 = por %p155, %p156
      %p158 = scmp.le.s32.totalorder 1, %s14
      %p159 = scmp.lt.s32.totalorder %s14, 5
      %p160 = pnand %p158, %p159
      %p161 = pneg %p160
      // Predicated region
      $region9: #{tpu_custom_call.1} parent=5 // pred_check
        _
      $region10: #{tpu_custom_call.1} parent=5 // pred_check_branch
        %163 = sbr.rel (%p160) target = $region12
      $region11: #{tpu_custom_call.1} parent=5 // pred_region
        %s164 = ssub.s32 %s14, 1
        // Predicated region
        $region13: #{tpu_custom_call.1} parent=11 // pred_check
          %p165 = pneg %p61
        $region14: #{tpu_custom_call.1} parent=11 // pred_check_branch
          %167 = sbr.rel (%p165) target = $region16
        $region15: #{tpu_custom_call.1} parent=11 // pred_region
          _
        $region16: #{tpu_custom_call.1} parent=11 // pred_fallthru
          _
        // Predicated region
        $region17: #{tpu_custom_call.1} parent=11 // pred_check
          %p168 = pneg %p82
        $region18: #{tpu_custom_call.1} parent=11 // pred_check_branch
          %170 = sbr.rel (%p168) target = $region20
        $region19: #{tpu_custom_call.1} parent=11 // pred_region
          _
        $region20: #{tpu_custom_call.1} parent=11 // pred_fallthru
          _
        // Predicated region
        $region21: #{tpu_custom_call.1} parent=11 // pred_check
          %p171 = pneg %p103
        $region22: #{tpu_custom_call.1} parent=11 // pred_check_branch
          %173 = sbr.rel (%p171) target = $region24
        $region23: #{tpu_custom_call.1} parent=11 // pred_region
          _
        $region24: #{tpu_custom_call.1} parent=11 // pred_fallthru
          _
        // Predicated region
        $region25: #{tpu_custom_call.1} parent=11 // pred_check
          %p174 = pneg %p124
        $region26: #{tpu_custom_call.1} parent=11 // pred_check_branch
          %176 = sbr.rel (%p174) target = $region28
        $region27: #{tpu_custom_call.1} parent=11 // pred_region
          _
        $region28: #{tpu_custom_call.1} parent=11 // pred_fallthru
          _
      $region12: #{tpu_custom_call.1} parent=5 // pred_fallthru
        _
      %p177 = scmp.lt.s32.totalorder %s14, 4
      // Predicated region
      $region29: #{tpu_custom_call.1} parent=5 // pred_check
        %p178 = pneg %p177
      $region30: #{tpu_custom_call.1} parent=5 // pred_check_branch
        %180 = sbr.rel (%p178) target = $region32
      $region31: #{tpu_custom_call.1} parent=5 // pred_region
        // Predicated region
        $region33: #{tpu_custom_call.1} parent=31 // pred_check
          %p181 = pneg %p34
        $region34: #{tpu_custom_call.1} parent=31 // pred_check_branch
          %183 = sbr.rel (%p181) target = $region36
        $region35: #{tpu_custom_call.1} parent=31 // pred_region
          %p184 = scmp.lt.s32.totalorder %s14, 3
          %s185 = scalar_select %p184, %s14, 3
          %s186 = smul.addr %s185, 16
          %s187 = smul.addr %s186, 8
          %s188 = scalar_lea.vmem %s0, %s187
        $region36: #{tpu_custom_call.1} parent=31 // pred_fallthru
          _
      $region32: #{tpu_custom_call.1} parent=5 // pred_fallthru
        _
      %p189 = scmp.le.s32.totalorder 1, %s14
      %p190 = scmp.lt.s32.totalorder %s14, 5
      %p191 = pnand %p189, %p190
      %p192 = pneg %p191
      // Predicated region
      $region37: #{tpu_custom_call.1} parent=5 // pred_check
        _
      $region38: #{tpu_custom_call.1} parent=5 // pred_check_branch
        %194 = sbr.rel (%p191) target = $region40
      $region39: #{tpu_custom_call.1} parent=5 // pred_region
        %s195 = ssub.s32 %s14, 1
        %p196 = scmp.lt.s32.totalorder %s19, 3
        %s197 = scalar_select %p196, %s19, 3
        %s198 = smul.addr %s197, 16
        %s199 = smul.addr %s198, 8
        %s200 = scalar_lea.vmem %s0, %s199
        %p201 = pneg %p40
        %p202 = pneg %p37
        %p203 = pneg %p61
        %p204 = pneg %p58
        %p205 = pneg %p82
        %p206 = pneg %p79
        %p207 = pneg %p103
        %p208 = pneg %p100
        %p209 = pneg %p124
        %p210 = pneg %p121
        %p211 = pneg %p150
        %p212 = pneg %p147
        %s213 = sand.u32 %s137, 1
        %s214 = scalar_lea.sflag [#allocation3], %s213
        %s215 = sand.u32 %s137, 1
        %s216 = scalar_lea.vmem [#allocation2], %s215
        %p217 = scmp.lt.s32.totalorder %s19, 3
        %s218 = scalar_select %p217, %s19, 3
        %s219 = smul.addr %s218, 16
        %s220 = smul.addr %s219, 8
        %s221 = scalar_lea.vmem %s0, %s220
        %v222 = vld [vmem:[%s221] sm:$0xff]
        %v223 = vld [vmem:[%s221 + $0x8] sm:$0xff]
        %v224 = vld [vmem:[%s221 + $0x10] sm:$0xff]
        %v225 = vld [vmem:[%s221 + $0x18] sm:$0xff]
        %v226 = vld [vmem:[%s221 + $0x20] sm:$0xff]
        %v227 = vld [vmem:[%s221 + $0x28] sm:$0xff]
        %v228 = vld [vmem:[%s221 + $0x30] sm:$0xff]
        %v229 = vld [vmem:[%s221 + $0x38] sm:$0xff]
        %v230 = vld [vmem:[%s221 + $0x40] sm:$0xff]
        %v231 = vld [vmem:[%s221 + $0x48] sm:$0xff]
        %v232 = vld [vmem:[%s221 + $0x50] sm:$0xff]
        %v233 = vld [vmem:[%s221 + $0x58] sm:$0xff]
        %v234 = vld [vmem:[%s221 + $0x60] sm:$0xff]
        %v235 = vld [vmem:[%s221 + $0x68] sm:$0xff]
        %v236 = vld [vmem:[%s221 + $0x70] sm:$0xff]
        %v237 = vld [vmem:[%s221 + $0x78] sm:$0xff]
        %v238 = vld [vmem:[%s3] sm:$0xff]
        %v239 = vld [vmem:[%s3 + $0x8] sm:$0xff]
        %v240 = vld [vmem:[%s3 + $0x10] sm:$0xff]
        %v241 = vld [vmem:[%s3 + $0x18] sm:$0xff]
        %v242 = vld [vmem:[%s3 + $0x20] sm:$0xff]
        %v243 = vld [vmem:[%s3 + $0x28] sm:$0xff]
        %v244 = vld [vmem:[%s3 + $0x30] sm:$0xff]
        %v245 = vld [vmem:[%s3 + $0x38] sm:$0xff]
        %v246 = vld [vmem:[%s3 + $0x40] sm:$0xff]
        %v247 = vld [vmem:[%s3 + $0x48] sm:$0xff]
        %v248 = vld [vmem:[%s3 + $0x50] sm:$0xff]
        %v249 = vld [vmem:[%s3 + $0x58] sm:$0xff]
        %v250 = vld [vmem:[%s3 + $0x60] sm:$0xff]
        %v251 = vld [vmem:[%s3 + $0x68] sm:$0xff]
        %v252 = vld [vmem:[%s3 + $0x70] sm:$0xff]
        %v253 = vld [vmem:[%s3 + $0x78] sm:$0xff]
        %v254 = vld [vmem:[%s4] sm:$0x3]
        %v256 = vlaneseq
        %v257 = vshrl.u32 %v256, 7
        %v258 = vsub.s32 0, %v257
        %v259 = vrot.slane %v254, %v258
        %v260 = vlaneseq
        %v261 = vshrl.u32 %v260, 7
        %v262 = vsub.s32 1, %v261
        %v263 = vrot.slane %v254, %v262
        %vm266 = vcmask 523264
        %v268 = vsel %vm266, %v222, 0
        %v271 = vsel %vm266, %v223, 0
        %v274 = vsel %vm266, %v224, 0
        %v277 = vsel %vm266, %v225, 0
        %v280 = vsel %vm266, %v226, 0
        %v283 = vsel %vm266, %v227, 0
        %v286 = vsel %vm266, %v228, 0
        %v289 = vsel %vm266, %v229, 0
        %v292 = vsel %vm266, %v230, 0
        %v295 = vsel %vm266, %v231, 0
        %v298 = vsel %vm266, %v232, 0
        %v301 = vsel %vm266, %v233, 0
        %v304 = vsel %vm266, %v234, 0
        %v307 = vsel %vm266, %v235, 0
        %v310 = vsel %vm266, %v236, 0
        %v313 = vsel %vm266, %v237, 0
        %v315 = vand.u32 %v239, 4294901760
        %316 = vmatprep.subr.mxu0 %v315
        %v317 = vand.u32 %v238, 4294901760
        %318 = vmatpush1.msra.mxu0 %v317
        %v319 = vand.u32 %v241, 4294901760
        %320 = vmatprep.subr.mxu0 %v319
        %v321 = vand.u32 %v240, 4294901760
        %322 = vmatpush1.msra.mxu0 %v321
        %v323 = vand.u32 %v243, 4294901760
        %324 = vmatprep.subr.mxu0 %v323
        %v325 = vand.u32 %v242, 4294901760
        %326 = vmatpush1.msra.mxu0 %v325
        %v327 = vand.u32 %v245, 4294901760
        %328 = vmatprep.subr.mxu0 %v327
        %v329 = vand.u32 %v244, 4294901760
        %330 = vmatpush1.msra.mxu0 %v329
        %v331 = vand.u32 %v247, 4294901760
        %332 = vmatprep.subr.mxu0 %v331
        %v333 = vand.u32 %v246, 4294901760
        %334 = vmatpush1.msra.mxu0 %v333
        %v335 = vand.u32 %v249, 4294901760
        %336 = vmatprep.subr.mxu0 %v335
        %v337 = vand.u32 %v248, 4294901760
        %338 = vmatpush1.msra.mxu0 %v337
        %v339 = vand.u32 %v251, 4294901760
        %340 = vmatprep.subr.mxu0 %v339
        %v341 = vand.u32 %v250, 4294901760
        %342 = vmatpush1.msra.mxu0 %v341
        %v343 = vand.u32 %v253, 4294901760
        %344 = vmatprep.subr.mxu0 %v343
        %v345 = vand.u32 %v252, 4294901760
        %346 = vmatpush1.msra.mxu0 %v345
        %347 = vmatprep.subr.mxu0 0.0
        %348 = vmatpush1.msra.mxu0 0.0
        %349 = vmatprep.subr.mxu0 0.0
        %350 = vmatpush1.msra.mxu0 0.0
        %351 = vmatprep.subr.mxu0 0.0
        %352 = vmatpush1.msra.mxu0 0.0
        %353 = vmatprep.subr.mxu0 0.0
        %354 = vmatpush1.msra.mxu0 0.0
        %355 = vmatprep.subr.mxu0 0.0
        %356 = vmatpush1.msra.mxu0 0.0
        %357 = vmatprep.subr.mxu0 0.0
        %358 = vmatpush1.msra.mxu0 0.0
        %359 = vmatprep.subr.mxu0 0.0
        %360 = vmatpush1.msra.mxu0 0.0
        %361 = vmatprep.subr.mxu0 0.0
        %362 = vmatpush1.msra.mxu0 0.0
        %363 = vmatprep.subr.mxu0 0.0
        %364 = vmatpush1.msra.mxu0 0.0
        %365 = vmatprep.subr.mxu0 0.0
        %366 = vmatpush1.msra.mxu0 0.0
        %367 = vmatprep.subr.mxu0 0.0
        %368 = vmatpush1.msra.mxu0 0.0
        %369 = vmatprep.subr.mxu0 0.0
        %370 = vmatpush1.msra.mxu0 0.0
        %371 = vmatprep.subr.mxu0 0.0
        %372 = vmatpush1.msra.mxu0 0.0
        %373 = vmatprep.subr.mxu0 0.0
        %374 = vmatpush1.msra.mxu0 0.0
        %375 = vmatprep.subr.mxu0 0.0
        %376 = vmatpush1.msra.mxu0 0.0
        %377 = vmatprep.subr.mxu0 0.0
        %378 = vmatpush1.msra.mxu0 0.0
        %379 = vmatprep.subr.mxu0 0.0
        %380 = vmatpush1.msra.mxu0 0.0
        %381 = vmatprep.subr.mxu0 0.0
        %382 = vmatpush1.msra.mxu0 0.0
        %383 = vmatprep.subr.mxu0 0.0
        %384 = vmatpush1.msra.mxu0 0.0
        %385 = vmatprep.subr.mxu0 0.0
        %386 = vmatpush1.msra.mxu0 0.0
        %387 = vmatprep.subr.mxu0 0.0
        %388 = vmatpush1.msra.mxu0 0.0
        %389 = vmatprep.subr.mxu0 0.0
        %390 = vmatpush1.msra.mxu0 0.0
        %391 = vmatprep.subr.mxu0 0.0
        %392 = vmatpush1.msra.mxu0 0.0
        %393 = vmatprep.subr.mxu0 0.0
        %394 = vmatpush1.msra.mxu0 0.0
        %395 = vmatprep.mubr.f32.mxu0 0.0
        %v396 = vand.u32 %v268, 4294901760
        %v397 = vsub.f32 %v268, %v396
        %v398 = vand.u32 %v397, 4294901760
        %v399 = vsub.f32 %v397, %v398
        %v400 = vand.u32 %v399, 4294901760
        %401 = vmatmul.mubr.f32.gmra.mrb[0].mxu0 %v400
        %v402 = vpop.f32.mrb[0].mxu0
        %v403 = vadd.f32 %v259, %v402
        %v404 = vpop.f32.mrb[0].mxu0
        %v405 = vadd.f32 %v263, %v404
        %406 = vmatprep.mubr.f32.mxu0 0.0
        %v407 = vand.u32 %v271, 4294901760
        %v408 = vsub.f32 %v271, %v407
        %v409 = vand.u32 %v408, 4294901760
        %v410 = vsub.f32 %v408, %v409
        %v411 = vand.u32 %v410, 4294901760
        %412 = vmatmul.mubr.f32.gmra.mrb[0].mxu0 %v411
        %v413 = vpop.f32.mrb[0].mxu0
        %v414 = vadd.f32 %v259, %v413
        %v415 = vpop.f32.mrb[0].mxu0
        %v416 = vadd.f32 %v263, %v415
        %417 = vmatprep.mubr.f32.mxu0 0.0
        %v418 = vand.u32 %v274, 4294901760
        %v419 = vsub.f32 %v274, %v418
        %v420 = vand.u32 %v419, 4294901760
        %v421 = vsub.f32 %v419, %v420
        %v422 = vand.u32 %v421, 4294901760
        %423 = vmatmul.mubr.f32.gmra.mrb[0].mxu0 %v422
        %v424 = vpop.f32.mrb[0].mxu0
        %v425 = vadd.f32 %v259, %v424
        %v426 = vpop.f32.mrb[0].mxu0
        %v427 = vadd.f32 %v263, %v426
        %428 = vmatprep.mubr.f32.mxu0 0.0
        %v429 = vand.u32 %v277, 4294901760
        %v430 = vsub.f32 %v277, %v429
        %v431 = vand.u32 %v430, 4294901760
        %v432 = vsub.f32 %v430, %v431
        %v433 = vand.u32 %v432, 4294901760
        %434 = vmatmul.mubr.f32.gmra.mrb[0].mxu0 %v433
        %v435 = vpop.f32.mrb[0].mxu0
        %v436 = vadd.f32 %v259, %v435
        %v437 = vpop.f32.mrb[0].mxu0
        %v438 = vadd.f32 %v263, %v437
        %439 = vmatprep.mubr.f32.mxu0 0.0
        %v440 = vand.u32 %v280, 4294901760
        %v441 = vsub.f32 %v280, %v440
        %v442 = vand.u32 %v441, 4294901760
        %v443 = vsub.f32 %v441, %v442
        %v444 = vand.u32 %v443, 4294901760
        %445 = vmatmul.mubr.f32.gmra.mrb[0].mxu0 %v444
        %v446 = vpop.f32.mrb[0].mxu0
        %v447 = vadd.f32 %v259, %v446
        %v448 = vpop.f32.mrb[0].mxu0
        %v449 = vadd.f32 %v263, %v448
        %450 = vmatprep.mubr.f32.mxu0 0.0
        %v451 = vand.u32 %v283, 4294901760
        %v452 = vsub.f32 %v283, %v451
        %v453 = vand.u32 %v452, 4294901760
        %v454 = vsub.f32 %v452, %v453
        %v455 = vand.u32 %v454, 4294901760
        %456 = vmatmul.mubr.f32.gmra.mrb[0].mxu0 %v455
        %v457 = vpop.f32.mrb[0].mxu0
        %v458 = vadd.f32 %v259, %v457
        %v459 = vpop.f32.mrb[0].mxu0
        %v460 = vadd.f32 %v263, %v459
        %461 = vmatprep.mubr.f32.mxu0 0.0
        %v462 = vand.u32 %v286, 4294901760
        %v463 = vsub.f32 %v286, %v462
        %v464 = vand.u32 %v463, 4294901760
        %v465 = vsub.f32 %v463, %v464
        %v466 = vand.u32 %v465, 4294901760
        %467 = vmatmul.mubr.f32.gmra.mrb[0].mxu0 %v466
        %v468 = vpop.f32.mrb[0].mxu0
        %v469 = vadd.f32 %v259, %v468
        %v470 = vpop.f32.mrb[0].mxu0
        %v471 = vadd.f32 %v263, %v470
        %472 = vmatprep.mubr.f32.mxu0 0.0
        %v473 = vand.u32 %v289, 4294901760
        %v474 = vsub.f32 %v289, %v473
        %v475 = vand.u32 %v474, 4294901760
        %v476 = vsub.f32 %v474, %v475
        %v477 = vand.u32 %v476, 4294901760
        %478 = vmatmul.mubr.f32.gmra.mrb[0].mxu0 %v477
        %v479 = vpop.f32.mrb[0].mxu0
        %v480 = vadd.f32 %v259, %v479
        %v481 = vpop.f32.mrb[0].mxu0
        %v482 = vadd.f32 %v263, %v481
        %483 = vmatprep.mubr.f32.mxu0 0.0
        %v484 = vand.u32 %v292, 4294901760
        %v485 = vsub.f32 %v292, %v484
        %v486 = vand.u32 %v485, 4294901760
        %v487 = vsub.f32 %v485, %v486
        %v488 = vand.u32 %v487, 4294901760
        %489 = vmatmul.mubr.f32.gmra.mrb[0].mxu0 %v488
        %v490 = vpop.f32.mrb[0].mxu0
        %v491 = vadd.f32 %v259, %v490
        %v492 = vpop.f32.mrb[0].mxu0
        %v493 = vadd.f32 %v263, %v492
        %494 = vmatprep.mubr.f32.mxu0 0.0
        %v495 = vand.u32 %v295, 4294901760
        %v496 = vsub.f32 %v295, %v495
        %v497 = vand.u32 %v496, 4294901760
        %v498 = vsub.f32 %v496, %v497
        %v499 = vand.u32 %v498, 4294901760
        %500 = vmatmul.mubr.f32.gmra.mrb[0].mxu0 %v499
        %v501 = vpop.f32.mrb[0].mxu0
        %v502 = vadd.f32 %v259, %v501
        %v503 = vpop.f32.mrb[0].mxu0
        %v504 = vadd.f32 %v263, %v503
        %505 = vmatprep.mubr.f32.mxu0 0.0
        %v506 = vand.u32 %v298, 4294901760
        %v507 = vsub.f32 %v298, %v506
        %v508 = vand.u32 %v507, 4294901760
        %v509 = vsub.f32 %v507, %v508
        %v510 = vand.u32 %v509, 4294901760
        %511 = vmatmul.mubr.f32.gmra.mrb[0].mxu0 %v510
        %v512 = vpop.f32.mrb[0].mxu0
        %v513 = vadd.f32 %v259, %v512
        %v514 = vpop.f32.mrb[0].mxu0
        %v515 = vadd.f32 %v263, %v514
        %516 = vmatprep.mubr.f32.mxu0 0.0
        %v517 = vand.u32 %v301, 4294901760
        %v518 = vsub.f32 %v301, %v517
        %v519 = vand.u32 %v518, 4294901760
        %v520 = vsub.f32 %v518, %v519
        %v521 = vand.u32 %v520, 4294901760
        %522 = vmatmul.mubr.f32.gmra.mrb[0].mxu0 %v521
        %v523 = vpop.f32.mrb[0].mxu0
        %v524 = vadd.f32 %v259, %v523
        %v525 = vpop.f32.mrb[0].mxu0
        %v526 = vadd.f32 %v263, %v525
        %527 = vmatprep.mubr.f32.mxu0 0.0
        %v528 = vand.u32 %v304, 4294901760
        %v529 = vsub.f32 %v304, %v528
        %v530 = vand.u32 %v529, 4294901760
        %v531 = vsub.f32 %v529, %v530
        %v532 = vand.u32 %v531, 4294901760
        %533 = vmatmul.mubr.f32.gmra.mrb[0].mxu0 %v532
        %v534 = vpop.f32.mrb[0].mxu0
        %v535 = vadd.f32 %v259, %v534
        %v536 = vpop.f32.mrb[0].mxu0
        %v537 = vadd.f32 %v263, %v536
        %538 = vmatprep.mubr.f32.mxu0 0.0
        %v539 = vand.u32 %v307, 4294901760
        %v540 = vsub.f32 %v307, %v539
        %v541 = vand.u32 %v540, 4294901760
        %v542 = vsub.f32 %v540, %v541
        %v543 = vand.u32 %v542, 4294901760
        %544 = vmatmul.mubr.f32.gmra.mrb[0].mxu0 %v543
        %v545 = vpop.f32.mrb[0].mxu0
        %v546 = vadd.f32 %v259, %v545
        %v547 = vpop.f32.mrb[0].mxu0
        %v548 = vadd.f32 %v263, %v547
        %549 = vmatprep.mubr.f32.mxu0 0.0
        %v550 = vand.u32 %v310, 4294901760
        %v551 = vsub.f32 %v310, %v550
        %v552 = vand.u32 %v551, 4294901760
        %v553 = vsub.f32 %v551, %v552
        %v554 = vand.u32 %v553, 4294901760
        %555 = vmatmul.mubr.f32.gmra.mrb[0].mxu0 %v554
        %v556 = vpop.f32.mrb[0].mxu0
        %v557 = vadd.f32 %v259, %v556
        %v558 = vpop.f32.mrb[0].mxu0
        %v559 = vadd.f32 %v263, %v558
        %560 = vmatprep.mubr.f32.mxu0 0.0
        %v561 = vand.u32 %v313, 4294901760
        %v562 = vsub.f32 %v313, %v561
        %v563 = vand.u32 %v562, 4294901760
        %v564 = vsub.f32 %v562, %v563
        %v565 = vand.u32 %v564, 4294901760
        %566 = vmatmul.mubr.f32.gmra.mrb[0].mxu0 %v565
        %v567 = vpop.f32.mrb[0].mxu0
        %v568 = vadd.f32 %v259, %v567
        %v569 = vpop.f32.mrb[0].mxu0
        %v570 = vadd.f32 %v263, %v569
        %571 = vdwg.mxu0
        %v572 = vand.u32 %v239, 4294901760
        %v573 = vsub.f32 %v239, %v572
        %v574 = vand.u32 %v573, 4294901760
        %v575 = vsub.f32 %v573, %v574
        %v576 = vand.u32 %v575, 4294901760
        %577 = vmatprep.subr.mxu0 %v576
        %v578 = vand.u32 %v238, 4294901760
        %v579 = vsub.f32 %v238, %v578
        %v580 = vand.u32 %v579, 4294901760
        %v581 = vsub.f32 %v579, %v580
        %v582 = vand.u32 %v581, 4294901760
        %583 = vmatpush1.msra.mxu0 %v582
        %v584 = vand.u32 %v241, 4294901760
        %v585 = vsub.f32 %v241, %v584
        %v586 = vand.u32 %v585, 4294901760
        %v587 = vsub.f32 %v585, %v586
        %v588 = vand.u32 %v587, 4294901760
        %589 = vmatprep.subr.mxu0 %v588
        %v590 = vand.u32 %v240, 4294901760
        %v591 = vsub.f32 %v240, %v590
        %v592 = vand.u32 %v591, 4294901760
        %v593 = vsub.f32 %v591, %v592
        %v594 = vand.u32 %v593, 4294901760
        %595 = vmatpush1.msra.mxu0 %v594
        %v596 = vand.u32 %v243, 4294901760
        %v597 = vsub.f32 %v243, %v596
        %v598 = vand.u32 %v597, 4294901760
        %v599 = vsub.f32 %v597, %v598
        %v600 = vand.u32 %v599, 4294901760
        %601 = vmatprep.subr.mxu0 %v600
        %v602 = vand.u32 %v242, 4294901760
        %v603 = vsub.f32 %v242, %v602
        %v604 = vand.u32 %v603, 4294901760
        %v605 = vsub.f32 %v603, %v604
        %v606 = vand.u32 %v605, 4294901760
        %607 = vmatpush1.msra.mxu0 %v606
        %v608 = vand.u32 %v245, 4294901760
        %v609 = vsub.f32 %v245, %v608
        %v610 = vand.u32 %v609, 4294901760
        %v611 = vsub.f32 %v609, %v610
        %v612 = vand.u32 %v611, 4294901760
        %613 = vmatprep.subr.mxu0 %v612
        %v614 = vand.u32 %v244, 4294901760
        %v615 = vsub.f32 %v244, %v614
        %v616 = vand.u32 %v615, 4294901760
        %v617 = vsub.f32 %v615, %v616
        %v618 = vand.u32 %v617, 4294901760
        %619 = vmatpush1.msra.mxu0 %v618
        %v620 = vand.u32 %v247, 4294901760
        %v621 = vsub.f32 %v247, %v620
        %v622 = vand.u32 %v621, 4294901760
        %v623 = vsub.f32 %v621, %v622
        %v624 = vand.u32 %v623, 4294901760
        %625 = vmatprep.subr.mxu0 %v624
        %v626 = vand.u32 %v246, 4294901760
        %v627 = vsub.f32 %v246, %v626
        %v628 = vand.u32 %v627, 4294901760
        %v629 = vsub.f32 %v627, %v628
        %v630 = vand.u32 %v629, 4294901760
        %631 = vmatpush1.msra.mxu0 %v630
        %v632 = vand.u32 %v249, 4294901760
        %v633 = vsub.f32 %v249, %v632
        %v634 = vand.u32 %v633, 4294901760
        %v635 = vsub.f32 %v633, %v634
        %v636 = vand.u32 %v635, 4294901760
        %637 = vmatprep.subr.mxu0 %v636
        %v638 = vand.u32 %v248, 4294901760
        %v639 = vsub.f32 %v248, %v638
        %v640 = vand.u32 %v639, 4294901760
        %v641 = vsub.f32 %v639, %v640
        %v642 = vand.u32 %v641, 4294901760
        %643 = vmatpush1.msra.mxu0 %v642
        %v644 = vand.u32 %v251, 4294901760
        %v645 = vsub.f32 %v251, %v644
        %v646 = vand.u32 %v645, 4294901760
        %v647 = vsub.f32 %v645, %v646
        %v648 = vand.u32 %v647, 4294901760
        %649 = vmatprep.subr.mxu0 %v648
        %v650 = vand.u32 %v250, 4294901760
        %v651 = vsub.f32 %v250, %v650
        %v652 = vand.u32 %v651, 4294901760
        %v653 = vsub.f32 %v651, %v652
        %v654 = vand.u32 %v653, 4294901760
        %655 = vmatpush1.msra.mxu0 %v654
        %v656 = vand.u32 %v253, 4294901760
        %v657 = vsub.f32 %v253, %v656
        %v658 = vand.u32 %v657, 4294901760
        %v659 = vsub.f32 %v657, %v658
        %v660 = vand.u32 %v659, 4294901760
        %661 = vmatprep.subr.mxu0 %v660
        %v662 = vand.u32 %v252, 4294901760
        %v663 = vsub.f32 %v252, %v662
        %v664 = vand.u32 %v663, 4294901760
        %v665 = vsub.f32 %v663, %v664
        %v666 = vand.u32 %v665, 4294901760
        %667 = vmatpush1.msra.mxu0 %v666
        %668 = vmatprep.subr.mxu0 0.0
        %669 = vmatpush1.msra.mxu0 0.0
        %670 = vmatprep.subr.mxu0 0.0
        %671 = vmatpush1.msra.mxu0 0.0
        %672 = vmatprep.subr.mxu0 0.0
        %673 = vmatpush1.msra.mxu0 0.0
        %674 = vmatprep.subr.mxu0 0.0
        %675 = vmatpush1.msra.mxu0 0.0
        %676 = vmatprep.subr.mxu0 0.0
        %677 = vmatpush1.msra.mxu0 0.0
        %678 = vmatprep.subr.mxu0 0.0
        %679 = vmatpush1.msra.mxu0 0.0
        %680 = vmatprep.subr.mxu0 0.0
        %681 = vmatpush1.msra.mxu0 0.0
        %682 = vmatprep.subr.mxu0 0.0
        %683 = vmatpush1.msra.mxu0 0.0
        %684 = vmatprep.subr.mxu0 0.0
        %685 = vmatpush1.msra.mxu0 0.0
        %686 = vmatprep.subr.mxu0 0.0
        %687 = vmatpush1.msra.mxu0 0.0
        %688 = vmatprep.subr.mxu0 0.0
        %689 = vmatpush1.msra.mxu0 0.0
        %690 = vmatprep.subr.mxu0 0.0
        %691 = vmatpush1.msra.mxu0 0.0
        %692 = vmatprep.subr.mxu0 0.0
        %693 = vmatpush1.msra.mxu0 0.0
        %694 = vmatprep.subr.mxu0 0.0
        %695 = vmatpush1.msra.mxu0 0.0
        %696 = vmatprep.subr.mxu0 0.0
        %697 = vmatpush1.msra.mxu0 0.0
        %698 = vmatprep.subr.mxu0 0.0
        %699 = vmatpush1.msra.mxu0 0.0
        %700 = vmatprep.subr.mxu0 0.0
        %701 = vmatpush1.msra.mxu0 0.0
        %702 = vmatprep.subr.mxu0 0.0
        %703 = vmatpush1.msra.mxu0 0.0
        %704 = vmatprep.subr.mxu0 0.0
        %705 = vmatpush1.msra.mxu0 0.0
        %706 = vmatprep.subr.mxu0 0.0
        %707 = vmatpush1.msra.mxu0 0.0
        %708 = vmatprep.subr.mxu0 0.0
        %709 = vmatpush1.msra.mxu0 0.0
        %710 = vmatprep.subr.mxu0 0.0
        %711 = vmatpush1.msra.mxu0 0.0
        %712 = vmatprep.subr.mxu0 0.0
        %713 = vmatpush1.msra.mxu0 0.0
        %714 = vmatprep.subr.mxu0 0.0
        %715 = vmatpush1.msra.mxu0 0.0
        %716 = vmatprep.mubr.f32.mxu0 0.0
        %v717 = vand.u32 %v268, 4294901760
        %718 = vmatmul.mubr.f32.gmra.mrb[0].mxu0 %v717
        %v719 = vpop.f32.mrb[0].mxu0
        %v720 = vadd.f32 %v403, %v719
        %v721 = vpop.f32.mrb[0].mxu0
        %v722 = vadd.f32 %v405, %v721
        %723 = vmatprep.mubr.f32.mxu0 0.0
        %v724 = vand.u32 %v271, 4294901760
        %725 = vmatmul.mubr.f32.gmra.mrb[0].mxu0 %v724
        %v726 = vpop.f32.mrb[0].mxu0
        %v727 = vadd.f32 %v414, %v726
        %v728 = vpop.f32.mrb[0].mxu0
        %v729 = vadd.f32 %v416, %v728
        %730 = vmatprep.mubr.f32.mxu0 0.0
        %v731 = vand.u32 %v274, 4294901760
        %732 = vmatmul.mubr.f32.gmra.mrb[0].mxu0 %v731
        %v733 = vpop.f32.mrb[0].mxu0
        %v734 = vadd.f32 %v425, %v733
        %v735 = vpop.f32.mrb[0].mxu0
        %v736 = vadd.f32 %v427, %v735
        %737 = vmatprep.mubr.f32.mxu0 0.0
        %v738 = vand.u32 %v277, 4294901760
        %739 = vmatmul.mubr.f32.gmra.mrb[0].mxu0 %v738
        %v740 = vpop.f32.mrb[0].mxu0
        %v741 = vadd.f32 %v436, %v740
        %v742 = vpop.f32.mrb[0].mxu0
        %v743 = vadd.f32 %v438, %v742
        %744 = vmatprep.mubr.f32.mxu0 0.0
        %v745 = vand.u32 %v280, 4294901760
        %746 = vmatmul.mubr.f32.gmra.mrb[0].mxu0 %v745
        %v747 = vpop.f32.mrb[0].mxu0
        %v748 = vadd.f32 %v447, %v747
        %v749 = vpop.f32.mrb[0].mxu0
        %v750 = vadd.f32 %v449, %v749
        %751 = vmatprep.mubr.f32.mxu0 0.0
        %v752 = vand.u32 %v283, 4294901760
        %753 = vmatmul.mubr.f32.gmra.mrb[0].mxu0 %v752
        %v754 = vpop.f32.mrb[0].mxu0
        %v755 = vadd.f32 %v458, %v754
        %v756 = vpop.f32.mrb[0].mxu0
        %v757 = vadd.f32 %v460, %v756
        %758 = vmatprep.mubr.f32.mxu0 0.0
        %v759 = vand.u32 %v286, 4294901760
        %760 = vmatmul.mubr.f32.gmra.mrb[0].mxu0 %v759
        %v761 = vpop.f32.mrb[0].mxu0
        %v762 = vadd.f32 %v469, %v761
        %v763 = vpop.f32.mrb[0].mxu0
        %v764 = vadd.f32 %v471, %v763
        %765 = vmatprep.mubr.f32.mxu0 0.0
        %v766 = vand.u32 %v289, 4294901760
        %767 = vmatmul.mubr.f32.gmra.mrb[0].mxu0 %v766
        %v768 = vpop.f32.mrb[0].mxu0
        %v769 = vadd.f32 %v480, %v768
        %v770 = vpop.f32.mrb[0].mxu0
        %v771 = vadd.f32 %v482, %v770
        %772 = vmatprep.mubr.f32.mxu0 0.0
        %v773 = vand.u32 %v292, 4294901760
        %774 = vmatmul.mubr.f32.gmra.mrb[0].mxu0 %v773
        %v775 = vpop.f32.mrb[0].mxu0
        %v776 = vadd.f32 %v491, %v775
        %v777 = vpop.f32.mrb[0].mxu0
        %v778 = vadd.f32 %v493, %v777
        %779 = vmatprep.mubr.f32.mxu0 0.0
        %v780 = vand.u32 %v295, 4294901760
        %781 = vmatmul.mubr.f32.gmra.mrb[0].mxu0 %v780
        %v782 = vpop.f32.mrb[0].mxu0
        %v783 = vadd.f32 %v502, %v782
        %v784 = vpop.f32.mrb[0].mxu0
        %v785 = vadd.f32 %v504, %v784
        %786 = vmatprep.mubr.f32.mxu0 0.0
        %v787 = vand.u32 %v298, 4294901760
        %788 = vmatmul.mubr.f32.gmra.mrb[0].mxu0 %v787
        %v789 = vpop.f32.mrb[0].mxu0
        %v790 = vadd.f32 %v513, %v789
        %v791 = vpop.f32.mrb[0].mxu0
        %v792 = vadd.f32 %v515, %v791
        %793 = vmatprep.mubr.f32.mxu0 0.0
        %v794 = vand.u32 %v301, 4294901760
        %795 = vmatmul.mubr.f32.gmra.mrb[0].mxu0 %v794
        %v796 = vpop.f32.mrb[0].mxu0
        %v797 = vadd.f32 %v524, %v796
        %v798 = vpop.f32.mrb[0].mxu0
        %v799 = vadd.f32 %v526, %v798
        %800 = vmatprep.mubr.f32.mxu0 0.0
        %v801 = vand.u32 %v304, 4294901760
        %802 = vmatmul.mubr.f32.gmra.mrb[0].mxu0 %v801
        %v803 = vpop.f32.mrb[0].mxu0
        %v804 = vadd.f32 %v535, %v803
        %v805 = vpop.f32.mrb[0].mxu0
        %v806 = vadd.f32 %v537, %v805
        %807 = vmatprep.mubr.f32.mxu0 0.0
        %v808 = vand.u32 %v307, 4294901760
        %809 = vmatmul.mubr.f32.gmra.mrb[0].mxu0 %v808
        %v810 = vpop.f32.mrb[0].mxu0
        %v811 = vadd.f32 %v546, %v810
        %v812 = vpop.f32.mrb[0].mxu0
        %v813 = vadd.f32 %v548, %v812
        %814 = vmatprep.mubr.f32.mxu0 0.0
        %v815 = vand.u32 %v310, 4294901760
        %816 = vmatmul.mubr.f32.gmra.mrb[0].mxu0 %v815
        %v817 = vpop.f32.mrb[0].mxu0
        %v818 = vadd.f32 %v557, %v817
        %v819 = vpop.f32.mrb[0].mxu0
        %v820 = vadd.f32 %v559, %v819
        %821 = vmatprep.mubr.f32.mxu0 0.0
        %v822 = vand.u32 %v313, 4294901760
        %823 = vmatmul.mubr.f32.gmra.mrb[0].mxu0 %v822
        %v824 = vpop.f32.mrb[0].mxu0
        %v825 = vadd.f32 %v568, %v824
        %v826 = vpop.f32.mrb[0].mxu0
        %v827 = vadd.f32 %v570, %v826
        %828 = vdwg.mxu0
        %v829 = vand.u32 %v239, 4294901760
        %v830 = vsub.f32 %v239, %v829
        %831 = vmatprep.subr.mxu0 %v830
        %v832 = vand.u32 %v238, 4294901760
        %v833 = vsub.f32 %v238, %v832
        %834 = vmatpush1.msra.mxu0 %v833
        %v835 = vand.u32 %v241, 4294901760
        %v836 = vsub.f32 %v241, %v835
        %837 = vmatprep.subr.mxu0 %v836
        %v838 = vand.u32 %v240, 4294901760
        %v839 = vsub.f32 %v240, %v838
        %840 = vmatpush1.msra.mxu0 %v839
        %v841 = vand.u32 %v243, 4294901760
        %v842 = vsub.f32 %v243, %v841
        %843 = vmatprep.subr.mxu0 %v842
        %v844 = vand.u32 %v242, 4294901760
        %v845 = vsub.f32 %v242, %v844
        %846 = vmatpush1.msra.mxu0 %v845
        %v847 = vand.u32 %v245, 4294901760
        %v848 = vsub.f32 %v245, %v847
        %849 = vmatprep.subr.mxu0 %v848
        %v850 = vand.u32 %v244, 4294901760
        %v851 = vsub.f32 %v244, %v850
        %852 = vmatpush1.msra.mxu0 %v851
        %v853 = vand.u32 %v247, 4294901760
        %v854 = vsub.f32 %v247, %v853
        %855 = vmatprep.subr.mxu0 %v854
        %v856 = vand.u32 %v246, 4294901760
        %v857 = vsub.f32 %v246, %v856
        %858 = vmatpush1.msra.mxu0 %v857
        %v859 = vand.u32 %v249, 4294901760
        %v860 = vsub.f32 %v249, %v859
        %861 = vmatprep.subr.mxu0 %v860
        %v862 = vand.u32 %v248, 4294901760
        %v863 = vsub.f32 %v248, %v862
        %864 = vmatpush1.msra.mxu0 %v863
        %v865 = vand.u32 %v251, 4294901760
        %v866 = vsub.f32 %v251, %v865
        %867 = vmatprep.subr.mxu0 %v866
        %v868 = vand.u32 %v250, 4294901760
        %v869 = vsub.f32 %v250, %v868
        %870 = vmatpush1.msra.mxu0 %v869
        %v871 = vand.u32 %v253, 4294901760
        %v872 = vsub.f32 %v253, %v871
        %873 = vmatprep.subr.mxu0 %v872
        %v874 = vand.u32 %v252, 4294901760
        %v875 = vsub.f32 %v252, %v874
        %876 = vmatpush1.msra.mxu0 %v875
        %877 = vmatprep.subr.mxu0 0.0
        %878 = vmatpush1.msra.mxu0 0.0
        %879 = vmatprep.subr.mxu0 0.0
        %880 = vmatpush1.msra.mxu0 0.0
        %881 = vmatprep.subr.mxu0 0.0
        %882 = vmatpush1.msra.mxu0 0.0
        %883 = vmatprep.subr.mxu0 0.0
        %884 = vmatpush1.msra.mxu0 0.0
        %885 = vmatprep.subr.mxu0 0.0
        %886 = vmatpush1.msra.mxu0 0.0
        %887 = vmatprep.subr.mxu0 0.0
        %888 = vmatpush1.msra.mxu0 0.0
        %889 = vmatprep.subr.mxu0 0.0
        %890 = vmatpush1.msra.mxu0 0.0
        %891 = vmatprep.subr.mxu0 0.0
        %892 = vmatpush1.msra.mxu0 0.0
        %893 = vmatprep.subr.mxu0 0.0
        %894 = vmatpush1.msra.mxu0 0.0
        %895 = vmatprep.subr.mxu0 0.0
        %896 = vmatpush1.msra.mxu0 0.0
        %897 = vmatprep.subr.mxu0 0.0
        %898 = vmatpush1.msra.mxu0 0.0
        %899 = vmatprep.subr.mxu0 0.0
        %900 = vmatpush1.msra.mxu0 0.0
        %901 = vmatprep.subr.mxu0 0.0
        %902 = vmatpush1.msra.mxu0 0.0
        %903 = vmatprep.subr.mxu0 0.0
        %904 = vmatpush1.msra.mxu0 0.0
        %905 = vmatprep.subr.mxu0 0.0
        %906 = vmatpush1.msra.mxu0 0.0
        %907 = vmatprep.subr.mxu0 0.0
        %908 = vmatpush1.msra.mxu0 0.0
        %909 = vmatprep.subr.mxu0 0.0
        %910 = vmatpush1.msra.mxu0 0.0
        %911 = vmatprep.subr.mxu0 0.0
        %912 = vmatpush1.msra.mxu0 0.0
        %913 = vmatprep.subr.mxu0 0.0
        %914 = vmatpush1.msra.mxu0 0.0
        %915 = vmatprep.subr.mxu0 0.0
        %916 = vmatpush1.msra.mxu0 0.0
        %917 = vmatprep.subr.mxu0 0.0
        %918 = vmatpush1.msra.mxu0 0.0
        %919 = vmatprep.subr.mxu0 0.0
        %920 = vmatpush1.msra.mxu0 0.0
        %921 = vmatprep.subr.mxu0 0.0
        %922 = vmatpush1.msra.mxu0 0.0
        %923 = vmatprep.subr.mxu0 0.0
        %924 = vmatpush1.msra.mxu0 0.0
        %925 = vmatprep.mubr.f32.mxu0 0.0
        %v926 = vand.u32 %v268, 4294901760
        %v927 = vsub.f32 %v268, %v926
        %928 = vmatmul.mubr.f32.gmra.mrb[0].mxu0 %v927
        %v929 = vpop.f32.mrb[0].mxu0
        %v930 = vadd.f32 %v720, %v929
        %v931 = vpop.f32.mrb[0].mxu0
        %v932 = vadd.f32 %v722, %v931
        %933 = vmatprep.mubr.f32.mxu0 0.0
        %v934 = vand.u32 %v271, 4294901760
        %v935 = vsub.f32 %v271, %v934
        %936 = vmatmul.mubr.f32.gmra.mrb[0].mxu0 %v935
        %v937 = vpop.f32.mrb[0].mxu0
        %v938 = vadd.f32 %v727, %v937
        %v939 = vpop.f32.mrb[0].mxu0
        %v940 = vadd.f32 %v729, %v939
        %941 = vmatprep.mubr.f32.mxu0 0.0
        %v942 = vand.u32 %v274, 4294901760
        %v943 = vsub.f32 %v274, %v942
        %944 = vmatmul.mubr.f32.gmra.mrb[0].mxu0 %v943
        %v945 = vpop.f32.mrb[0].mxu0
        %v946 = vadd.f32 %v734, %v945
        %v947 = vpop.f32.mrb[0].mxu0
        %v948 = vadd.f32 %v736, %v947
        %949 = vmatprep.mubr.f32.mxu0 0.0
        %v950 = vand.u32 %v277, 4294901760
        %v951 = vsub.f32 %v277, %v950
        %952 = vmatmul.mubr.f32.gmra.mrb[0].mxu0 %v951
        %v953 = vpop.f32.mrb[0].mxu0
        %v954 = vadd.f32 %v741, %v953
        %v955 = vpop.f32.mrb[0].mxu0
        %v956 = vadd.f32 %v743, %v955
        %957 = vmatprep.mubr.f32.mxu0 0.0
        %v958 = vand.u32 %v280, 4294901760
        %v959 = vsub.f32 %v280, %v958
        %960 = vmatmul.mubr.f32.gmra.mrb[0].mxu0 %v959
        %v961 = vpop.f32.mrb[0].mxu0
        %v962 = vadd.f32 %v748, %v961
        %v963 = vpop.f32.mrb[0].mxu0
        %v964 = vadd.f32 %v750, %v963
        %965 = vmatprep.mubr.f32.mxu0 0.0
        %v966 = vand.u32 %v283, 4294901760
        %v967 = vsub.f32 %v283, %v966
        %968 = vmatmul.mubr.f32.gmra.mrb[0].mxu0 %v967
        %v969 = vpop.f32.mrb[0].mxu0
        %v970 = vadd.f32 %v755, %v969
        %v971 = vpop.f32.mrb[0].mxu0
        %v972 = vadd.f32 %v757, %v971
        %973 = vmatprep.mubr.f32.mxu0 0.0
        %v974 = vand.u32 %v286, 4294901760
        %v975 = vsub.f32 %v286, %v974
        %976 = vmatmul.mubr.f32.gmra.mrb[0].mxu0 %v975
        %v977 = vpop.f32.mrb[0].mxu0
        %v978 = vadd.f32 %v762, %v977
        %v979 = vpop.f32.mrb[0].mxu0
        %v980 = vadd.f32 %v764, %v979
        %981 = vmatprep.mubr.f32.mxu0 0.0
        %v982 = vand.u32 %v289, 4294901760
        %v983 = vsub.f32 %v289, %v982
        %984 = vmatmul.mubr.f32.gmra.mrb[0].mxu0 %v983
        %v985 = vpop.f32.mrb[0].mxu0
        %v986 = vadd.f32 %v769, %v985
        %v987 = vpop.f32.mrb[0].mxu0
        %v988 = vadd.f32 %v771, %v987
        %989 = vmatprep.mubr.f32.mxu0 0.0
        %v990 = vand.u32 %v292, 4294901760
        %v991 = vsub.f32 %v292, %v990
        %992 = vmatmul.mubr.f32.gmra.mrb[0].mxu0 %v991
        %v993 = vpop.f32.mrb[0].mxu0
        %v994 = vadd.f32 %v776, %v993
        %v995 = vpop.f32.mrb[0].mxu0
        %v996 = vadd.f32 %v778, %v995
        %997 = vmatprep.mubr.f32.mxu0 0.0
        %v998 = vand.u32 %v295, 4294901760
        %v999 = vsub.f32 %v295, %v998
        %1000 = vmatmul.mubr.f32.gmra.mrb[0].mxu0 %v999
        %v1001 = vpop.f32.mrb[0].mxu0
        %v1002 = vadd.f32 %v783, %v1001
        %v1003 = vpop.f32.mrb[0].mxu0
        %v1004 = vadd.f32 %v785, %v1003
        %1005 = vmatprep.mubr.f32.mxu0 0.0
        %v1006 = vand.u32 %v298, 4294901760
        %v1007 = vsub.f32 %v298, %v1006
        %1008 = vmatmul.mubr.f32.gmra.mrb[0].mxu0 %v1007
        %v1009 = vpop.f32.mrb[0].mxu0
        %v1010 = vadd.f32 %v790, %v1009
        %v1011 = vpop.f32.mrb[0].mxu0
        %v1012 = vadd.f32 %v792, %v1011
        %1013 = vmatprep.mubr.f32.mxu0 0.0
        %v1014 = vand.u32 %v301, 4294901760
        %v1015 = vsub.f32 %v301, %v1014
        %1016 = vmatmul.mubr.f32.gmra.mrb[0].mxu0 %v1015
        %v1017 = vpop.f32.mrb[0].mxu0
        %v1018 = vadd.f32 %v797, %v1017
        %v1019 = vpop.f32.mrb[0].mxu0
        %v1020 = vadd.f32 %v799, %v1019
        %1021 = vmatprep.mubr.f32.mxu0 0.0
        %v1022 = vand.u32 %v304, 4294901760
        %v1023 = vsub.f32 %v304, %v1022
        %1024 = vmatmul.mubr.f32.gmra.mrb[0].mxu0 %v1023
        %v1025 = vpop.f32.mrb[0].mxu0
        %v1026 = vadd.f32 %v804, %v1025
        %v1027 = vpop.f32.mrb[0].mxu0
        %v1028 = vadd.f32 %v806, %v1027
        %1029 = vmatprep.mubr.f32.mxu0 0.0
        %v1030 = vand.u32 %v307, 4294901760
        %v1031 = vsub.f32 %v307, %v1030
        %1032 = vmatmul.mubr.f32.gmra.mrb[0].mxu0 %v1031
        %v1033 = vpop.f32.mrb[0].mxu0
        %v1034 = vadd.f32 %v811, %v1033
        %v1035 = vpop.f32.mrb[0].mxu0
        %v1036 = vadd.f32 %v813, %v1035
        %1037 = vmatprep.mubr.f32.mxu0 0.0
        %v1038 = vand.u32 %v310, 4294901760
        %v1039 = vsub.f32 %v310, %v1038
        %1040 = vmatmul.mubr.f32.gmra.mrb[0].mxu0 %v1039
        %v1041 = vpop.f32.mrb[0].mxu0
        %v1042 = vadd.f32 %v818, %v1041
        %v1043 = vpop.f32.mrb[0].mxu0
        %v1044 = vadd.f32 %v820, %v1043
        %1045 = vmatprep.mubr.f32.mxu0 0.0
        %v1046 = vand.u32 %v313, 4294901760
        %v1047 = vsub.f32 %v313, %v1046
        %1048 = vmatmul.mubr.f32.gmra.mrb[0].mxu0 %v1047
        %v1049 = vpop.f32.mrb[0].mxu0
        %v1050 = vadd.f32 %v825, %v1049
        %v1051 = vpop.f32.mrb[0].mxu0
        %v1052 = vadd.f32 %v827, %v1051
        %1053 = vdwg.mxu0
        %v1054 = vand.u32 %v239, 4294901760
        %1055 = vmatprep.subr.mxu0 %v1054
        %v1056 = vand.u32 %v238, 4294901760
        %1057 = vmatpush1.msra.mxu0 %v1056
        %v1058 = vand.u32 %v241, 4294901760
        %1059 = vmatprep.subr.mxu0 %v1058
        %v1060 = vand.u32 %v240, 4294901760
        %1061 = vmatpush1.msra.mxu0 %v1060
        %v1062 = vand.u32 %v243, 4294901760
        %1063 = vmatprep.subr.mxu0 %v1062
        %v1064 = vand.u32 %v242, 4294901760
        %1065 = vmatpush1.msra.mxu0 %v1064
        %v1066 = vand.u32 %v245, 4294901760
        %1067 = vmatprep.subr.mxu0 %v1066
        %v1068 = vand.u32 %v244, 4294901760
        %1069 = vmatpush1.msra.mxu0 %v1068
        %v1070 = vand.u32 %v247, 4294901760
        %1071 = vmatprep.subr.mxu0 %v1070
        %v1072 = vand.u32 %v246, 4294901760
        %1073 = vmatpush1.msra.mxu0 %v1072
        %v1074 = vand.u32 %v249, 4294901760
        %1075 = vmatprep.subr.mxu0 %v1074
        %v1076 = vand.u32 %v248, 4294901760
        %1077 = vmatpush1.msra.mxu0 %v1076
        %v1078 = vand.u32 %v251, 4294901760
        %1079 = vmatprep.subr.mxu0 %v1078
        %v1080 = vand.u32 %v250, 4294901760
        %1081 = vmatpush1.msra.mxu0 %v1080
        %v1082 = vand.u32 %v253, 4294901760
        %1083 = vmatprep.subr.mxu0 %v1082
        %v1084 = vand.u32 %v252, 4294901760
        %1085 = vmatpush1.msra.mxu0 %v1084
        %1086 = vmatprep.subr.mxu0 0.0
        %1087 = vmatpush1.msra.mxu0 0.0
        %1088 = vmatprep.subr.mxu0 0.0
        %1089 = vmatpush1.msra.mxu0 0.0
        %1090 = vmatprep.subr.mxu0 0.0
        %1091 = vmatpush1.msra.mxu0 0.0
        %1092 = vmatprep.subr.mxu0 0.0
        %1093 = vmatpush1.msra.mxu0 0.0
        %1094 = vmatprep.subr.mxu0 0.0
        %1095 = vmatpush1.msra.mxu0 0.0
        %1096 = vmatprep.subr.mxu0 0.0
        %1097 = vmatpush1.msra.mxu0 0.0
        %1098 = vmatprep.subr.mxu0 0.0
        %1099 = vmatpush1.msra.mxu0 0.0
        %1100 = vmatprep.subr.mxu0 0.0
        %1101 = vmatpush1.msra.mxu0 0.0
        %1102 = vmatprep.subr.mxu0 0.0
        %1103 = vmatpush1.msra.mxu0 0.0
        %1104 = vmatprep.subr.mxu0 0.0
        %1105 = vmatpush1.msra.mxu0 0.0
        %1106 = vmatprep.subr.mxu0 0.0
        %1107 = vmatpush1.msra.mxu0 0.0
        %1108 = vmatprep.subr.mxu0 0.0
        %1109 = vmatpush1.msra.mxu0 0.0
        %1110 = vmatprep.subr.mxu0 0.0
        %1111 = vmatpush1.msra.mxu0 0.0
        %1112 = vmatprep.subr.mxu0 0.0
        %1113 = vmatpush1.msra.mxu0 0.0
        %1114 = vmatprep.subr.mxu0 0.0
        %1115 = vmatpush1.msra.mxu0 0.0
        %1116 = vmatprep.subr.mxu0 0.0
        %1117 = vmatpush1.msra.mxu0 0.0
        %1118 = vmatprep.subr.mxu0 0.0
        %1119 = vmatpush1.msra.mxu0 0.0
        %1120 = vmatprep.subr.mxu0 0.0
        %1121 = vmatpush1.msra.mxu0 0.0
        %1122 = vmatprep.subr.mxu0 0.0
        %1123 = vmatpush1.msra.mxu0 0.0
        %1124 = vmatprep.subr.mxu0 0.0
        %1125 = vmatpush1.msra.mxu0 0.0
        %1126 = vmatprep.subr.mxu0 0.0
        %1127 = vmatpush1.msra.mxu0 0.0
        %1128 = vmatprep.subr.mxu0 0.0
        %1129 = vmatpush1.msra.mxu0 0.0
        %1130 = vmatprep.subr.mxu0 0.0
        %1131 = vmatpush1.msra.mxu0 0.0
        %1132 = vmatprep.subr.mxu0 0.0
        %1133 = vmatpush1.msra.mxu0 0.0
        %1134 = vmatprep.mubr.f32.mxu0 0.0
        %v1135 = vand.u32 %v268, 4294901760
        %v1136 = vsub.f32 %v268, %v1135
        %v1137 = vand.u32 %v1136, 4294901760
        %1138 = vmatmul.mubr.f32.gmra.mrb[0].mxu0 %v1137
        %v1139 = vpop.f32.mrb[0].mxu0
        %v1140 = vadd.f32 %v930, %v1139
        %v1141 = vpop.f32.mrb[0].mxu0
        %v1142 = vadd.f32 %v932, %v1141
        %1143 = vmatprep.mubr.f32.mxu0 0.0
        %v1144 = vand.u32 %v271, 4294901760
        %v1145 = vsub.f32 %v271, %v1144
        %v1146 = vand.u32 %v1145, 4294901760
        %1147 = vmatmul.mubr.f32.gmra.mrb[0].mxu0 %v1146
        %v1148 = vpop.f32.mrb[0].mxu0
        %v1149 = vadd.f32 %v938, %v1148
        %v1150 = vpop.f32.mrb[0].mxu0
        %v1151 = vadd.f32 %v940, %v1150
        %1152 = vmatprep.mubr.f32.mxu0 0.0
        %v1153 = vand.u32 %v274, 4294901760
        %v1154 = vsub.f32 %v274, %v1153
        %v1155 = vand.u32 %v1154, 4294901760
        %1156 = vmatmul.mubr.f32.gmra.mrb[0].mxu0 %v1155
        %v1157 = vpop.f32.mrb[0].mxu0
        %v1158 = vadd.f32 %v946, %v1157
        %v1159 = vpop.f32.mrb[0].mxu0
        %v1160 = vadd.f32 %v948, %v1159
        %1161 = vmatprep.mubr.f32.mxu0 0.0
        %v1162 = vand.u32 %v277, 4294901760
        %v1163 = vsub.f32 %v277, %v1162
        %v1164 = vand.u32 %v1163, 4294901760
        %1165 = vmatmul.mubr.f32.gmra.mrb[0].mxu0 %v1164
        %v1166 = vpop.f32.mrb[0].mxu0
        %v1167 = vadd.f32 %v954, %v1166
        %v1168 = vpop.f32.mrb[0].mxu0
        %v1169 = vadd.f32 %v956, %v1168
        %1170 = vmatprep.mubr.f32.mxu0 0.0
        %v1171 = vand.u32 %v280, 4294901760
        %v1172 = vsub.f32 %v280, %v1171
        %v1173 = vand.u32 %v1172, 4294901760
        %1174 = vmatmul.mubr.f32.gmra.mrb[0].mxu0 %v1173
        %v1175 = vpop.f32.mrb[0].mxu0
        %v1176 = vadd.f32 %v962, %v1175
        %v1177 = vpop.f32.mrb[0].mxu0
        %v1178 = vadd.f32 %v964, %v1177
        %1179 = vmatprep.mubr.f32.mxu0 0.0
        %v1180 = vand.u32 %v283, 4294901760
        %v1181 = vsub.f32 %v283, %v1180
        %v1182 = vand.u32 %v1181, 4294901760
        %1183 = vmatmul.mubr.f32.gmra.mrb[0].mxu0 %v1182
        %v1184 = vpop.f32.mrb[0].mxu0
        %v1185 = vadd.f32 %v970, %v1184
        %v1186 = vpop.f32.mrb[0].mxu0
        %v1187 = vadd.f32 %v972, %v1186
        %1188 = vmatprep.mubr.f32.mxu0 0.0
        %v1189 = vand.u32 %v286, 4294901760
        %v1190 = vsub.f32 %v286, %v1189
        %v1191 = vand.u32 %v1190, 4294901760
        %1192 = vmatmul.mubr.f32.gmra.mrb[0].mxu0 %v1191
        %v1193 = vpop.f32.mrb[0].mxu0
        %v1194 = vadd.f32 %v978, %v1193
        %v1195 = vpop.f32.mrb[0].mxu0
        %v1196 = vadd.f32 %v980, %v1195
        %1197 = vmatprep.mubr.f32.mxu0 0.0
        %v1198 = vand.u32 %v289, 4294901760
        %v1199 = vsub.f32 %v289, %v1198
        %v1200 = vand.u32 %v1199, 4294901760
        %1201 = vmatmul.mubr.f32.gmra.mrb[0].mxu0 %v1200
        %v1202 = vpop.f32.mrb[0].mxu0
        %v1203 = vadd.f32 %v986, %v1202
        %v1204 = vpop.f32.mrb[0].mxu0
        %v1205 = vadd.f32 %v988, %v1204
        %1206 = vmatprep.mubr.f32.mxu0 0.0
        %v1207 = vand.u32 %v292, 4294901760
        %v1208 = vsub.f32 %v292, %v1207
        %v1209 = vand.u32 %v1208, 4294901760
        %1210 = vmatmul.mubr.f32.gmra.mrb[0].mxu0 %v1209
        %v1211 = vpop.f32.mrb[0].mxu0
        %v1212 = vadd.f32 %v994, %v1211
        %v1213 = vpop.f32.mrb[0].mxu0
        %v1214 = vadd.f32 %v996, %v1213
        %1215 = vmatprep.mubr.f32.mxu0 0.0
        %v1216 = vand.u32 %v295, 4294901760
        %v1217 = vsub.f32 %v295, %v1216
        %v1218 = vand.u32 %v1217, 4294901760
        %1219 = vmatmul.mubr.f32.gmra.mrb[0].mxu0 %v1218
        %v1220 = vpop.f32.mrb[0].mxu0
        %v1221 = vadd.f32 %v1002, %v1220
        %v1222 = vpop.f32.mrb[0].mxu0
        %v1223 = vadd.f32 %v1004, %v1222
        %1224 = vmatprep.mubr.f32.mxu0 0.0
        %v1225 = vand.u32 %v298, 4294901760
        %v1226 = vsub.f32 %v298, %v1225
        %v1227 = vand.u32 %v1226, 4294901760
        %1228 = vmatmul.mubr.f32.gmra.mrb[0].mxu0 %v1227
        %v1229 = vpop.f32.mrb[0].mxu0
        %v1230 = vadd.f32 %v1010, %v1229
        %v1231 = vpop.f32.mrb[0].mxu0
        %v1232 = vadd.f32 %v1012, %v1231
        %1233 = vmatprep.mubr.f32.mxu0 0.0
        %v1234 = vand.u32 %v301, 4294901760
        %v1235 = vsub.f32 %v301, %v1234
        %v1236 = vand.u32 %v1235, 4294901760
        %1237 = vmatmul.mubr.f32.gmra.mrb[0].mxu0 %v1236
        %v1238 = vpop.f32.mrb[0].mxu0
        %v1239 = vadd.f32 %v1018, %v1238
        %v1240 = vpop.f32.mrb[0].mxu0
        %v1241 = vadd.f32 %v1020, %v1240
        %1242 = vmatprep.mubr.f32.mxu0 0.0
        %v1243 = vand.u32 %v304, 4294901760
        %v1244 = vsub.f32 %v304, %v1243
        %v1245 = vand.u32 %v1244, 4294901760
        %1246 = vmatmul.mubr.f32.gmra.mrb[0].mxu0 %v1245
        %v1247 = vpop.f32.mrb[0].mxu0
        %v1248 = vadd.f32 %v1026, %v1247
        %v1249 = vpop.f32.mrb[0].mxu0
        %v1250 = vadd.f32 %v1028, %v1249
        %1251 = vmatprep.mubr.f32.mxu0 0.0
        %v1252 = vand.u32 %v307, 4294901760
        %v1253 = vsub.f32 %v307, %v1252
        %v1254 = vand.u32 %v1253, 4294901760
        %1255 = vmatmul.mubr.f32.gmra.mrb[0].mxu0 %v1254
        %v1256 = vpop.f32.mrb[0].mxu0
        %v1257 = vadd.f32 %v1034, %v1256
        %v1258 = vpop.f32.mrb[0].mxu0
        %v1259 = vadd.f32 %v1036, %v1258
        %1260 = vmatprep.mubr.f32.mxu0 0.0
        %v1261 = vand.u32 %v310, 4294901760
        %v1262 = vsub.f32 %v310, %v1261
        %v1263 = vand.u32 %v1262, 4294901760
        %1264 = vmatmul.mubr.f32.gmra.mrb[0].mxu0 %v1263
        %v1265 = vpop.f32.mrb[0].mxu0
        %v1266 = vadd.f32 %v1042, %v1265
        %v1267 = vpop.f32.mrb[0].mxu0
        %v1268 = vadd.f32 %v1044, %v1267
        %1269 = vmatprep.mubr.f32.mxu0 0.0
        %v1270 = vand.u32 %v313, 4294901760
        %v1271 = vsub.f32 %v313, %v1270
        %v1272 = vand.u32 %v1271, 4294901760
        %1273 = vmatmul.mubr.f32.gmra.mrb[0].mxu0 %v1272
        %v1274 = vpop.f32.mrb[0].mxu0
        %v1275 = vadd.f32 %v1050, %v1274
        %v1276 = vpop.f32.mrb[0].mxu0
        %v1277 = vadd.f32 %v1052, %v1276
        %1278 = vdwg.mxu0
        %v1279 = vand.u32 %v239, 4294901760
        %v1280 = vsub.f32 %v239, %v1279
        %v1281 = vand.u32 %v1280, 4294901760
        %1282 = vmatprep.subr.mxu0 %v1281
        %v1283 = vand.u32 %v238, 4294901760
        %v1284 = vsub.f32 %v238, %v1283
        %v1285 = vand.u32 %v1284, 4294901760
        %1286 = vmatpush1.msra.mxu0 %v1285
        %v1287 = vand.u32 %v241, 4294901760
        %v1288 = vsub.f32 %v241, %v1287
        %v1289 = vand.u32 %v1288, 4294901760
        %1290 = vmatprep.subr.mxu0 %v1289
        %v1291 = vand.u32 %v240, 4294901760
        %v1292 = vsub.f32 %v240, %v1291
        %v1293 = vand.u32 %v1292, 4294901760
        %1294 = vmatpush1.msra.mxu0 %v1293
        %v1295 = vand.u32 %v243, 4294901760
        %v1296 = vsub.f32 %v243, %v1295
        %v1297 = vand.u32 %v1296, 4294901760
        %1298 = vmatprep.subr.mxu0 %v1297
        %v1299 = vand.u32 %v242, 4294901760
        %v1300 = vsub.f32 %v242, %v1299
        %v1301 = vand.u32 %v1300, 4294901760
        %1302 = vmatpush1.msra.mxu0 %v1301
        %v1303 = vand.u32 %v245, 4294901760
        %v1304 = vsub.f32 %v245, %v1303
        %v1305 = vand.u32 %v1304, 4294901760
        %1306 = vmatprep.subr.mxu0 %v1305
        %v1307 = vand.u32 %v244, 4294901760
        %v1308 = vsub.f32 %v244, %v1307
        %v1309 = vand.u32 %v1308, 4294901760
        %1310 = vmatpush1.msra.mxu0 %v1309
        %v1311 = vand.u32 %v247, 4294901760
        %v1312 = vsub.f32 %v247, %v1311
        %v1313 = vand.u32 %v1312, 4294901760
        %1314 = vmatprep.subr.mxu0 %v1313
        %v1315 = vand.u32 %v246, 4294901760
        %v1316 = vsub.f32 %v246, %v1315
        %v1317 = vand.u32 %v1316, 4294901760
        %1318 = vmatpush1.msra.mxu0 %v1317
        %v1319 = vand.u32 %v249, 4294901760
        %v1320 = vsub.f32 %v249, %v1319
        %v1321 = vand.u32 %v1320, 4294901760
        %1322 = vmatprep.subr.mxu0 %v1321
        %v1323 = vand.u32 %v248, 4294901760
        %v1324 = vsub.f32 %v248, %v1323
        %v1325 = vand.u32 %v1324, 4294901760
        %1326 = vmatpush1.msra.mxu0 %v1325
        %v1327 = vand.u32 %v251, 4294901760
        %v1328 = vsub.f32 %v251, %v1327
        %v1329 = vand.u32 %v1328, 4294901760
        %1330 = vmatprep.subr.mxu0 %v1329
        %v1331 = vand.u32 %v250, 4294901760
        %v1332 = vsub.f32 %v250, %v1331
        %v1333 = vand.u32 %v1332, 4294901760
        %1334 = vmatpush1.msra.mxu0 %v1333
        %v1335 = vand.u32 %v253, 4294901760
        %v1336 = vsub.f32 %v253, %v1335
        %v1337 = vand.u32 %v1336, 4294901760
        %1338 = vmatprep.subr.mxu0 %v1337
        %v1339 = vand.u32 %v252, 4294901760
        %v1340 = vsub.f32 %v252, %v1339
        %v1341 = vand.u32 %v1340, 4294901760
        %1342 = vmatpush1.msra.mxu0 %v1341
        %1343 = vmatprep.subr.mxu0 0.0
        %1344 = vmatpush1.msra.mxu0 0.0
        %1345 = vmatprep.subr.mxu0 0.0
        %1346 = vmatpush1.msra.mxu0 0.0
        %1347 = vmatprep.subr.mxu0 0.0
        %1348 = vmatpush1.msra.mxu0 0.0
        %1349 = vmatprep.subr.mxu0 0.0
        %1350 = vmatpush1.msra.mxu0 0.0
        %1351 = vmatprep.subr.mxu0 0.0
        %1352 = vmatpush1.msra.mxu0 0.0
        %1353 = vmatprep.subr.mxu0 0.0
        %1354 = vmatpush1.msra.mxu0 0.0
        %1355 = vmatprep.subr.mxu0 0.0
        %1356 = vmatpush1.msra.mxu0 0.0
        %1357 = vmatprep.subr.mxu0 0.0
        %1358 = vmatpush1.msra.mxu0 0.0
        %1359 = vmatprep.subr.mxu0 0.0
        %1360 = vmatpush1.msra.mxu0 0.0
        %1361 = vmatprep.subr.mxu0 0.0
        %1362 = vmatpush1.msra.mxu0 0.0
        %1363 = vmatprep.subr.mxu0 0.0
        %1364 = vmatpush1.msra.mxu0 0.0
        %1365 = vmatprep.subr.mxu0 0.0
        %1366 = vmatpush1.msra.mxu0 0.0
        %1367 = vmatprep.subr.mxu0 0.0
        %1368 = vmatpush1.msra.mxu0 0.0
        %1369 = vmatprep.subr.mxu0 0.0
        %1370 = vmatpush1.msra.mxu0 0.0
        %1371 = vmatprep.subr.mxu0 0.0
        %1372 = vmatpush1.msra.mxu0 0.0
        %1373 = vmatprep.subr.mxu0 0.0
        %1374 = vmatpush1.msra.mxu0 0.0
        %1375 = vmatprep.subr.mxu0 0.0
        %1376 = vmatpush1.msra.mxu0 0.0
        %1377 = vmatprep.subr.mxu0 0.0
        %1378 = vmatpush1.msra.mxu0 0.0
        %1379 = vmatprep.subr.mxu0 0.0
        %1380 = vmatpush1.msra.mxu0 0.0
        %1381 = vmatprep.subr.mxu0 0.0
        %1382 = vmatpush1.msra.mxu0 0.0
        %1383 = vmatprep.subr.mxu0 0.0
        %1384 = vmatpush1.msra.mxu0 0.0
        %1385 = vmatprep.subr.mxu0 0.0
        %1386 = vmatpush1.msra.mxu0 0.0
        %1387 = vmatprep.subr.mxu0 0.0
        %1388 = vmatpush1.msra.mxu0 0.0
        %1389 = vmatprep.subr.mxu0 0.0
        %1390 = vmatpush1.msra.mxu0 0.0
        %1391 = vmatprep.mubr.f32.mxu0 0.0
        %v1392 = vand.u32 %v268, 4294901760
        %1393 = vmatmul.mubr.f32.gmra.mrb[0].mxu0 %v1392
        %v1394 = vpop.f32.mrb[0].mxu0
        %v1395 = vadd.f32 %v1140, %v1394
        %v1396 = vpop.f32.mrb[0].mxu0
        %v1397 = vadd.f32 %v1142, %v1396
        %1398 = vmatprep.mubr.f32.mxu0 0.0
        %v1399 = vand.u32 %v271, 4294901760
        %1400 = vmatmul.mubr.f32.gmra.mrb[0].mxu0 %v1399
        %v1401 = vpop.f32.mrb[0].mxu0
        %v1402 = vadd.f32 %v1149, %v1401
        %v1403 = vpop.f32.mrb[0].mxu0
        %v1404 = vadd.f32 %v1151, %v1403
        %1405 = vmatprep.mubr.f32.mxu0 0.0
        %v1406 = vand.u32 %v274, 4294901760
        %1407 = vmatmul.mubr.f32.gmra.mrb[0].mxu0 %v1406
        %v1408 = vpop.f32.mrb[0].mxu0
        %v1409 = vadd.f32 %v1158, %v1408
        %v1410 = vpop.f32.mrb[0].mxu0
        %v1411 = vadd.f32 %v1160, %v1410
        %1412 = vmatprep.mubr.f32.mxu0 0.0
        %v1413 = vand.u32 %v277, 4294901760
        %1414 = vmatmul.mubr.f32.gmra.mrb[0].mxu0 %v1413
        %v1415 = vpop.f32.mrb[0].mxu0
        %v1416 = vadd.f32 %v1167, %v1415
        %v1417 = vpop.f32.mrb[0].mxu0
        %v1418 = vadd.f32 %v1169, %v1417
        %1419 = vmatprep.mubr.f32.mxu0 0.0
        %v1420 = vand.u32 %v280, 4294901760
        %1421 = vmatmul.mubr.f32.gmra.mrb[0].mxu0 %v1420
        %v1422 = vpop.f32.mrb[0].mxu0
        %v1423 = vadd.f32 %v1176, %v1422
        %v1424 = vpop.f32.mrb[0].mxu0
        %v1425 = vadd.f32 %v1178, %v1424
        %1426 = vmatprep.mubr.f32.mxu0 0.0
        %v1427 = vand.u32 %v283, 4294901760
        %1428 = vmatmul.mubr.f32.gmra.mrb[0].mxu0 %v1427
        %v1429 = vpop.f32.mrb[0].mxu0
        %v1430 = vadd.f32 %v1185, %v1429
        %v1431 = vpop.f32.mrb[0].mxu0
        %v1432 = vadd.f32 %v1187, %v1431
        %1433 = vmatprep.mubr.f32.mxu0 0.0
        %v1434 = vand.u32 %v286, 4294901760
        %1435 = vmatmul.mubr.f32.gmra.mrb[0].mxu0 %v1434
        %v1436 = vpop.f32.mrb[0].mxu0
        %v1437 = vadd.f32 %v1194, %v1436
        %v1438 = vpop.f32.mrb[0].mxu0
        %v1439 = vadd.f32 %v1196, %v1438
        %1440 = vmatprep.mubr.f32.mxu0 0.0
        %v1441 = vand.u32 %v289, 4294901760
        %1442 = vmatmul.mubr.f32.gmra.mrb[0].mxu0 %v1441
        %v1443 = vpop.f32.mrb[0].mxu0
        %v1444 = vadd.f32 %v1203, %v1443
        %v1445 = vpop.f32.mrb[0].mxu0
        %v1446 = vadd.f32 %v1205, %v1445
        %1447 = vmatprep.mubr.f32.mxu0 0.0
        %v1448 = vand.u32 %v292, 4294901760
        %1449 = vmatmul.mubr.f32.gmra.mrb[0].mxu0 %v1448
        %v1450 = vpop.f32.mrb[0].mxu0
        %v1451 = vadd.f32 %v1212, %v1450
        %v1452 = vpop.f32.mrb[0].mxu0
        %v1453 = vadd.f32 %v1214, %v1452
        %1454 = vmatprep.mubr.f32.mxu0 0.0
        %v1455 = vand.u32 %v295, 4294901760
        %1456 = vmatmul.mubr.f32.gmra.mrb[0].mxu0 %v1455
        %v1457 = vpop.f32.mrb[0].mxu0
        %v1458 = vadd.f32 %v1221, %v1457
        %v1459 = vpop.f32.mrb[0].mxu0
        %v1460 = vadd.f32 %v1223, %v1459
        %1461 = vmatprep.mubr.f32.mxu0 0.0
        %v1462 = vand.u32 %v298, 4294901760
        %1463 = vmatmul.mubr.f32.gmra.mrb[0].mxu0 %v1462
        %v1464 = vpop.f32.mrb[0].mxu0
        %v1465 = vadd.f32 %v1230, %v1464
        %v1466 = vpop.f32.mrb[0].mxu0
        %v1467 = vadd.f32 %v1232, %v1466
        %1468 = vmatprep.mubr.f32.mxu0 0.0
        %v1469 = vand.u32 %v301, 4294901760
        %1470 = vmatmul.mubr.f32.gmra.mrb[0].mxu0 %v1469
        %v1471 = vpop.f32.mrb[0].mxu0
        %v1472 = vadd.f32 %v1239, %v1471
        %v1473 = vpop.f32.mrb[0].mxu0
        %v1474 = vadd.f32 %v1241, %v1473
        %1475 = vmatprep.mubr.f32.mxu0 0.0
        %v1476 = vand.u32 %v304, 4294901760
        %1477 = vmatmul.mubr.f32.gmra.mrb[0].mxu0 %v1476
        %v1478 = vpop.f32.mrb[0].mxu0
        %v1479 = vadd.f32 %v1248, %v1478
        %v1480 = vpop.f32.mrb[0].mxu0
        %v1481 = vadd.f32 %v1250, %v1480
        %1482 = vmatprep.mubr.f32.mxu0 0.0
        %v1483 = vand.u32 %v307, 4294901760
        %1484 = vmatmul.mubr.f32.gmra.mrb[0].mxu0 %v1483
        %v1485 = vpop.f32.mrb[0].mxu0
        %v1486 = vadd.f32 %v1257, %v1485
        %v1487 = vpop.f32.mrb[0].mxu0
        %v1488 = vadd.f32 %v1259, %v1487
        %1489 = vmatprep.mubr.f32.mxu0 0.0
        %v1490 = vand.u32 %v310, 4294901760
        %1491 = vmatmul.mubr.f32.gmra.mrb[0].mxu0 %v1490
        %v1492 = vpop.f32.mrb[0].mxu0
        %v1493 = vadd.f32 %v1266, %v1492
        %v1494 = vpop.f32.mrb[0].mxu0
        %v1495 = vadd.f32 %v1268, %v1494
        %1496 = vmatprep.mubr.f32.mxu0 0.0
        %v1497 = vand.u32 %v313, 4294901760
        %1498 = vmatmul.mubr.f32.gmra.mrb[0].mxu0 %v1497
        %v1499 = vpop.f32.mrb[0].mxu0
        %v1500 = vadd.f32 %v1275, %v1499
        %v1501 = vpop.f32.mrb[0].mxu0
        %v1502 = vadd.f32 %v1277, %v1501
        %1503 = vdwg.mxu0
        %v1504 = vand.u32 %v239, 4294901760
        %1505 = vmatprep.subr.mxu0 %v1504
        %v1506 = vand.u32 %v238, 4294901760
        %1507 = vmatpush1.msra.mxu0 %v1506
        %v1508 = vand.u32 %v241, 4294901760
        %1509 = vmatprep.subr.mxu0 %v1508
        %v1510 = vand.u32 %v240, 4294901760
        %1511 = vmatpush1.msra.mxu0 %v1510
        %v1512 = vand.u32 %v243, 4294901760
        %1513 = vmatprep.subr.mxu0 %v1512
        %v1514 = vand.u32 %v242, 4294901760
        %1515 = vmatpush1.msra.mxu0 %v1514
        %v1516 = vand.u32 %v245, 4294901760
        %1517 = vmatprep.subr.mxu0 %v1516
        %v1518 = vand.u32 %v244, 4294901760
        %1519 = vmatpush1.msra.mxu0 %v1518
        %v1520 = vand.u32 %v247, 4294901760
        %1521 = vmatprep.subr.mxu0 %v1520
        %v1522 = vand.u32 %v246, 4294901760
        %1523 = vmatpush1.msra.mxu0 %v1522
        %v1524 = vand.u32 %v249, 4294901760
        %1525 = vmatprep.subr.mxu0 %v1524
        %v1526 = vand.u32 %v248, 4294901760
        %1527 = vmatpush1.msra.mxu0 %v1526
        %v1528 = vand.u32 %v251, 4294901760
        %1529 = vmatprep.subr.mxu0 %v1528
        %v1530 = vand.u32 %v250, 4294901760
        %1531 = vmatpush1.msra.mxu0 %v1530
        %v1532 = vand.u32 %v253, 4294901760
        %1533 = vmatprep.subr.mxu0 %v1532
        %v1534 = vand.u32 %v252, 4294901760
        %1535 = vmatpush1.msra.mxu0 %v1534
        %1536 = vmatprep.subr.mxu0 0.0
        %1537 = vmatpush1.msra.mxu0 0.0
        %1538 = vmatprep.subr.mxu0 0.0
        %1539 = vmatpush1.msra.mxu0 0.0
        %1540 = vmatprep.subr.mxu0 0.0
        %1541 = vmatpush1.msra.mxu0 0.0
        %1542 = vmatprep.subr.mxu0 0.0
        %1543 = vmatpush1.msra.mxu0 0.0
        %1544 = vmatprep.subr.mxu0 0.0
        %1545 = vmatpush1.msra.mxu0 0.0
        %1546 = vmatprep.subr.mxu0 0.0
        %1547 = vmatpush1.msra.mxu0 0.0
        %1548 = vmatprep.subr.mxu0 0.0
        %1549 = vmatpush1.msra.mxu0 0.0
        %1550 = vmatprep.subr.mxu0 0.0
        %1551 = vmatpush1.msra.mxu0 0.0
        %1552 = vmatprep.subr.mxu0 0.0
        %1553 = vmatpush1.msra.mxu0 0.0
        %1554 = vmatprep.subr.mxu0 0.0
        %1555 = vmatpush1.msra.mxu0 0.0
        %1556 = vmatprep.subr.mxu0 0.0
        %1557 = vmatpush1.msra.mxu0 0.0
        %1558 = vmatprep.subr.mxu0 0.0
        %1559 = vmatpush1.msra.mxu0 0.0
        %1560 = vmatprep.subr.mxu0 0.0
        %1561 = vmatpush1.msra.mxu0 0.0
        %1562 = vmatprep.subr.mxu0 0.0
        %1563 = vmatpush1.msra.mxu0 0.0
        %1564 = vmatprep.subr.mxu0 0.0
        %1565 = vmatpush1.msra.mxu0 0.0
        %1566 = vmatprep.subr.mxu0 0.0
        %1567 = vmatpush1.msra.mxu0 0.0
        %1568 = vmatprep.subr.mxu0 0.0
        %1569 = vmatpush1.msra.mxu0 0.0
        %1570 = vmatprep.subr.mxu0 0.0
        %1571 = vmatpush1.msra.mxu0 0.0
        %1572 = vmatprep.subr.mxu0 0.0
        %1573 = vmatpush1.msra.mxu0 0.0
        %1574 = vmatprep.subr.mxu0 0.0
        %1575 = vmatpush1.msra.mxu0 0.0
        %1576 = vmatprep.subr.mxu0 0.0
        %1577 = vmatpush1.msra.mxu0 0.0
        %1578 = vmatprep.subr.mxu0 0.0
        %1579 = vmatpush1.msra.mxu0 0.0
        %1580 = vmatprep.subr.mxu0 0.0
        %1581 = vmatpush1.msra.mxu0 0.0
        %1582 = vmatprep.subr.mxu0 0.0
        %1583 = vmatpush1.msra.mxu0 0.0
        %1584 = vmatprep.mubr.f32.mxu0 0.0
        %v1585 = vand.u32 %v268, 4294901760
        %1586 = vmatmul.mubr.f32.gmra.mrb[0].mxu0 %v1585
        %v1587 = vpop.f32.mrb[0].mxu0
        %v1588 = vadd.f32 %v1395, %v1587
        %v1589 = vpop.f32.mrb[0].mxu0
        %v1590 = vadd.f32 %v1397, %v1589
        %1591 = vmatprep.mubr.f32.mxu0 0.0
        %v1592 = vand.u32 %v271, 4294901760
        %1593 = vmatmul.mubr.f32.gmra.mrb[0].mxu0 %v1592
        %v1594 = vpop.f32.mrb[0].mxu0
        %v1595 = vadd.f32 %v1402, %v1594
        %v1596 = vpop.f32.mrb[0].mxu0
        %v1597 = vadd.f32 %v1404, %v1596
        %1598 = vmatprep.mubr.f32.mxu0 0.0
        %v1599 = vand.u32 %v274, 4294901760
        %1600 = vmatmul.mubr.f32.gmra.mrb[0].mxu0 %v1599
        %v1601 = vpop.f32.mrb[0].mxu0
        %v1602 = vadd.f32 %v1409, %v1601
        %v1603 = vpop.f32.mrb[0].mxu0
        %v1604 = vadd.f32 %v1411, %v1603
        %1605 = vmatprep.mubr.f32.mxu0 0.0
        %v1606 = vand.u32 %v277, 4294901760
        %1607 = vmatmul.mubr.f32.gmra.mrb[0].mxu0 %v1606
        %v1608 = vpop.f32.mrb[0].mxu0
        %v1609 = vadd.f32 %v1416, %v1608
        %v1610 = vpop.f32.mrb[0].mxu0
        %v1611 = vadd.f32 %v1418, %v1610
        %1612 = vmatprep.mubr.f32.mxu0 0.0
        %v1613 = vand.u32 %v280, 4294901760
        %1614 = vmatmul.mubr.f32.gmra.mrb[0].mxu0 %v1613
        %v1615 = vpop.f32.mrb[0].mxu0
        %v1616 = vadd.f32 %v1423, %v1615
        %v1617 = vpop.f32.mrb[0].mxu0
        %v1618 = vadd.f32 %v1425, %v1617
        %1619 = vmatprep.mubr.f32.mxu0 0.0
        %v1620 = vand.u32 %v283, 4294901760
        %1621 = vmatmul.mubr.f32.gmra.mrb[0].mxu0 %v1620
        %v1622 = vpop.f32.mrb[0].mxu0
        %v1623 = vadd.f32 %v1430, %v1622
        %v1624 = vpop.f32.mrb[0].mxu0
        %v1625 = vadd.f32 %v1432, %v1624
        %1626 = vmatprep.mubr.f32.mxu0 0.0
        %v1627 = vand.u32 %v286, 4294901760
        %1628 = vmatmul.mubr.f32.gmra.mrb[0].mxu0 %v1627
        %v1629 = vpop.f32.mrb[0].mxu0
        %v1630 = vadd.f32 %v1437, %v1629
        %v1631 = vpop.f32.mrb[0].mxu0
        %v1632 = vadd.f32 %v1439, %v1631
        %1633 = vmatprep.mubr.f32.mxu0 0.0
        %v1634 = vand.u32 %v289, 4294901760
        %1635 = vmatmul.mubr.f32.gmra.mrb[0].mxu0 %v1634
        %v1636 = vpop.f32.mrb[0].mxu0
        %v1637 = vadd.f32 %v1444, %v1636
        %v1638 = vpop.f32.mrb[0].mxu0
        %v1639 = vadd.f32 %v1446, %v1638
        %1640 = vmatprep.mubr.f32.mxu0 0.0
        %v1641 = vand.u32 %v292, 4294901760
        %1642 = vmatmul.mubr.f32.gmra.mrb[0].mxu0 %v1641
        %v1643 = vpop.f32.mrb[0].mxu0
        %v1644 = vadd.f32 %v1451, %v1643
        %v1645 = vpop.f32.mrb[0].mxu0
        %v1646 = vadd.f32 %v1453, %v1645
        %1647 = vmatprep.mubr.f32.mxu0 0.0
        %v1648 = vand.u32 %v295, 4294901760
        %1649 = vmatmul.mubr.f32.gmra.mrb[0].mxu0 %v1648
        %v1650 = vpop.f32.mrb[0].mxu0
        %v1651 = vadd.f32 %v1458, %v1650
        %v1652 = vpop.f32.mrb[0].mxu0
        %v1653 = vadd.f32 %v1460, %v1652
        %1654 = vmatprep.mubr.f32.mxu0 0.0
        %v1655 = vand.u32 %v298, 4294901760
        %1656 = vmatmul.mubr.f32.gmra.mrb[0].mxu0 %v1655
        %v1657 = vpop.f32.mrb[0].mxu0
        %v1658 = vadd.f32 %v1465, %v1657
        %v1659 = vpop.f32.mrb[0].mxu0
        %v1660 = vadd.f32 %v1467, %v1659
        %1661 = vmatprep.mubr.f32.mxu0 0.0
        %v1662 = vand.u32 %v301, 4294901760
        %1663 = vmatmul.mubr.f32.gmra.mrb[0].mxu0 %v1662
        %v1664 = vpop.f32.mrb[0].mxu0
        %v1665 = vadd.f32 %v1472, %v1664
        %v1666 = vpop.f32.mrb[0].mxu0
        %v1667 = vadd.f32 %v1474, %v1666
        %1668 = vmatprep.mubr.f32.mxu0 0.0
        %v1669 = vand.u32 %v304, 4294901760
        %1670 = vmatmul.mubr.f32.gmra.mrb[0].mxu0 %v1669
        %v1671 = vpop.f32.mrb[0].mxu0
        %v1672 = vadd.f32 %v1479, %v1671
        %v1673 = vpop.f32.mrb[0].mxu0
        %v1674 = vadd.f32 %v1481, %v1673
        %1675 = vmatprep.mubr.f32.mxu0 0.0
        %v1676 = vand.u32 %v307, 4294901760
        %1677 = vmatmul.mubr.f32.gmra.mrb[0].mxu0 %v1676
        %v1678 = vpop.f32.mrb[0].mxu0
        %v1679 = vadd.f32 %v1486, %v1678
        %v1680 = vpop.f32.mrb[0].mxu0
        %v1681 = vadd.f32 %v1488, %v1680
        %1682 = vmatprep.mubr.f32.mxu0 0.0
        %v1683 = vand.u32 %v310, 4294901760
        %1684 = vmatmul.mubr.f32.gmra.mrb[0].mxu0 %v1683
        %v1685 = vpop.f32.mrb[0].mxu0
        %v1686 = vadd.f32 %v1493, %v1685
        %v1687 = vpop.f32.mrb[0].mxu0
        %v1688 = vadd.f32 %v1495, %v1687
        %1689 = vmatprep.mubr.f32.mxu0 0.0
        %v1690 = vand.u32 %v313, 4294901760
        %1691 = vmatmul.mubr.f32.gmra.mrb[0].mxu0 %v1690
        %v1692 = vpop.f32.mrb[0].mxu0
        %v1693 = vadd.f32 %v1500, %v1692
        %v1694 = vpop.f32.mrb[0].mxu0
        %v1695 = vadd.f32 %v1502, %v1694
        %1696 = vdwg.mxu0
        %v1697 = vld [vmem:[%s1] sm:$0xff]
        %v1698 = vld [vmem:[%s1 + $0x8] sm:$0xff]
        %v1699 = vld [vmem:[%s1 + $0x10] sm:$0xff]
        %v1700 = vld [vmem:[%s1 + $0x18] sm:$0xff]
        %v1701 = vld [vmem:[%s1 + $0x20] sm:$0xff]
        %v1702 = vld [vmem:[%s1 + $0x28] sm:$0xff]
        %v1703 = vld [vmem:[%s1 + $0x30] sm:$0xff]
        %v1704 = vld [vmem:[%s1 + $0x38] sm:$0xff]
        %v1705 = vld [vmem:[%s2] sm:$0x1]
        %v1706 = vrot.slane %v237, 7
        %v1707 = vsel %vm266, %v1706, 0
        %1709 = vmatprep.subr.mxu0 0.0
        %v1710 = vand.u32 %v1697, 4294901760
        %1711 = vmatpush1.msra.mxu0 %v1710
        %1712 = vmatprep.subr.mxu0 0.0
        %v1713 = vand.u32 %v1698, 4294901760
        %1714 = vmatpush1.msra.mxu0 %v1713
        %1715 = vmatprep.subr.mxu0 0.0
        %v1716 = vand.u32 %v1699, 4294901760
        %1717 = vmatpush1.msra.mxu0 %v1716
        %1718 = vmatprep.subr.mxu0 0.0
        %v1719 = vand.u32 %v1700, 4294901760
        %1720 = vmatpush1.msra.mxu0 %v1719
        %1721 = vmatprep.subr.mxu0 0.0
        %v1722 = vand.u32 %v1701, 4294901760
        %1723 = vmatpush1.msra.mxu0 %v1722
        %1724 = vmatprep.subr.mxu0 0.0
        %v1725 = vand.u32 %v1702, 4294901760
        %1726 = vmatpush1.msra.mxu0 %v1725
        %1727 = vmatprep.subr.mxu0 0.0
        %v1728 = vand.u32 %v1703, 4294901760
        %1729 = vmatpush1.msra.mxu0 %v1728
        %1730 = vmatprep.subr.mxu0 0.0
        %v1731 = vand.u32 %v1704, 4294901760
        %1732 = vmatpush1.msra.mxu0 %v1731
        %1733 = vmatprep.subr.mxu0 0.0
        %1734 = vmatpush1.msra.mxu0 0.0
        %1735 = vmatprep.subr.mxu0 0.0
        %1736 = vmatpush1.msra.mxu0 0.0
        %1737 = vmatprep.subr.mxu0 0.0
        %1738 = vmatpush1.msra.mxu0 0.0
        %1739 = vmatprep.subr.mxu0 0.0
        %1740 = vmatpush1.msra.mxu0 0.0
        %1741 = vmatprep.subr.mxu0 0.0
        %1742 = vmatpush1.msra.mxu0 0.0
        %1743 = vmatprep.subr.mxu0 0.0
        %1744 = vmatpush1.msra.mxu0 0.0
        %1745 = vmatprep.subr.mxu0 0.0
        %1746 = vmatpush1.msra.mxu0 0.0
        %1747 = vmatprep.subr.mxu0 0.0
        %1748 = vmatpush1.msra.mxu0 0.0
        %1749 = vmatprep.subr.mxu0 0.0
        %1750 = vmatpush1.msra.mxu0 0.0
        %1751 = vmatprep.subr.mxu0 0.0
        %1752 = vmatpush1.msra.mxu0 0.0
        %1753 = vmatprep.subr.mxu0 0.0
        %1754 = vmatpush1.msra.mxu0 0.0
        %1755 = vmatprep.subr.mxu0 0.0
        %1756 = vmatpush1.msra.mxu0 0.0
        %1757 = vmatprep.subr.mxu0 0.0
        %1758 = vmatpush1.msra.mxu0 0.0
        %1759 = vmatprep.subr.mxu0 0.0
        %1760 = vmatpush1.msra.mxu0 0.0
        %1761 = vmatprep.subr.mxu0 0.0
        %1762 = vmatpush1.msra.mxu0 0.0
        %1763 = vmatprep.subr.mxu0 0.0
        %1764 = vmatpush1.msra.mxu0 0.0
        %1765 = vmatprep.subr.mxu0 0.0
        %1766 = vmatpush1.msra.mxu0 0.0
        %1767 = vmatprep.subr.mxu0 0.0
        %1768 = vmatpush1.msra.mxu0 0.0
        %1769 = vmatprep.subr.mxu0 0.0
        %1770 = vmatpush1.msra.mxu0 0.0
        %1771 = vmatprep.subr.mxu0 0.0
        %1772 = vmatpush1.msra.mxu0 0.0
        %1773 = vmatprep.subr.mxu0 0.0
        %1774 = vmatpush1.msra.mxu0 0.0
        %1775 = vmatprep.subr.mxu0 0.0
        %1776 = vmatpush1.msra.mxu0 0.0
        %1777 = vmatprep.subr.mxu0 0.0
        %1778 = vmatpush1.msra.mxu0 0.0
        %1779 = vmatprep.subr.mxu0 0.0
        %1780 = vmatpush1.msra.mxu0 0.0
        %1781 = vmatprep.mubr.f32.mxu0 0.0
        %v1782 = vand.u32 %v1707, 4294901760
        %v1783 = vsub.f32 %v1707, %v1782
        %v1784 = vand.u32 %v1783, 4294901760
        %v1785 = vsub.f32 %v1783, %v1784
        %v1786 = vand.u32 %v1785, 4294901760
        %1787 = vmatmul.mubr.f32.gmra.mrb[0].mxu0 %v1786
        %v1788 = vpop.f32.mrb[0].mxu0
        %v1789 = vadd.f32 %v1705, %v1788
        %v1790 = vpop.f32.mrb[0].mxu0
        %1791 = vdwg.mxu0
        %1792 = vmatprep.subr.mxu0 0.0
        %v1793 = vand.u32 %v1697, 4294901760
        %v1794 = vsub.f32 %v1697, %v1793
        %v1795 = vand.u32 %v1794, 4294901760
        %v1796 = vsub.f32 %v1794, %v1795
        %v1797 = vand.u32 %v1796, 4294901760
        %1798 = vmatpush1.msra.mxu0 %v1797
        %1799 = vmatprep.subr.mxu0 0.0
        %v1800 = vand.u32 %v1698, 4294901760
        %v1801 = vsub.f32 %v1698, %v1800
        %v1802 = vand.u32 %v1801, 4294901760
        %v1803 = vsub.f32 %v1801, %v1802
        %v1804 = vand.u32 %v1803, 4294901760
        %1805 = vmatpush1.msra.mxu0 %v1804
        %1806 = vmatprep.subr.mxu0 0.0
        %v1807 = vand.u32 %v1699, 4294901760
        %v1808 = vsub.f32 %v1699, %v1807
        %v1809 = vand.u32 %v1808, 4294901760
        %v1810 = vsub.f32 %v1808, %v1809
        %v1811 = vand.u32 %v1810, 4294901760
        %1812 = vmatpush1.msra.mxu0 %v1811
        %1813 = vmatprep.subr.mxu0 0.0
        %v1814 = vand.u32 %v1700, 4294901760
        %v1815 = vsub.f32 %v1700, %v1814
        %v1816 = vand.u32 %v1815, 4294901760
        %v1817 = vsub.f32 %v1815, %v1816
        %v1818 = vand.u32 %v1817, 4294901760
        %1819 = vmatpush1.msra.mxu0 %v1818
        %1820 = vmatprep.subr.mxu0 0.0
        %v1821 = vand.u32 %v1701, 4294901760
        %v1822 = vsub.f32 %v1701, %v1821
        %v1823 = vand.u32 %v1822, 4294901760
        %v1824 = vsub.f32 %v1822, %v1823
        %v1825 = vand.u32 %v1824, 4294901760
        %1826 = vmatpush1.msra.mxu0 %v1825
        %1827 = vmatprep.subr.mxu0 0.0
        %v1828 = vand.u32 %v1702, 4294901760
        %v1829 = vsub.f32 %v1702, %v1828
        %v1830 = vand.u32 %v1829, 4294901760
        %v1831 = vsub.f32 %v1829, %v1830
        %v1832 = vand.u32 %v1831, 4294901760
        %1833 = vmatpush1.msra.mxu0 %v1832
        %1834 = vmatprep.subr.mxu0 0.0
        %v1835 = vand.u32 %v1703, 4294901760
        %v1836 = vsub.f32 %v1703, %v1835
        %v1837 = vand.u32 %v1836, 4294901760
        %v1838 = vsub.f32 %v1836, %v1837
        %v1839 = vand.u32 %v1838, 4294901760
        %1840 = vmatpush1.msra.mxu0 %v1839
        %1841 = vmatprep.subr.mxu0 0.0
        %v1842 = vand.u32 %v1704, 4294901760
        %v1843 = vsub.f32 %v1704, %v1842
        %v1844 = vand.u32 %v1843, 4294901760
        %v1845 = vsub.f32 %v1843, %v1844
        %v1846 = vand.u32 %v1845, 4294901760
        %1847 = vmatpush1.msra.mxu0 %v1846
        %1848 = vmatprep.subr.mxu0 0.0
        %1849 = vmatpush1.msra.mxu0 0.0
        %1850 = vmatprep.subr.mxu0 0.0
        %1851 = vmatpush1.msra.mxu0 0.0
        %1852 = vmatprep.subr.mxu0 0.0
        %1853 = vmatpush1.msra.mxu0 0.0
        %1854 = vmatprep.subr.mxu0 0.0
        %1855 = vmatpush1.msra.mxu0 0.0
        %1856 = vmatprep.subr.mxu0 0.0
        %1857 = vmatpush1.msra.mxu0 0.0
        %1858 = vmatprep.subr.mxu0 0.0
        %1859 = vmatpush1.msra.mxu0 0.0
        %1860 = vmatprep.subr.mxu0 0.0
        %1861 = vmatpush1.msra.mxu0 0.0
        %1862 = vmatprep.subr.mxu0 0.0
        %1863 = vmatpush1.msra.mxu0 0.0
        %1864 = vmatprep.subr.mxu0 0.0
        %1865 = vmatpush1.msra.mxu0 0.0
        %1866 = vmatprep.subr.mxu0 0.0
        %1867 = vmatpush1.msra.mxu0 0.0
        %1868 = vmatprep.subr.mxu0 0.0
        %1869 = vmatpush1.msra.mxu0 0.0
        %1870 = vmatprep.subr.mxu0 0.0
        %1871 = vmatpush1.msra.mxu0 0.0
        %1872 = vmatprep.subr.mxu0 0.0
        %1873 = vmatpush1.msra.mxu0 0.0
        %1874 = vmatprep.subr.mxu0 0.0
        %1875 = vmatpush1.msra.mxu0 0.0
        %1876 = vmatprep.subr.mxu0 0.0
        %1877 = vmatpush1.msra.mxu0 0.0
        %1878 = vmatprep.subr.mxu0 0.0
        %1879 = vmatpush1.msra.mxu0 0.0
        %1880 = vmatprep.subr.mxu0 0.0
        %1881 = vmatpush1.msra.mxu0 0.0
        %1882 = vmatprep.subr.mxu0 0.0
        %1883 = vmatpush1.msra.mxu0 0.0
        %1884 = vmatprep.subr.mxu0 0.0
        %1885 = vmatpush1.msra.mxu0 0.0
        %1886 = vmatprep.subr.mxu0 0.0
        %1887 = vmatpush1.msra.mxu0 0.0
        %1888 = vmatprep.subr.mxu0 0.0
        %1889 = vmatpush1.msra.mxu0 0.0
        %1890 = vmatprep.subr.mxu0 0.0
        %1891 = vmatpush1.msra.mxu0 0.0
        %1892 = vmatprep.subr.mxu0 0.0
        %1893 = vmatpush1.msra.mxu0 0.0
        %1894 = vmatprep.subr.mxu0 0.0
        %1895 = vmatpush1.msra.mxu0 0.0
        %1896 = vmatprep.mubr.f32.mxu0 0.0
        %v1897 = vand.u32 %v1707, 4294901760
        %1898 = vmatmul.mubr.f32.gmra.mrb[0].mxu0 %v1897
        %v1899 = vpop.f32.mrb[0].mxu0
        %v1900 = vadd.f32 %v1789, %v1899
        %v1901 = vpop.f32.mrb[0].mxu0
        %1902 = vdwg.mxu0
        %1903 = vmatprep.subr.mxu0 0.0
        %v1904 = vand.u32 %v1697, 4294901760
        %v1905 = vsub.f32 %v1697, %v1904
        %1906 = vmatpush1.msra.mxu0 %v1905
        %1907 = vmatprep.subr.mxu0 0.0
        %v1908 = vand.u32 %v1698, 4294901760
        %v1909 = vsub.f32 %v1698, %v1908
        %1910 = vmatpush1.msra.mxu0 %v1909
        %1911 = vmatprep.subr.mxu0 0.0
        %v1912 = vand.u32 %v1699, 4294901760
        %v1913 = vsub.f32 %v1699, %v1912
        %1914 = vmatpush1.msra.mxu0 %v1913
        %1915 = vmatprep.subr.mxu0 0.0
        %v1916 = vand.u32 %v1700, 4294901760
        %v1917 = vsub.f32 %v1700, %v1916
        %1918 = vmatpush1.msra.mxu0 %v1917
        %1919 = vmatprep.subr.mxu0 0.0
        %v1920 = vand.u32 %v1701, 4294901760
        %v1921 = vsub.f32 %v1701, %v1920
        %1922 = vmatpush1.msra.mxu0 %v1921
        %1923 = vmatprep.subr.mxu0 0.0
        %v1924 = vand.u32 %v1702, 4294901760
        %v1925 = vsub.f32 %v1702, %v1924
        %1926 = vmatpush1.msra.mxu0 %v1925
        %1927 = vmatprep.subr.mxu0 0.0
        %v1928 = vand.u32 %v1703, 4294901760
        %v1929 = vsub.f32 %v1703, %v1928
        %1930 = vmatpush1.msra.mxu0 %v1929
        %1931 = vmatprep.subr.mxu0 0.0
        %v1932 = vand.u32 %v1704, 4294901760
        %v1933 = vsub.f32 %v1704, %v1932
        %1934 = vmatpush1.msra.mxu0 %v1933
        %1935 = vmatprep.subr.mxu0 0.0
        %1936 = vmatpush1.msra.mxu0 0.0
        %1937 = vmatprep.subr.mxu0 0.0
        %1938 = vmatpush1.msra.mxu0 0.0
        %1939 = vmatprep.subr.mxu0 0.0
        %1940 = vmatpush1.msra.mxu0 0.0
        %1941 = vmatprep.subr.mxu0 0.0
        %1942 = vmatpush1.msra.mxu0 0.0
        %1943 = vmatprep.subr.mxu0 0.0
        %1944 = vmatpush1.msra.mxu0 0.0
        %1945 = vmatprep.subr.mxu0 0.0
        %1946 = vmatpush1.msra.mxu0 0.0
        %1947 = vmatprep.subr.mxu0 0.0
        %1948 = vmatpush1.msra.mxu0 0.0
        %1949 = vmatprep.subr.mxu0 0.0
        %1950 = vmatpush1.msra.mxu0 0.0
        %1951 = vmatprep.subr.mxu0 0.0
        %1952 = vmatpush1.msra.mxu0 0.0
        %1953 = vmatprep.subr.mxu0 0.0
        %1954 = vmatpush1.msra.mxu0 0.0
        %1955 = vmatprep.subr.mxu0 0.0
        %1956 = vmatpush1.msra.mxu0 0.0
        %1957 = vmatprep.subr.mxu0 0.0
        %1958 = vmatpush1.msra.mxu0 0.0
        %1959 = vmatprep.subr.mxu0 0.0
        %1960 = vmatpush1.msra.mxu0 0.0
        %1961 = vmatprep.subr.mxu0 0.0
        %1962 = vmatpush1.msra.mxu0 0.0
        %1963 = vmatprep.subr.mxu0 0.0
        %1964 = vmatpush1.msra.mxu0 0.0
        %1965 = vmatprep.subr.mxu0 0.0
        %1966 = vmatpush1.msra.mxu0 0.0
        %1967 = vmatprep.subr.mxu0 0.0
        %1968 = vmatpush1.msra.mxu0 0.0
        %1969 = vmatprep.subr.mxu0 0.0
        %1970 = vmatpush1.msra.mxu0 0.0
        %1971 = vmatprep.subr.mxu0 0.0
        %1972 = vmatpush1.msra.mxu0 0.0
        %1973 = vmatprep.subr.mxu0 0.0
        %1974 = vmatpush1.msra.mxu0 0.0
        %1975 = vmatprep.subr.mxu0 0.0
        %1976 = vmatpush1.msra.mxu0 0.0
        %1977 = vmatprep.subr.mxu0 0.0
        %1978 = vmatpush1.msra.mxu0 0.0
        %1979 = vmatprep.subr.mxu0 0.0
        %1980 = vmatpush1.msra.mxu0 0.0
        %1981 = vmatprep.subr.mxu0 0.0
        %1982 = vmatpush1.msra.mxu0 0.0
        %1983 = vmatprep.mubr.f32.mxu0 0.0
        %v1984 = vand.u32 %v1707, 4294901760
        %v1985 = vsub.f32 %v1707, %v1984
        %1986 = vmatmul.mubr.f32.gmra.mrb[0].mxu0 %v1985
        %v1987 = vpop.f32.mrb[0].mxu0
        %v1988 = vadd.f32 %v1900, %v1987
        %v1989 = vpop.f32.mrb[0].mxu0
        %1990 = vdwg.mxu0
        %1991 = vmatprep.subr.mxu0 0.0
        %v1992 = vand.u32 %v1697, 4294901760
        %1993 = vmatpush1.msra.mxu0 %v1992
        %1994 = vmatprep.subr.mxu0 0.0
        %v1995 = vand.u32 %v1698, 4294901760
        %1996 = vmatpush1.msra.mxu0 %v1995
        %1997 = vmatprep.subr.mxu0 0.0
        %v1998 = vand.u32 %v1699, 4294901760
        %1999 = vmatpush1.msra.mxu0 %v1998
        %2000 = vmatprep.subr.mxu0 0.0
        %v2001 = vand.u32 %v1700, 4294901760
        %2002 = vmatpush1.msra.mxu0 %v2001
        %2003 = vmatprep.subr.mxu0 0.0
        %v2004 = vand.u32 %v1701, 4294901760
        %2005 = vmatpush1.msra.mxu0 %v2004
        %2006 = vmatprep.subr.mxu0 0.0
        %v2007 = vand.u32 %v1702, 4294901760
        %2008 = vmatpush1.msra.mxu0 %v2007
        %2009 = vmatprep.subr.mxu0 0.0
        %v2010 = vand.u32 %v1703, 4294901760
        %2011 = vmatpush1.msra.mxu0 %v2010
        %2012 = vmatprep.subr.mxu0 0.0
        %v2013 = vand.u32 %v1704, 4294901760
        %2014 = vmatpush1.msra.mxu0 %v2013
        %2015 = vmatprep.subr.mxu0 0.0
        %2016 = vmatpush1.msra.mxu0 0.0
        %2017 = vmatprep.subr.mxu0 0.0
        %2018 = vmatpush1.msra.mxu0 0.0
        %2019 = vmatprep.subr.mxu0 0.0
        %2020 = vmatpush1.msra.mxu0 0.0
        %2021 = vmatprep.subr.mxu0 0.0
        %2022 = vmatpush1.msra.mxu0 0.0
        %2023 = vmatprep.subr.mxu0 0.0
        %2024 = vmatpush1.msra.mxu0 0.0
        %2025 = vmatprep.subr.mxu0 0.0
        %2026 = vmatpush1.msra.mxu0 0.0
        %2027 = vmatprep.subr.mxu0 0.0
        %2028 = vmatpush1.msra.mxu0 0.0
        %2029 = vmatprep.subr.mxu0 0.0
        %2030 = vmatpush1.msra.mxu0 0.0
        %2031 = vmatprep.subr.mxu0 0.0
        %2032 = vmatpush1.msra.mxu0 0.0
        %2033 = vmatprep.subr.mxu0 0.0
        %2034 = vmatpush1.msra.mxu0 0.0
        %2035 = vmatprep.subr.mxu0 0.0
        %2036 = vmatpush1.msra.mxu0 0.0
        %2037 = vmatprep.subr.mxu0 0.0
        %2038 = vmatpush1.msra.mxu0 0.0
        %2039 = vmatprep.subr.mxu0 0.0
        %2040 = vmatpush1.msra.mxu0 0.0
        %2041 = vmatprep.subr.mxu0 0.0
        %2042 = vmatpush1.msra.mxu0 0.0
        %2043 = vmatprep.subr.mxu0 0.0
        %2044 = vmatpush1.msra.mxu0 0.0
        %2045 = vmatprep.subr.mxu0 0.0
        %2046 = vmatpush1.msra.mxu0 0.0
        %2047 = vmatprep.subr.mxu0 0.0
        %2048 = vmatpush1.msra.mxu0 0.0
        %2049 = vmatprep.subr.mxu0 0.0
        %2050 = vmatpush1.msra.mxu0 0.0
        %2051 = vmatprep.subr.mxu0 0.0
        %2052 = vmatpush1.msra.mxu0 0.0
        %2053 = vmatprep.subr.mxu0 0.0
        %2054 = vmatpush1.msra.mxu0 0.0
        %2055 = vmatprep.subr.mxu0 0.0
        %2056 = vmatpush1.msra.mxu0 0.0
        %2057 = vmatprep.subr.mxu0 0.0
        %2058 = vmatpush1.msra.mxu0 0.0
        %2059 = vmatprep.subr.mxu0 0.0
        %2060 = vmatpush1.msra.mxu0 0.0
        %2061 = vmatprep.subr.mxu0 0.0
        %2062 = vmatpush1.msra.mxu0 0.0
        %2063 = vmatprep.mubr.f32.mxu0 0.0
        %v2064 = vand.u32 %v1707, 4294901760
        %v2065 = vsub.f32 %v1707, %v2064
        %v2066 = vand.u32 %v2065, 4294901760
        %2067 = vmatmul.mubr.f32.gmra.mrb[0].mxu0 %v2066
        %v2068 = vpop.f32.mrb[0].mxu0
        %v2069 = vadd.f32 %v1988, %v2068
        %v2070 = vpop.f32.mrb[0].mxu0
        %2071 = vdwg.mxu0
        %2072 = vmatprep.subr.mxu0 0.0
        %v2073 = vand.u32 %v1697, 4294901760
        %v2074 = vsub.f32 %v1697, %v2073
        %v2075 = vand.u32 %v2074, 4294901760
        %2076 = vmatpush1.msra.mxu0 %v2075
        %2077 = vmatprep.subr.mxu0 0.0
        %v2078 = vand.u32 %v1698, 4294901760
        %v2079 = vsub.f32 %v1698, %v2078
        %v2080 = vand.u32 %v2079, 4294901760
        %2081 = vmatpush1.msra.mxu0 %v2080
        %2082 = vmatprep.subr.mxu0 0.0
        %v2083 = vand.u32 %v1699, 4294901760
        %v2084 = vsub.f32 %v1699, %v2083
        %v2085 = vand.u32 %v2084, 4294901760
        %2086 = vmatpush1.msra.mxu0 %v2085
        %2087 = vmatprep.subr.mxu0 0.0
        %v2088 = vand.u32 %v1700, 4294901760
        %v2089 = vsub.f32 %v1700, %v2088
        %v2090 = vand.u32 %v2089, 4294901760
        %2091 = vmatpush1.msra.mxu0 %v2090
        %2092 = vmatprep.subr.mxu0 0.0
        %v2093 = vand.u32 %v1701, 4294901760
        %v2094 = vsub.f32 %v1701, %v2093
        %v2095 = vand.u32 %v2094, 4294901760
        %2096 = vmatpush1.msra.mxu0 %v2095
        %2097 = vmatprep.subr.mxu0 0.0
        %v2098 = vand.u32 %v1702, 4294901760
        %v2099 = vsub.f32 %v1702, %v2098
        %v2100 = vand.u32 %v2099, 4294901760
        %2101 = vmatpush1.msra.mxu0 %v2100
        %2102 = vmatprep.subr.mxu0 0.0
        %v2103 = vand.u32 %v1703, 4294901760
        %v2104 = vsub.f32 %v1703, %v2103
        %v2105 = vand.u32 %v2104, 4294901760
        %2106 = vmatpush1.msra.mxu0 %v2105
        %2107 = vmatprep.subr.mxu0 0.0
        %v2108 = vand.u32 %v1704, 4294901760
        %v2109 = vsub.f32 %v1704, %v2108
        %v2110 = vand.u32 %v2109, 4294901760
        %2111 = vmatpush1.msra.mxu0 %v2110
        %2112 = vmatprep.subr.mxu0 0.0
        %2113 = vmatpush1.msra.mxu0 0.0
        %2114 = vmatprep.subr.mxu0 0.0
        %2115 = vmatpush1.msra.mxu0 0.0
        %2116 = vmatprep.subr.mxu0 0.0
        %2117 = vmatpush1.msra.mxu0 0.0
        %2118 = vmatprep.subr.mxu0 0.0
        %2119 = vmatpush1.msra.mxu0 0.0
        %2120 = vmatprep.subr.mxu0 0.0
        %2121 = vmatpush1.msra.mxu0 0.0
        %2122 = vmatprep.subr.mxu0 0.0
        %2123 = vmatpush1.msra.mxu0 0.0
        %2124 = vmatprep.subr.mxu0 0.0
        %2125 = vmatpush1.msra.mxu0 0.0
        %2126 = vmatprep.subr.mxu0 0.0
        %2127 = vmatpush1.msra.mxu0 0.0
        %2128 = vmatprep.subr.mxu0 0.0
        %2129 = vmatpush1.msra.mxu0 0.0
        %2130 = vmatprep.subr.mxu0 0.0
        %2131 = vmatpush1.msra.mxu0 0.0
        %2132 = vmatprep.subr.mxu0 0.0
        %2133 = vmatpush1.msra.mxu0 0.0
        %2134 = vmatprep.subr.mxu0 0.0
        %2135 = vmatpush1.msra.mxu0 0.0
        %2136 = vmatprep.subr.mxu0 0.0
        %2137 = vmatpush1.msra.mxu0 0.0
        %2138 = vmatprep.subr.mxu0 0.0
        %2139 = vmatpush1.msra.mxu0 0.0
        %2140 = vmatprep.subr.mxu0 0.0
        %2141 = vmatpush1.msra.mxu0 0.0
        %2142 = vmatprep.subr.mxu0 0.0
        %2143 = vmatpush1.msra.mxu0 0.0
        %2144 = vmatprep.subr.mxu0 0.0
        %2145 = vmatpush1.msra.mxu0 0.0
        %2146 = vmatprep.subr.mxu0 0.0
        %2147 = vmatpush1.msra.mxu0 0.0
        %2148 = vmatprep.subr.mxu0 0.0
        %2149 = vmatpush1.msra.mxu0 0.0
        %2150 = vmatprep.subr.mxu0 0.0
        %2151 = vmatpush1.msra.mxu0 0.0
        %2152 = vmatprep.subr.mxu0 0.0
        %2153 = vmatpush1.msra.mxu0 0.0
        %2154 = vmatprep.subr.mxu0 0.0
        %2155 = vmatpush1.msra.mxu0 0.0
        %2156 = vmatprep.subr.mxu0 0.0
        %2157 = vmatpush1.msra.mxu0 0.0
        %2158 = vmatprep.subr.mxu0 0.0
        %2159 = vmatpush1.msra.mxu0 0.0
        %2160 = vmatprep.mubr.f32.mxu0 0.0
        %v2161 = vand.u32 %v1707, 4294901760
        %2162 = vmatmul.mubr.f32.gmra.mrb[0].mxu0 %v2161
        %v2163 = vpop.f32.mrb[0].mxu0
        %v2164 = vadd.f32 %v2069, %v2163
        %v2165 = vpop.f32.mrb[0].mxu0
        %2166 = vdwg.mxu0
        %2167 = vmatprep.subr.mxu0 0.0
        %v2168 = vand.u32 %v1697, 4294901760
        %2169 = vmatpush1.msra.mxu0 %v2168
        %2170 = vmatprep.subr.mxu0 0.0
        %v2171 = vand.u32 %v1698, 4294901760
        %2172 = vmatpush1.msra.mxu0 %v2171
        %2173 = vmatprep.subr.mxu0 0.0
        %v2174 = vand.u32 %v1699, 4294901760
        %2175 = vmatpush1.msra.mxu0 %v2174
        %2176 = vmatprep.subr.mxu0 0.0
        %v2177 = vand.u32 %v1700, 4294901760
        %2178 = vmatpush1.msra.mxu0 %v2177
        %2179 = vmatprep.subr.mxu0 0.0
        %v2180 = vand.u32 %v1701, 4294901760
        %2181 = vmatpush1.msra.mxu0 %v2180
        %2182 = vmatprep.subr.mxu0 0.0
        %v2183 = vand.u32 %v1702, 4294901760
        %2184 = vmatpush1.msra.mxu0 %v2183
        %2185 = vmatprep.subr.mxu0 0.0
        %v2186 = vand.u32 %v1703, 4294901760
        %2187 = vmatpush1.msra.mxu0 %v2186
        %2188 = vmatprep.subr.mxu0 0.0
        %v2189 = vand.u32 %v1704, 4294901760
        %2190 = vmatpush1.msra.mxu0 %v2189
        %2191 = vmatprep.subr.mxu0 0.0
        %2192 = vmatpush1.msra.mxu0 0.0
        %2193 = vmatprep.subr.mxu0 0.0
        %2194 = vmatpush1.msra.mxu0 0.0
        %2195 = vmatprep.subr.mxu0 0.0
        %2196 = vmatpush1.msra.mxu0 0.0
        %2197 = vmatprep.subr.mxu0 0.0
        %2198 = vmatpush1.msra.mxu0 0.0
        %2199 = vmatprep.subr.mxu0 0.0
        %2200 = vmatpush1.msra.mxu0 0.0
        %2201 = vmatprep.subr.mxu0 0.0
        %2202 = vmatpush1.msra.mxu0 0.0
        %2203 = vmatprep.subr.mxu0 0.0
        %2204 = vmatpush1.msra.mxu0 0.0
        %2205 = vmatprep.subr.mxu0 0.0
        %2206 = vmatpush1.msra.mxu0 0.0
        %2207 = vmatprep.subr.mxu0 0.0
        %2208 = vmatpush1.msra.mxu0 0.0
        %2209 = vmatprep.subr.mxu0 0.0
        %2210 = vmatpush1.msra.mxu0 0.0
        %2211 = vmatprep.subr.mxu0 0.0
        %2212 = vmatpush1.msra.mxu0 0.0
        %2213 = vmatprep.subr.mxu0 0.0
        %2214 = vmatpush1.msra.mxu0 0.0
        %2215 = vmatprep.subr.mxu0 0.0
        %2216 = vmatpush1.msra.mxu0 0.0
        %2217 = vmatprep.subr.mxu0 0.0
        %2218 = vmatpush1.msra.mxu0 0.0
        %2219 = vmatprep.subr.mxu0 0.0
        %2220 = vmatpush1.msra.mxu0 0.0
        %2221 = vmatprep.subr.mxu0 0.0
        %2222 = vmatpush1.msra.mxu0 0.0
        %2223 = vmatprep.subr.mxu0 0.0
        %2224 = vmatpush1.msra.mxu0 0.0
        %2225 = vmatprep.subr.mxu0 0.0
        %2226 = vmatpush1.msra.mxu0 0.0
        %2227 = vmatprep.subr.mxu0 0.0
        %2228 = vmatpush1.msra.mxu0 0.0
        %2229 = vmatprep.subr.mxu0 0.0
        %2230 = vmatpush1.msra.mxu0 0.0
        %2231 = vmatprep.subr.mxu0 0.0
        %2232 = vmatpush1.msra.mxu0 0.0
        %2233 = vmatprep.subr.mxu0 0.0
        %2234 = vmatpush1.msra.mxu0 0.0
        %2235 = vmatprep.subr.mxu0 0.0
        %2236 = vmatpush1.msra.mxu0 0.0
        %2237 = vmatprep.subr.mxu0 0.0
        %2238 = vmatpush1.msra.mxu0 0.0
        %2239 = vmatprep.mubr.f32.mxu0 0.0
        %v2240 = vand.u32 %v1707, 4294901760
        %2241 = vmatmul.mubr.f32.gmra.mrb[0].mxu0 %v2240
        %v2242 = vpop.f32.mrb[0].mxu0
        %v2243 = vadd.f32 %v2164, %v2242
        %v2244 = vpop.f32.mrb[0].mxu0
        %2245 = vdwg.mxu0
        %2246 = vmatprep.subr.mxu0 0.0
        %v2247 = vand.u32 %v1588, 4294901760
        %2248 = vmatpush1.xpose.msra.mxu0 %v2247
        %2249 = vmatprep.subr.mxu0 0.0
        %v2250 = vand.u32 %v1595, 4294901760
        %2251 = vmatpush1.xpose.msra.mxu0 %v2250
        %2252 = vmatprep.subr.mxu0 0.0
        %v2253 = vand.u32 %v1602, 4294901760
        %2254 = vmatpush1.xpose.msra.mxu0 %v2253
        %2255 = vmatprep.subr.mxu0 0.0
        %v2256 = vand.u32 %v1609, 4294901760
        %2257 = vmatpush1.xpose.msra.mxu0 %v2256
        %2258 = vmatprep.subr.mxu0 0.0
        %v2259 = vand.u32 %v1616, 4294901760
        %2260 = vmatpush1.xpose.msra.mxu0 %v2259
        %2261 = vmatprep.subr.mxu0 0.0
        %v2262 = vand.u32 %v1623, 4294901760
        %2263 = vmatpush1.xpose.msra.mxu0 %v2262
        %2264 = vmatprep.subr.mxu0 0.0
        %v2265 = vand.u32 %v1630, 4294901760
        %2266 = vmatpush1.xpose.msra.mxu0 %v2265
        %2267 = vmatprep.subr.mxu0 0.0
        %v2268 = vand.u32 %v1637, 4294901760
        %2269 = vmatpush1.xpose.msra.mxu0 %v2268
        %2270 = vmatprep.subr.mxu0 0.0
        %v2271 = vand.u32 %v1644, 4294901760
        %2272 = vmatpush1.xpose.msra.mxu0 %v2271
        %2273 = vmatprep.subr.mxu0 0.0
        %v2274 = vand.u32 %v1651, 4294901760
        %2275 = vmatpush1.xpose.msra.mxu0 %v2274
        %2276 = vmatprep.subr.mxu0 0.0
        %v2277 = vand.u32 %v1658, 4294901760
        %2278 = vmatpush1.xpose.msra.mxu0 %v2277
        %2279 = vmatprep.subr.mxu0 0.0
        %v2280 = vand.u32 %v1665, 4294901760
        %2281 = vmatpush1.xpose.msra.mxu0 %v2280
        %2282 = vmatprep.subr.mxu0 0.0
        %v2283 = vand.u32 %v1672, 4294901760
        %2284 = vmatpush1.xpose.msra.mxu0 %v2283
        %2285 = vmatprep.subr.mxu0 0.0
        %v2286 = vand.u32 %v1679, 4294901760
        %2287 = vmatpush1.xpose.msra.mxu0 %v2286
        %2288 = vmatprep.subr.mxu0 0.0
        %v2289 = vand.u32 %v1686, 4294901760
        %2290 = vmatpush1.xpose.msra.mxu0 %v2289
        %2291 = vmatprep.subr.mxu0 0.0
        %v2292 = vand.u32 %v1693, 4294901760
        %2293 = vmatpush1.xpose.msra.mxu0 %v2292
        %2294 = vmatprep.subr.mxu0 0.0
        %2295 = vmatpush1.xpose.msra.mxu0 0.0
        %2296 = vmatprep.subr.mxu0 0.0
        %2297 = vmatpush1.xpose.msra.mxu0 0.0
        %2298 = vmatprep.subr.mxu0 0.0
        %2299 = vmatpush1.xpose.msra.mxu0 0.0
        %2300 = vmatprep.subr.mxu0 0.0
        %2301 = vmatpush1.xpose.msra.mxu0 0.0
        %2302 = vmatprep.subr.mxu0 0.0
        %2303 = vmatpush1.xpose.msra.mxu0 0.0
        %2304 = vmatprep.subr.mxu0 0.0
        %2305 = vmatpush1.xpose.msra.mxu0 0.0
        %2306 = vmatprep.subr.mxu0 0.0
        %2307 = vmatpush1.xpose.msra.mxu0 0.0
        %2308 = vmatprep.subr.mxu0 0.0
        %2309 = vmatpush1.xpose.msra.mxu0 0.0
        %2310 = vmatprep.subr.mxu0 0.0
        %2311 = vmatpush1.xpose.msra.mxu0 0.0
        %2312 = vmatprep.subr.mxu0 0.0
        %2313 = vmatpush1.xpose.msra.mxu0 0.0
        %2314 = vmatprep.subr.mxu0 0.0
        %2315 = vmatpush1.xpose.msra.mxu0 0.0
        %2316 = vmatprep.subr.mxu0 0.0
        %2317 = vmatpush1.xpose.msra.mxu0 0.0
        %2318 = vmatprep.subr.mxu0 0.0
        %2319 = vmatpush1.xpose.msra.mxu0 0.0
        %2320 = vmatprep.subr.mxu0 0.0
        %2321 = vmatpush1.xpose.msra.mxu0 0.0
        %2322 = vmatprep.subr.mxu0 0.0
        %2323 = vmatpush1.xpose.msra.mxu0 0.0
        %2324 = vmatprep.subr.mxu0 0.0
        %2325 = vmatpush1.xpose.msra.mxu0 0.0
        %2326 = vmatprep.mubr.f32.mxu0 0.0
        %v2327 = vand.u32 %v2243, 4294901760
        %v2328 = vsub.f32 %v2243, %v2327
        %v2329 = vand.u32 %v2328, 4294901760
        %v2330 = vsub.f32 %v2328, %v2329
        %v2331 = vand.u32 %v2330, 4294901760
        %2332 = vmatmul.mubr.f32.gmra.mrb[0].mxu0 %v2331
        %v2333 = vpop.f32.mrb[0].mxu0
        %v2334 = vadd.f32 0.0, %v2333
        %v2335 = vpop.f32.mrb[0].mxu0
        %2336 = vdwg.mxu0
        %2337 = vmatprep.subr.mxu0 0.0
        %v2338 = vand.u32 %v1588, 4294901760
        %v2339 = vsub.f32 %v1588, %v2338
        %v2340 = vand.u32 %v2339, 4294901760
        %v2341 = vsub.f32 %v2339, %v2340
        %v2342 = vand.u32 %v2341, 4294901760
        %2343 = vmatpush1.xpose.msra.mxu0 %v2342
        %2344 = vmatprep.subr.mxu0 0.0
        %v2345 = vand.u32 %v1595, 4294901760
        %v2346 = vsub.f32 %v1595, %v2345
        %v2347 = vand.u32 %v2346, 4294901760
        %v2348 = vsub.f32 %v2346, %v2347
        %v2349 = vand.u32 %v2348, 4294901760
        %2350 = vmatpush1.xpose.msra.mxu0 %v2349
        %2351 = vmatprep.subr.mxu0 0.0
        %v2352 = vand.u32 %v1602, 4294901760
        %v2353 = vsub.f32 %v1602, %v2352
        %v2354 = vand.u32 %v2353, 4294901760
        %v2355 = vsub.f32 %v2353, %v2354
        %v2356 = vand.u32 %v2355, 4294901760
        %2357 = vmatpush1.xpose.msra.mxu0 %v2356
        %2358 = vmatprep.subr.mxu0 0.0
        %v2359 = vand.u32 %v1609, 4294901760
        %v2360 = vsub.f32 %v1609, %v2359
        %v2361 = vand.u32 %v2360, 4294901760
        %v2362 = vsub.f32 %v2360, %v2361
        %v2363 = vand.u32 %v2362, 4294901760
        %2364 = vmatpush1.xpose.msra.mxu0 %v2363
        %2365 = vmatprep.subr.mxu0 0.0
        %v2366 = vand.u32 %v1616, 4294901760
        %v2367 = vsub.f32 %v1616, %v2366
        %v2368 = vand.u32 %v2367, 4294901760
        %v2369 = vsub.f32 %v2367, %v2368
        %v2370 = vand.u32 %v2369, 4294901760
        %2371 = vmatpush1.xpose.msra.mxu0 %v2370
        %2372 = vmatprep.subr.mxu0 0.0
        %v2373 = vand.u32 %v1623, 4294901760
        %v2374 = vsub.f32 %v1623, %v2373
        %v2375 = vand.u32 %v2374, 4294901760
        %v2376 = vsub.f32 %v2374, %v2375
        %v2377 = vand.u32 %v2376, 4294901760
        %2378 = vmatpush1.xpose.msra.mxu0 %v2377
        %2379 = vmatprep.subr.mxu0 0.0
        %v2380 = vand.u32 %v1630, 4294901760
        %v2381 = vsub.f32 %v1630, %v2380
        %v2382 = vand.u32 %v2381, 4294901760
        %v2383 = vsub.f32 %v2381, %v2382
        %v2384 = vand.u32 %v2383, 4294901760
        %2385 = vmatpush1.xpose.msra.mxu0 %v2384
        %2386 = vmatprep.subr.mxu0 0.0
        %v2387 = vand.u32 %v1637, 4294901760
        %v2388 = vsub.f32 %v1637, %v2387
        %v2389 = vand.u32 %v2388, 4294901760
        %v2390 = vsub.f32 %v2388, %v2389
        %v2391 = vand.u32 %v2390, 4294901760
        %2392 = vmatpush1.xpose.msra.mxu0 %v2391
        %2393 = vmatprep.subr.mxu0 0.0
        %v2394 = vand.u32 %v1644, 4294901760
        %v2395 = vsub.f32 %v1644, %v2394
        %v2396 = vand.u32 %v2395, 4294901760
        %v2397 = vsub.f32 %v2395, %v2396
        %v2398 = vand.u32 %v2397, 4294901760
        %2399 = vmatpush1.xpose.msra.mxu0 %v2398
        %2400 = vmatprep.subr.mxu0 0.0
        %v2401 = vand.u32 %v1651, 4294901760
        %v2402 = vsub.f32 %v1651, %v2401
        %v2403 = vand.u32 %v2402, 4294901760
        %v2404 = vsub.f32 %v2402, %v2403
        %v2405 = vand.u32 %v2404, 4294901760
        %2406 = vmatpush1.xpose.msra.mxu0 %v2405
        %2407 = vmatprep.subr.mxu0 0.0
        %v2408 = vand.u32 %v1658, 4294901760
        %v2409 = vsub.f32 %v1658, %v2408
        %v2410 = vand.u32 %v2409, 4294901760
        %v2411 = vsub.f32 %v2409, %v2410
        %v2412 = vand.u32 %v2411, 4294901760
        %2413 = vmatpush1.xpose.msra.mxu0 %v2412
        %2414 = vmatprep.subr.mxu0 0.0
        %v2415 = vand.u32 %v1665, 4294901760
        %v2416 = vsub.f32 %v1665, %v2415
        %v2417 = vand.u32 %v2416, 4294901760
        %v2418 = vsub.f32 %v2416, %v2417
        %v2419 = vand.u32 %v2418, 4294901760
        %2420 = vmatpush1.xpose.msra.mxu0 %v2419
        %2421 = vmatprep.subr.mxu0 0.0
        %v2422 = vand.u32 %v1672, 4294901760
        %v2423 = vsub.f32 %v1672, %v2422
        %v2424 = vand.u32 %v2423, 4294901760
        %v2425 = vsub.f32 %v2423, %v2424
        %v2426 = vand.u32 %v2425, 4294901760
        %2427 = vmatpush1.xpose.msra.mxu0 %v2426
        %2428 = vmatprep.subr.mxu0 0.0
        %v2429 = vand.u32 %v1679, 4294901760
        %v2430 = vsub.f32 %v1679, %v2429
        %v2431 = vand.u32 %v2430, 4294901760
        %v2432 = vsub.f32 %v2430, %v2431
        %v2433 = vand.u32 %v2432, 4294901760
        %2434 = vmatpush1.xpose.msra.mxu0 %v2433
        %2435 = vmatprep.subr.mxu0 0.0
        %v2436 = vand.u32 %v1686, 4294901760
        %v2437 = vsub.f32 %v1686, %v2436
        %v2438 = vand.u32 %v2437, 4294901760
        %v2439 = vsub.f32 %v2437, %v2438
        %v2440 = vand.u32 %v2439, 4294901760
        %2441 = vmatpush1.xpose.msra.mxu0 %v2440
        %2442 = vmatprep.subr.mxu0 0.0
        %v2443 = vand.u32 %v1693, 4294901760
        %v2444 = vsub.f32 %v1693, %v2443
        %v2445 = vand.u32 %v2444, 4294901760
        %v2446 = vsub.f32 %v2444, %v2445
        %v2447 = vand.u32 %v2446, 4294901760
        %2448 = vmatpush1.xpose.msra.mxu0 %v2447
        %2449 = vmatprep.subr.mxu0 0.0
        %2450 = vmatpush1.xpose.msra.mxu0 0.0
        %2451 = vmatprep.subr.mxu0 0.0
        %2452 = vmatpush1.xpose.msra.mxu0 0.0
        %2453 = vmatprep.subr.mxu0 0.0
        %2454 = vmatpush1.xpose.msra.mxu0 0.0
        %2455 = vmatprep.subr.mxu0 0.0
        %2456 = vmatpush1.xpose.msra.mxu0 0.0
        %2457 = vmatprep.subr.mxu0 0.0
        %2458 = vmatpush1.xpose.msra.mxu0 0.0
        %2459 = vmatprep.subr.mxu0 0.0
        %2460 = vmatpush1.xpose.msra.mxu0 0.0
        %2461 = vmatprep.subr.mxu0 0.0
        %2462 = vmatpush1.xpose.msra.mxu0 0.0
        %2463 = vmatprep.subr.mxu0 0.0
        %2464 = vmatpush1.xpose.msra.mxu0 0.0
        %2465 = vmatprep.subr.mxu0 0.0
        %2466 = vmatpush1.xpose.msra.mxu0 0.0
        %2467 = vmatprep.subr.mxu0 0.0
        %2468 = vmatpush1.xpose.msra.mxu0 0.0
        %2469 = vmatprep.subr.mxu0 0.0
        %2470 = vmatpush1.xpose.msra.mxu0 0.0
        %2471 = vmatprep.subr.mxu0 0.0
        %2472 = vmatpush1.xpose.msra.mxu0 0.0
        %2473 = vmatprep.subr.mxu0 0.0
        %2474 = vmatpush1.xpose.msra.mxu0 0.0
        %2475 = vmatprep.subr.mxu0 0.0
        %2476 = vmatpush1.xpose.msra.mxu0 0.0
        %2477 = vmatprep.subr.mxu0 0.0
        %2478 = vmatpush1.xpose.msra.mxu0 0.0
        %2479 = vmatprep.subr.mxu0 0.0
        %2480 = vmatpush1.xpose.msra.mxu0 0.0
        %2481 = vmatprep.mubr.f32.mxu0 0.0
        %v2482 = vand.u32 %v2243, 4294901760
        %2483 = vmatmul.mubr.f32.gmra.mrb[0].mxu0 %v2482
        %v2484 = vpop.f32.mrb[0].mxu0
        %v2485 = vadd.f32 %v2334, %v2484
        %v2486 = vpop.f32.mrb[0].mxu0
        %2487 = vdwg.mxu0
        %2488 = vmatprep.subr.mxu0 0.0
        %v2489 = vand.u32 %v1588, 4294901760
        %v2490 = vsub.f32 %v1588, %v2489
        %2491 = vmatpush1.xpose.msra.mxu0 %v2490
        %2492 = vmatprep.subr.mxu0 0.0
        %v2493 = vand.u32 %v1595, 4294901760
        %v2494 = vsub.f32 %v1595, %v2493
        %2495 = vmatpush1.xpose.msra.mxu0 %v2494
        %2496 = vmatprep.subr.mxu0 0.0
        %v2497 = vand.u32 %v1602, 4294901760
        %v2498 = vsub.f32 %v1602, %v2497
        %2499 = vmatpush1.xpose.msra.mxu0 %v2498
        %2500 = vmatprep.subr.mxu0 0.0
        %v2501 = vand.u32 %v1609, 4294901760
        %v2502 = vsub.f32 %v1609, %v2501
        %2503 = vmatpush1.xpose.msra.mxu0 %v2502
        %2504 = vmatprep.subr.mxu0 0.0
        %v2505 = vand.u32 %v1616, 4294901760
        %v2506 = vsub.f32 %v1616, %v2505
        %2507 = vmatpush1.xpose.msra.mxu0 %v2506
        %2508 = vmatprep.subr.mxu0 0.0
        %v2509 = vand.u32 %v1623, 4294901760
        %v2510 = vsub.f32 %v1623, %v2509
        %2511 = vmatpush1.xpose.msra.mxu0 %v2510
        %2512 = vmatprep.subr.mxu0 0.0
        %v2513 = vand.u32 %v1630, 4294901760
        %v2514 = vsub.f32 %v1630, %v2513
        %2515 = vmatpush1.xpose.msra.mxu0 %v2514
        %2516 = vmatprep.subr.mxu0 0.0
        %v2517 = vand.u32 %v1637, 4294901760
        %v2518 = vsub.f32 %v1637, %v2517
        %2519 = vmatpush1.xpose.msra.mxu0 %v2518
        %2520 = vmatprep.subr.mxu0 0.0
        %v2521 = vand.u32 %v1644, 4294901760
        %v2522 = vsub.f32 %v1644, %v2521
        %2523 = vmatpush1.xpose.msra.mxu0 %v2522
        %2524 = vmatprep.subr.mxu0 0.0
        %v2525 = vand.u32 %v1651, 4294901760
        %v2526 = vsub.f32 %v1651, %v2525
        %2527 = vmatpush1.xpose.msra.mxu0 %v2526
        %2528 = vmatprep.subr.mxu0 0.0
        %v2529 = vand.u32 %v1658, 4294901760
        %v2530 = vsub.f32 %v1658, %v2529
        %2531 = vmatpush1.xpose.msra.mxu0 %v2530
        %2532 = vmatprep.subr.mxu0 0.0
        %v2533 = vand.u32 %v1665, 4294901760
        %v2534 = vsub.f32 %v1665, %v2533
        %2535 = vmatpush1.xpose.msra.mxu0 %v2534
        %2536 = vmatprep.subr.mxu0 0.0
        %v2537 = vand.u32 %v1672, 4294901760
        %v2538 = vsub.f32 %v1672, %v2537
        %2539 = vmatpush1.xpose.msra.mxu0 %v2538
        %2540 = vmatprep.subr.mxu0 0.0
        %v2541 = vand.u32 %v1679, 4294901760
        %v2542 = vsub.f32 %v1679, %v2541
        %2543 = vmatpush1.xpose.msra.mxu0 %v2542
        %2544 = vmatprep.subr.mxu0 0.0
        %v2545 = vand.u32 %v1686, 4294901760
        %v2546 = vsub.f32 %v1686, %v2545
        %2547 = vmatpush1.xpose.msra.mxu0 %v2546
        %2548 = vmatprep.subr.mxu0 0.0
        %v2549 = vand.u32 %v1693, 4294901760
        %v2550 = vsub.f32 %v1693, %v2549
        %2551 = vmatpush1.xpose.msra.mxu0 %v2550
        %2552 = vmatprep.subr.mxu0 0.0
        %2553 = vmatpush1.xpose.msra.mxu0 0.0
        %2554 = vmatprep.subr.mxu0 0.0
        %2555 = vmatpush1.xpose.msra.mxu0 0.0
        %2556 = vmatprep.subr.mxu0 0.0
        %2557 = vmatpush1.xpose.msra.mxu0 0.0
        %2558 = vmatprep.subr.mxu0 0.0
        %2559 = vmatpush1.xpose.msra.mxu0 0.0
        %2560 = vmatprep.subr.mxu0 0.0
        %2561 = vmatpush1.xpose.msra.mxu0 0.0
        %2562 = vmatprep.subr.mxu0 0.0
        %2563 = vmatpush1.xpose.msra.mxu0 0.0
        %2564 = vmatprep.subr.mxu0 0.0
        %2565 = vmatpush1.xpose.msra.mxu0 0.0
        %2566 = vmatprep.subr.mxu0 0.0
        %2567 = vmatpush1.xpose.msra.mxu0 0.0
        %2568 = vmatprep.subr.mxu0 0.0
        %2569 = vmatpush1.xpose.msra.mxu0 0.0
        %2570 = vmatprep.subr.mxu0 0.0
        %2571 = vmatpush1.xpose.msra.mxu0 0.0
        %2572 = vmatprep.subr.mxu0 0.0
        %2573 = vmatpush1.xpose.msra.mxu0 0.0
        %2574 = vmatprep.subr.mxu0 0.0
        %2575 = vmatpush1.xpose.msra.mxu0 0.0
        %2576 = vmatprep.subr.mxu0 0.0
        %2577 = vmatpush1.xpose.msra.mxu0 0.0
        %2578 = vmatprep.subr.mxu0 0.0
        %2579 = vmatpush1.xpose.msra.mxu0 0.0
        %2580 = vmatprep.subr.mxu0 0.0
        %2581 = vmatpush1.xpose.msra.mxu0 0.0
        %2582 = vmatprep.subr.mxu0 0.0
        %2583 = vmatpush1.xpose.msra.mxu0 0.0
        %2584 = vmatprep.mubr.f32.mxu0 0.0
        %v2585 = vand.u32 %v2243, 4294901760
        %v2586 = vsub.f32 %v2243, %v2585
        %2587 = vmatmul.mubr.f32.gmra.mrb[0].mxu0 %v2586
        %v2588 = vpop.f32.mrb[0].mxu0
        %v2589 = vadd.f32 %v2485, %v2588
        %v2590 = vpop.f32.mrb[0].mxu0
        %2591 = vdwg.mxu0
        %2592 = vmatprep.subr.mxu0 0.0
        %v2593 = vand.u32 %v1588, 4294901760
        %2594 = vmatpush1.xpose.msra.mxu0 %v2593
        %2595 = vmatprep.subr.mxu0 0.0
        %v2596 = vand.u32 %v1595, 4294901760
        %2597 = vmatpush1.xpose.msra.mxu0 %v2596
        %2598 = vmatprep.subr.mxu0 0.0
        %v2599 = vand.u32 %v1602, 4294901760
        %2600 = vmatpush1.xpose.msra.mxu0 %v2599
        %2601 = vmatprep.subr.mxu0 0.0
        %v2602 = vand.u32 %v1609, 4294901760
        %2603 = vmatpush1.xpose.msra.mxu0 %v2602
        %2604 = vmatprep.subr.mxu0 0.0
        %v2605 = vand.u32 %v1616, 4294901760
        %2606 = vmatpush1.xpose.msra.mxu0 %v2605
        %2607 = vmatprep.subr.mxu0 0.0
        %v2608 = vand.u32 %v1623, 4294901760
        %2609 = vmatpush1.xpose.msra.mxu0 %v2608
        %2610 = vmatprep.subr.mxu0 0.0
        %v2611 = vand.u32 %v1630, 4294901760
        %2612 = vmatpush1.xpose.msra.mxu0 %v2611
        %2613 = vmatprep.subr.mxu0 0.0
        %v2614 = vand.u32 %v1637, 4294901760
        %2615 = vmatpush1.xpose.msra.mxu0 %v2614
        %2616 = vmatprep.subr.mxu0 0.0
        %v2617 = vand.u32 %v1644, 4294901760
        %2618 = vmatpush1.xpose.msra.mxu0 %v2617
        %2619 = vmatprep.subr.mxu0 0.0
        %v2620 = vand.u32 %v1651, 4294901760
        %2621 = vmatpush1.xpose.msra.mxu0 %v2620
        %2622 = vmatprep.subr.mxu0 0.0
        %v2623 = vand.u32 %v1658, 4294901760
        %2624 = vmatpush1.xpose.msra.mxu0 %v2623
        %2625 = vmatprep.subr.mxu0 0.0
        %v2626 = vand.u32 %v1665, 4294901760
        %2627 = vmatpush1.xpose.msra.mxu0 %v2626
        %2628 = vmatprep.subr.mxu0 0.0
        %v2629 = vand.u32 %v1672, 4294901760
        %2630 = vmatpush1.xpose.msra.mxu0 %v2629
        %2631 = vmatprep.subr.mxu0 0.0
        %v2632 = vand.u32 %v1679, 4294901760
        %2633 = vmatpush1.xpose.msra.mxu0 %v2632
        %2634 = vmatprep.subr.mxu0 0.0
        %v2635 = vand.u32 %v1686, 4294901760
        %2636 = vmatpush1.xpose.msra.mxu0 %v2635
        %2637 = vmatprep.subr.mxu0 0.0
        %v2638 = vand.u32 %v1693, 4294901760
        %2639 = vmatpush1.xpose.msra.mxu0 %v2638
        %2640 = vmatprep.subr.mxu0 0.0
        %2641 = vmatpush1.xpose.msra.mxu0 0.0
        %2642 = vmatprep.subr.mxu0 0.0
        %2643 = vmatpush1.xpose.msra.mxu0 0.0
        %2644 = vmatprep.subr.mxu0 0.0
        %2645 = vmatpush1.xpose.msra.mxu0 0.0
        %2646 = vmatprep.subr.mxu0 0.0
        %2647 = vmatpush1.xpose.msra.mxu0 0.0
        %2648 = vmatprep.subr.mxu0 0.0
        %2649 = vmatpush1.xpose.msra.mxu0 0.0
        %2650 = vmatprep.subr.mxu0 0.0
        %2651 = vmatpush1.xpose.msra.mxu0 0.0
        %2652 = vmatprep.subr.mxu0 0.0
        %2653 = vmatpush1.xpose.msra.mxu0 0.0
        %2654 = vmatprep.subr.mxu0 0.0
        %2655 = vmatpush1.xpose.msra.mxu0 0.0
        %2656 = vmatprep.subr.mxu0 0.0
        %2657 = vmatpush1.xpose.msra.mxu0 0.0
        %2658 = vmatprep.subr.mxu0 0.0
        %2659 = vmatpush1.xpose.msra.mxu0 0.0
        %2660 = vmatprep.subr.mxu0 0.0
        %2661 = vmatpush1.xpose.msra.mxu0 0.0
        %2662 = vmatprep.subr.mxu0 0.0
        %2663 = vmatpush1.xpose.msra.mxu0 0.0
        %2664 = vmatprep.subr.mxu0 0.0
        %2665 = vmatpush1.xpose.msra.mxu0 0.0
        %2666 = vmatprep.subr.mxu0 0.0
        %2667 = vmatpush1.xpose.msra.mxu0 0.0
        %2668 = vmatprep.subr.mxu0 0.0
        %2669 = vmatpush1.xpose.msra.mxu0 0.0
        %2670 = vmatprep.subr.mxu0 0.0
        %2671 = vmatpush1.xpose.msra.mxu0 0.0
        %2672 = vmatprep.mubr.f32.mxu0 0.0
        %v2673 = vand.u32 %v2243, 4294901760
        %v2674 = vsub.f32 %v2243, %v2673
        %v2675 = vand.u32 %v2674, 4294901760
        %2676 = vmatmul.mubr.f32.gmra.mrb[0].mxu0 %v2675
        %v2677 = vpop.f32.mrb[0].mxu0
        %v2678 = vadd.f32 %v2589, %v2677
        %v2679 = vpop.f32.mrb[0].mxu0
        %2680 = vdwg.mxu0
        %2681 = vmatprep.subr.mxu0 0.0
        %v2682 = vand.u32 %v1588, 4294901760
        %v2683 = vsub.f32 %v1588, %v2682
        %v2684 = vand.u32 %v2683, 4294901760
        %2685 = vmatpush1.xpose.msra.mxu0 %v2684
        %2686 = vmatprep.subr.mxu0 0.0
        %v2687 = vand.u32 %v1595, 4294901760
        %v2688 = vsub.f32 %v1595, %v2687
        %v2689 = vand.u32 %v2688, 4294901760
        %2690 = vmatpush1.xpose.msra.mxu0 %v2689
        %2691 = vmatprep.subr.mxu0 0.0
        %v2692 = vand.u32 %v1602, 4294901760
        %v2693 = vsub.f32 %v1602, %v2692
        %v2694 = vand.u32 %v2693, 4294901760
        %2695 = vmatpush1.xpose.msra.mxu0 %v2694
        %2696 = vmatprep.subr.mxu0 0.0
        %v2697 = vand.u32 %v1609, 4294901760
        %v2698 = vsub.f32 %v1609, %v2697
        %v2699 = vand.u32 %v2698, 4294901760
        %2700 = vmatpush1.xpose.msra.mxu0 %v2699
        %2701 = vmatprep.subr.mxu0 0.0
        %v2702 = vand.u32 %v1616, 4294901760
        %v2703 = vsub.f32 %v1616, %v2702
        %v2704 = vand.u32 %v2703, 4294901760
        %2705 = vmatpush1.xpose.msra.mxu0 %v2704
        %2706 = vmatprep.subr.mxu0 0.0
        %v2707 = vand.u32 %v1623, 4294901760
        %v2708 = vsub.f32 %v1623, %v2707
        %v2709 = vand.u32 %v2708, 4294901760
        %2710 = vmatpush1.xpose.msra.mxu0 %v2709
        %2711 = vmatprep.subr.mxu0 0.0
        %v2712 = vand.u32 %v1630, 4294901760
        %v2713 = vsub.f32 %v1630, %v2712
        %v2714 = vand.u32 %v2713, 4294901760
        %2715 = vmatpush1.xpose.msra.mxu0 %v2714
        %2716 = vmatprep.subr.mxu0 0.0
        %v2717 = vand.u32 %v1637, 4294901760
        %v2718 = vsub.f32 %v1637, %v2717
        %v2719 = vand.u32 %v2718, 4294901760
        %2720 = vmatpush1.xpose.msra.mxu0 %v2719
        %2721 = vmatprep.subr.mxu0 0.0
        %v2722 = vand.u32 %v1644, 4294901760
        %v2723 = vsub.f32 %v1644, %v2722
        %v2724 = vand.u32 %v2723, 4294901760
        %2725 = vmatpush1.xpose.msra.mxu0 %v2724
        %2726 = vmatprep.subr.mxu0 0.0
        %v2727 = vand.u32 %v1651, 4294901760
        %v2728 = vsub.f32 %v1651, %v2727
        %v2729 = vand.u32 %v2728, 4294901760
        %2730 = vmatpush1.xpose.msra.mxu0 %v2729
        %2731 = vmatprep.subr.mxu0 0.0
        %v2732 = vand.u32 %v1658, 4294901760
        %v2733 = vsub.f32 %v1658, %v2732
        %v2734 = vand.u32 %v2733, 4294901760
        %2735 = vmatpush1.xpose.msra.mxu0 %v2734
        %2736 = vmatprep.subr.mxu0 0.0
        %v2737 = vand.u32 %v1665, 4294901760
        %v2738 = vsub.f32 %v1665, %v2737
        %v2739 = vand.u32 %v2738, 4294901760
        %2740 = vmatpush1.xpose.msra.mxu0 %v2739
        %2741 = vmatprep.subr.mxu0 0.0
        %v2742 = vand.u32 %v1672, 4294901760
        %v2743 = vsub.f32 %v1672, %v2742
        %v2744 = vand.u32 %v2743, 4294901760
        %2745 = vmatpush1.xpose.msra.mxu0 %v2744
        %2746 = vmatprep.subr.mxu0 0.0
        %v2747 = vand.u32 %v1679, 4294901760
        %v2748 = vsub.f32 %v1679, %v2747
        %v2749 = vand.u32 %v2748, 4294901760
        %2750 = vmatpush1.xpose.msra.mxu0 %v2749
        %2751 = vmatprep.subr.mxu0 0.0
        %v2752 = vand.u32 %v1686, 4294901760
        %v2753 = vsub.f32 %v1686, %v2752
        %v2754 = vand.u32 %v2753, 4294901760
        %2755 = vmatpush1.xpose.msra.mxu0 %v2754
        %2756 = vmatprep.subr.mxu0 0.0
        %v2757 = vand.u32 %v1693, 4294901760
        %v2758 = vsub.f32 %v1693, %v2757
        %v2759 = vand.u32 %v2758, 4294901760
        %2760 = vmatpush1.xpose.msra.mxu0 %v2759
        %2761 = vmatprep.subr.mxu0 0.0
        %2762 = vmatpush1.xpose.msra.mxu0 0.0
        %2763 = vmatprep.subr.mxu0 0.0
        %2764 = vmatpush1.xpose.msra.mxu0 0.0
        %2765 = vmatprep.subr.mxu0 0.0
        %2766 = vmatpush1.xpose.msra.mxu0 0.0
        %2767 = vmatprep.subr.mxu0 0.0
        %2768 = vmatpush1.xpose.msra.mxu0 0.0
        %2769 = vmatprep.subr.mxu0 0.0
        %2770 = vmatpush1.xpose.msra.mxu0 0.0
        %2771 = vmatprep.subr.mxu0 0.0
        %2772 = vmatpush1.xpose.msra.mxu0 0.0
        %2773 = vmatprep.subr.mxu0 0.0
        %2774 = vmatpush1.xpose.msra.mxu0 0.0
        %2775 = vmatprep.subr.mxu0 0.0
        %2776 = vmatpush1.xpose.msra.mxu0 0.0
        %2777 = vmatprep.subr.mxu0 0.0
        %2778 = vmatpush1.xpose.msra.mxu0 0.0
        %2779 = vmatprep.subr.mxu0 0.0
        %2780 = vmatpush1.xpose.msra.mxu0 0.0
        %2781 = vmatprep.subr.mxu0 0.0
        %2782 = vmatpush1.xpose.msra.mxu0 0.0
        %2783 = vmatprep.subr.mxu0 0.0
        %2784 = vmatpush1.xpose.msra.mxu0 0.0
        %2785 = vmatprep.subr.mxu0 0.0
        %2786 = vmatpush1.xpose.msra.mxu0 0.0
        %2787 = vmatprep.subr.mxu0 0.0
        %2788 = vmatpush1.xpose.msra.mxu0 0.0
        %2789 = vmatprep.subr.mxu0 0.0
        %2790 = vmatpush1.xpose.msra.mxu0 0.0
        %2791 = vmatprep.subr.mxu0 0.0
        %2792 = vmatpush1.xpose.msra.mxu0 0.0
        %2793 = vmatprep.mubr.f32.mxu0 0.0
        %v2794 = vand.u32 %v2243, 4294901760
        %2795 = vmatmul.mubr.f32.gmra.mrb[0].mxu0 %v2794
        %v2796 = vpop.f32.mrb[0].mxu0
        %v2797 = vadd.f32 %v2678, %v2796
        %v2798 = vpop.f32.mrb[0].mxu0
        %2799 = vdwg.mxu0
        %2800 = vmatprep.subr.mxu0 0.0
        %v2801 = vand.u32 %v1588, 4294901760
        %2802 = vmatpush1.xpose.msra.mxu0 %v2801
        %2803 = vmatprep.subr.mxu0 0.0
        %v2804 = vand.u32 %v1595, 4294901760
        %2805 = vmatpush1.xpose.msra.mxu0 %v2804
        %2806 = vmatprep.subr.mxu0 0.0
        %v2807 = vand.u32 %v1602, 4294901760
        %2808 = vmatpush1.xpose.msra.mxu0 %v2807
        %2809 = vmatprep.subr.mxu0 0.0
        %v2810 = vand.u32 %v1609, 4294901760
        %2811 = vmatpush1.xpose.msra.mxu0 %v2810
        %2812 = vmatprep.subr.mxu0 0.0
        %v2813 = vand.u32 %v1616, 4294901760
        %2814 = vmatpush1.xpose.msra.mxu0 %v2813
        %2815 = vmatprep.subr.mxu0 0.0
        %v2816 = vand.u32 %v1623, 4294901760
        %2817 = vmatpush1.xpose.msra.mxu0 %v2816
        %2818 = vmatprep.subr.mxu0 0.0
        %v2819 = vand.u32 %v1630, 4294901760
        %2820 = vmatpush1.xpose.msra.mxu0 %v2819
        %2821 = vmatprep.subr.mxu0 0.0
        %v2822 = vand.u32 %v1637, 4294901760
        %2823 = vmatpush1.xpose.msra.mxu0 %v2822
        %2824 = vmatprep.subr.mxu0 0.0
        %v2825 = vand.u32 %v1644, 4294901760
        %2826 = vmatpush1.xpose.msra.mxu0 %v2825
        %2827 = vmatprep.subr.mxu0 0.0
        %v2828 = vand.u32 %v1651, 4294901760
        %2829 = vmatpush1.xpose.msra.mxu0 %v2828
        %2830 = vmatprep.subr.mxu0 0.0
        %v2831 = vand.u32 %v1658, 4294901760
        %2832 = vmatpush1.xpose.msra.mxu0 %v2831
        %2833 = vmatprep.subr.mxu0 0.0
        %v2834 = vand.u32 %v1665, 4294901760
        %2835 = vmatpush1.xpose.msra.mxu0 %v2834
        %2836 = vmatprep.subr.mxu0 0.0
        %v2837 = vand.u32 %v1672, 4294901760
        %2838 = vmatpush1.xpose.msra.mxu0 %v2837
        %2839 = vmatprep.subr.mxu0 0.0
        %v2840 = vand.u32 %v1679, 4294901760
        %2841 = vmatpush1.xpose.msra.mxu0 %v2840
        %2842 = vmatprep.subr.mxu0 0.0
        %v2843 = vand.u32 %v1686, 4294901760
        %2844 = vmatpush1.xpose.msra.mxu0 %v2843
        %2845 = vmatprep.subr.mxu0 0.0
        %v2846 = vand.u32 %v1693, 4294901760
        %2847 = vmatpush1.xpose.msra.mxu0 %v2846
        %2848 = vmatprep.subr.mxu0 0.0
        %2849 = vmatpush1.xpose.msra.mxu0 0.0
        %2850 = vmatprep.subr.mxu0 0.0
        %2851 = vmatpush1.xpose.msra.mxu0 0.0
        %2852 = vmatprep.subr.mxu0 0.0
        %2853 = vmatpush1.xpose.msra.mxu0 0.0
        %2854 = vmatprep.subr.mxu0 0.0
        %2855 = vmatpush1.xpose.msra.mxu0 0.0
        %2856 = vmatprep.subr.mxu0 0.0
        %2857 = vmatpush1.xpose.msra.mxu0 0.0
        %2858 = vmatprep.subr.mxu0 0.0
        %2859 = vmatpush1.xpose.msra.mxu0 0.0
        %2860 = vmatprep.subr.mxu0 0.0
        %2861 = vmatpush1.xpose.msra.mxu0 0.0
        %2862 = vmatprep.subr.mxu0 0.0
        %2863 = vmatpush1.xpose.msra.mxu0 0.0
        %2864 = vmatprep.subr.mxu0 0.0
        %2865 = vmatpush1.xpose.msra.mxu0 0.0
        %2866 = vmatprep.subr.mxu0 0.0
        %2867 = vmatpush1.xpose.msra.mxu0 0.0
        %2868 = vmatprep.subr.mxu0 0.0
        %2869 = vmatpush1.xpose.msra.mxu0 0.0
        %2870 = vmatprep.subr.mxu0 0.0
        %2871 = vmatpush1.xpose.msra.mxu0 0.0
        %2872 = vmatprep.subr.mxu0 0.0
        %2873 = vmatpush1.xpose.msra.mxu0 0.0
        %2874 = vmatprep.subr.mxu0 0.0
        %2875 = vmatpush1.xpose.msra.mxu0 0.0
        %2876 = vmatprep.subr.mxu0 0.0
        %2877 = vmatpush1.xpose.msra.mxu0 0.0
        %2878 = vmatprep.subr.mxu0 0.0
        %2879 = vmatpush1.xpose.msra.mxu0 0.0
        %2880 = vmatprep.mubr.f32.mxu0 0.0
        %v2881 = vand.u32 %v2243, 4294901760
        %2882 = vmatmul.mubr.f32.gmra.mrb[0].mxu0 %v2881
        %v2883 = vpop.f32.mrb[0].mxu0
        %v2884 = vadd.f32 %v2797, %v2883
        %v2885 = vpop.f32.mrb[0].mxu0
        %2886 = vdwg.mxu0
        %vm2887 = vcmask 1040384
        %v2888 = vsel %vm2887, %v2884, -inf
        %2889 = vmax.xlane.f32.xlu0 %v2888
        %v2890 = vpop.xlane.xlu0 %2889
        %v2891 = vsub.f32 %v2884, %v2890
        %v2892 = vmul.f32 %v2891, 1.442695
        %v2893 = vpow.pop %v2892
        %v2894 = vsel %vm2887, %v2893, 0.0
        %2895 = vadd.xlane.f32.xlu0 %v2894
        %v2896 = vpop.xlane.xlu0 %2895
        %v2897 = vrcp.pop %v2896
        %v2898 = vmul.f32 %v2893, %v2897
        %2899 = vmatprep.subr.mxu0 0.0
        %v2900 = vand.u32 %v1590, 4294901760
        %2901 = vmatpush1.msra.mxu0 %v2900
        %2902 = vmatprep.subr.mxu0 0.0
        %v2903 = vand.u32 %v1597, 4294901760
        %2904 = vmatpush1.msra.mxu0 %v2903
        %2905 = vmatprep.subr.mxu0 0.0
        %v2906 = vand.u32 %v1604, 4294901760
        %2907 = vmatpush1.msra.mxu0 %v2906
        %2908 = vmatprep.subr.mxu0 0.0
        %v2909 = vand.u32 %v1611, 4294901760
        %2910 = vmatpush1.msra.mxu0 %v2909
        %2911 = vmatprep.subr.mxu0 0.0
        %v2912 = vand.u32 %v1618, 4294901760
        %2913 = vmatpush1.msra.mxu0 %v2912
        %2914 = vmatprep.subr.mxu0 0.0
        %v2915 = vand.u32 %v1625, 4294901760
        %2916 = vmatpush1.msra.mxu0 %v2915
        %2917 = vmatprep.subr.mxu0 0.0
        %v2918 = vand.u32 %v1632, 4294901760
        %2919 = vmatpush1.msra.mxu0 %v2918
        %2920 = vmatprep.subr.mxu0 0.0
        %v2921 = vand.u32 %v1639, 4294901760
        %2922 = vmatpush1.msra.mxu0 %v2921
        %2923 = vmatprep.subr.mxu0 0.0
        %v2924 = vand.u32 %v1646, 4294901760
        %2925 = vmatpush1.msra.mxu0 %v2924
        %2926 = vmatprep.subr.mxu0 0.0
        %v2927 = vand.u32 %v1653, 4294901760
        %2928 = vmatpush1.msra.mxu0 %v2927
        %2929 = vmatprep.subr.mxu0 0.0
        %v2930 = vand.u32 %v1660, 4294901760
        %2931 = vmatpush1.msra.mxu0 %v2930
        %2932 = vmatprep.subr.mxu0 0.0
        %v2933 = vand.u32 %v1667, 4294901760
        %2934 = vmatpush1.msra.mxu0 %v2933
        %2935 = vmatprep.subr.mxu0 0.0
        %v2936 = vand.u32 %v1674, 4294901760
        %2937 = vmatpush1.msra.mxu0 %v2936
        %2938 = vmatprep.subr.mxu0 0.0
        %v2939 = vand.u32 %v1681, 4294901760
        %2940 = vmatpush1.msra.mxu0 %v2939
        %2941 = vmatprep.subr.mxu0 0.0
        %v2942 = vand.u32 %v1688, 4294901760
        %2943 = vmatpush1.msra.mxu0 %v2942
        %2944 = vmatprep.subr.mxu0 0.0
        %v2945 = vand.u32 %v1695, 4294901760
        %2946 = vmatpush1.msra.mxu0 %v2945
        %2947 = vmatprep.subr.mxu0 0.0
        %2948 = vmatpush1.msra.mxu0 0.0
        %2949 = vmatprep.subr.mxu0 0.0
        %2950 = vmatpush1.msra.mxu0 0.0
        %2951 = vmatprep.subr.mxu0 0.0
        %2952 = vmatpush1.msra.mxu0 0.0
        %2953 = vmatprep.subr.mxu0 0.0
        %2954 = vmatpush1.msra.mxu0 0.0
        %2955 = vmatprep.subr.mxu0 0.0
        %2956 = vmatpush1.msra.mxu0 0.0
        %2957 = vmatprep.subr.mxu0 0.0
        %2958 = vmatpush1.msra.mxu0 0.0
        %2959 = vmatprep.subr.mxu0 0.0
        %2960 = vmatpush1.msra.mxu0 0.0
        %2961 = vmatprep.subr.mxu0 0.0
        %2962 = vmatpush1.msra.mxu0 0.0
        %2963 = vmatprep.subr.mxu0 0.0
        %2964 = vmatpush1.msra.mxu0 0.0
        %2965 = vmatprep.subr.mxu0 0.0
        %2966 = vmatpush1.msra.mxu0 0.0
        %2967 = vmatprep.subr.mxu0 0.0
        %2968 = vmatpush1.msra.mxu0 0.0
        %2969 = vmatprep.subr.mxu0 0.0
        %2970 = vmatpush1.msra.mxu0 0.0
        %2971 = vmatprep.subr.mxu0 0.0
        %2972 = vmatpush1.msra.mxu0 0.0
        %2973 = vmatprep.subr.mxu0 0.0
        %2974 = vmatpush1.msra.mxu0 0.0
        %2975 = vmatprep.subr.mxu0 0.0
        %2976 = vmatpush1.msra.mxu0 0.0
        %2977 = vmatprep.subr.mxu0 0.0
        %2978 = vmatpush1.msra.mxu0 0.0
        %2979 = vmatprep.mubr.f32.mxu0 0.0
        %v2980 = vand.u32 %v2898, 4294901760
        %v2981 = vsub.f32 %v2898, %v2980
        %v2982 = vand.u32 %v2981, 4294901760
        %v2983 = vsub.f32 %v2981, %v2982
        %v2984 = vand.u32 %v2983, 4294901760
        %2985 = vmatmul.mubr.f32.gmra.mrb[0].mxu0 %v2984
        %v2986 = vpop.f32.mrb[0].mxu0
        %v2987 = vadd.f32 0.0, %v2986
        %v2988 = vpop.f32.mrb[0].mxu0
        %2989 = vdwg.mxu0
        %2990 = vmatprep.subr.mxu0 0.0
        %v2991 = vand.u32 %v1590, 4294901760
        %v2992 = vsub.f32 %v1590, %v2991
        %v2993 = vand.u32 %v2992, 4294901760
        %v2994 = vsub.f32 %v2992, %v2993
        %v2995 = vand.u32 %v2994, 4294901760
        %2996 = vmatpush1.msra.mxu0 %v2995
        %2997 = vmatprep.subr.mxu0 0.0
        %v2998 = vand.u32 %v1597, 4294901760
        %v2999 = vsub.f32 %v1597, %v2998
        %v3000 = vand.u32 %v2999, 4294901760
        %v3001 = vsub.f32 %v2999, %v3000
        %v3002 = vand.u32 %v3001, 4294901760
        %3003 = vmatpush1.msra.mxu0 %v3002
        %3004 = vmatprep.subr.mxu0 0.0
        %v3005 = vand.u32 %v1604, 4294901760
        %v3006 = vsub.f32 %v1604, %v3005
        %v3007 = vand.u32 %v3006, 4294901760
        %v3008 = vsub.f32 %v3006, %v3007
        %v3009 = vand.u32 %v3008, 4294901760
        %3010 = vmatpush1.msra.mxu0 %v3009
        %3011 = vmatprep.subr.mxu0 0.0
        %v3012 = vand.u32 %v1611, 4294901760
        %v3013 = vsub.f32 %v1611, %v3012
        %v3014 = vand.u32 %v3013, 4294901760
        %v3015 = vsub.f32 %v3013, %v3014
        %v3016 = vand.u32 %v3015, 4294901760
        %3017 = vmatpush1.msra.mxu0 %v3016
        %3018 = vmatprep.subr.mxu0 0.0
        %v3019 = vand.u32 %v1618, 4294901760
        %v3020 = vsub.f32 %v1618, %v3019
        %v3021 = vand.u32 %v3020, 4294901760
        %v3022 = vsub.f32 %v3020, %v3021
        %v3023 = vand.u32 %v3022, 4294901760
        %3024 = vmatpush1.msra.mxu0 %v3023
        %3025 = vmatprep.subr.mxu0 0.0
        %v3026 = vand.u32 %v1625, 4294901760
        %v3027 = vsub.f32 %v1625, %v3026
        %v3028 = vand.u32 %v3027, 4294901760
        %v3029 = vsub.f32 %v3027, %v3028
        %v3030 = vand.u32 %v3029, 4294901760
        %3031 = vmatpush1.msra.mxu0 %v3030
        %3032 = vmatprep.subr.mxu0 0.0
        %v3033 = vand.u32 %v1632, 4294901760
        %v3034 = vsub.f32 %v1632, %v3033
        %v3035 = vand.u32 %v3034, 4294901760
        %v3036 = vsub.f32 %v3034, %v3035
        %v3037 = vand.u32 %v3036, 4294901760
        %3038 = vmatpush1.msra.mxu0 %v3037
        %3039 = vmatprep.subr.mxu0 0.0
        %v3040 = vand.u32 %v1639, 4294901760
        %v3041 = vsub.f32 %v1639, %v3040
        %v3042 = vand.u32 %v3041, 4294901760
        %v3043 = vsub.f32 %v3041, %v3042
        %v3044 = vand.u32 %v3043, 4294901760
        %3045 = vmatpush1.msra.mxu0 %v3044
        %3046 = vmatprep.subr.mxu0 0.0
        %v3047 = vand.u32 %v1646, 4294901760
        %v3048 = vsub.f32 %v1646, %v3047
        %v3049 = vand.u32 %v3048, 4294901760
        %v3050 = vsub.f32 %v3048, %v3049
        %v3051 = vand.u32 %v3050, 4294901760
        %3052 = vmatpush1.msra.mxu0 %v3051
        %3053 = vmatprep.subr.mxu0 0.0
        %v3054 = vand.u32 %v1653, 4294901760
        %v3055 = vsub.f32 %v1653, %v3054
        %v3056 = vand.u32 %v3055, 4294901760
        %v3057 = vsub.f32 %v3055, %v3056
        %v3058 = vand.u32 %v3057, 4294901760
        %3059 = vmatpush1.msra.mxu0 %v3058
        %3060 = vmatprep.subr.mxu0 0.0
        %v3061 = vand.u32 %v1660, 4294901760
        %v3062 = vsub.f32 %v1660, %v3061
        %v3063 = vand.u32 %v3062, 4294901760
        %v3064 = vsub.f32 %v3062, %v3063
        %v3065 = vand.u32 %v3064, 4294901760
        %3066 = vmatpush1.msra.mxu0 %v3065
        %3067 = vmatprep.subr.mxu0 0.0
        %v3068 = vand.u32 %v1667, 4294901760
        %v3069 = vsub.f32 %v1667, %v3068
        %v3070 = vand.u32 %v3069, 4294901760
        %v3071 = vsub.f32 %v3069, %v3070
        %v3072 = vand.u32 %v3071, 4294901760
        %3073 = vmatpush1.msra.mxu0 %v3072
        %3074 = vmatprep.subr.mxu0 0.0
        %v3075 = vand.u32 %v1674, 4294901760
        %v3076 = vsub.f32 %v1674, %v3075
        %v3077 = vand.u32 %v3076, 4294901760
        %v3078 = vsub.f32 %v3076, %v3077
        %v3079 = vand.u32 %v3078, 4294901760
        %3080 = vmatpush1.msra.mxu0 %v3079
        %3081 = vmatprep.subr.mxu0 0.0
        %v3082 = vand.u32 %v1681, 4294901760
        %v3083 = vsub.f32 %v1681, %v3082
        %v3084 = vand.u32 %v3083, 4294901760
        %v3085 = vsub.f32 %v3083, %v3084
        %v3086 = vand.u32 %v3085, 4294901760
        %3087 = vmatpush1.msra.mxu0 %v3086
        %3088 = vmatprep.subr.mxu0 0.0
        %v3089 = vand.u32 %v1688, 4294901760
        %v3090 = vsub.f32 %v1688, %v3089
        %v3091 = vand.u32 %v3090, 4294901760
        %v3092 = vsub.f32 %v3090, %v3091
        %v3093 = vand.u32 %v3092, 4294901760
        %3094 = vmatpush1.msra.mxu0 %v3093
        %3095 = vmatprep.subr.mxu0 0.0
        %v3096 = vand.u32 %v1695, 4294901760
        %v3097 = vsub.f32 %v1695, %v3096
        %v3098 = vand.u32 %v3097, 4294901760
        %v3099 = vsub.f32 %v3097, %v3098
        %v3100 = vand.u32 %v3099, 4294901760
        %3101 = vmatpush1.msra.mxu0 %v3100
        %3102 = vmatprep.subr.mxu0 0.0
        %3103 = vmatpush1.msra.mxu0 0.0
        %3104 = vmatprep.subr.mxu0 0.0
        %3105 = vmatpush1.msra.mxu0 0.0
        %3106 = vmatprep.subr.mxu0 0.0
        %3107 = vmatpush1.msra.mxu0 0.0
        %3108 = vmatprep.subr.mxu0 0.0
        %3109 = vmatpush1.msra.mxu0 0.0
        %3110 = vmatprep.subr.mxu0 0.0
        %3111 = vmatpush1.msra.mxu0 0.0
        %3112 = vmatprep.subr.mxu0 0.0
        %3113 = vmatpush1.msra.mxu0 0.0
        %3114 = vmatprep.subr.mxu0 0.0
        %3115 = vmatpush1.msra.mxu0 0.0
        %3116 = vmatprep.subr.mxu0 0.0
        %3117 = vmatpush1.msra.mxu0 0.0
        %3118 = vmatprep.subr.mxu0 0.0
        %3119 = vmatpush1.msra.mxu0 0.0
        %3120 = vmatprep.subr.mxu0 0.0
        %3121 = vmatpush1.msra.mxu0 0.0
        %3122 = vmatprep.subr.mxu0 0.0
        %3123 = vmatpush1.msra.mxu0 0.0
        %3124 = vmatprep.subr.mxu0 0.0
        %3125 = vmatpush1.msra.mxu0 0.0
        %3126 = vmatprep.subr.mxu0 0.0
        %3127 = vmatpush1.msra.mxu0 0.0
        %3128 = vmatprep.subr.mxu0 0.0
        %3129 = vmatpush1.msra.mxu0 0.0
        %3130 = vmatprep.subr.mxu0 0.0
        %3131 = vmatpush1.msra.mxu0 0.0
        %3132 = vmatprep.subr.mxu0 0.0
        %3133 = vmatpush1.msra.mxu0 0.0
        %3134 = vmatprep.mubr.f32.mxu0 0.0
        %v3135 = vand.u32 %v2898, 4294901760
        %3136 = vmatmul.mubr.f32.gmra.mrb[0].mxu0 %v3135
        %v3137 = vpop.f32.mrb[0].mxu0
        %v3138 = vadd.f32 %v2987, %v3137
        %v3139 = vpop.f32.mrb[0].mxu0
        %3140 = vdwg.mxu0
        %3141 = vmatprep.subr.mxu0 0.0
        %v3142 = vand.u32 %v1590, 4294901760
        %v3143 = vsub.f32 %v1590, %v3142
        %3144 = vmatpush1.msra.mxu0 %v3143
        %3145 = vmatprep.subr.mxu0 0.0
        %v3146 = vand.u32 %v1597, 4294901760
        %v3147 = vsub.f32 %v1597, %v3146
        %3148 = vmatpush1.msra.mxu0 %v3147
        %3149 = vmatprep.subr.mxu0 0.0
        %v3150 = vand.u32 %v1604, 4294901760
        %v3151 = vsub.f32 %v1604, %v3150
        %3152 = vmatpush1.msra.mxu0 %v3151
        %3153 = vmatprep.subr.mxu0 0.0
        %v3154 = vand.u32 %v1611, 4294901760
        %v3155 = vsub.f32 %v1611, %v3154
        %3156 = vmatpush1.msra.mxu0 %v3155
        %3157 = vmatprep.subr.mxu0 0.0
        %v3158 = vand.u32 %v1618, 4294901760
        %v3159 = vsub.f32 %v1618, %v3158
        %3160 = vmatpush1.msra.mxu0 %v3159
        %3161 = vmatprep.subr.mxu0 0.0
        %v3162 = vand.u32 %v1625, 4294901760
        %v3163 = vsub.f32 %v1625, %v3162
        %3164 = vmatpush1.msra.mxu0 %v3163
        %3165 = vmatprep.subr.mxu0 0.0
        %v3166 = vand.u32 %v1632, 4294901760
        %v3167 = vsub.f32 %v1632, %v3166
        %3168 = vmatpush1.msra.mxu0 %v3167
        %3169 = vmatprep.subr.mxu0 0.0
        %v3170 = vand.u32 %v1639, 4294901760
        %v3171 = vsub.f32 %v1639, %v3170
        %3172 = vmatpush1.msra.mxu0 %v3171
        %3173 = vmatprep.subr.mxu0 0.0
        %v3174 = vand.u32 %v1646, 4294901760
        %v3175 = vsub.f32 %v1646, %v3174
        %3176 = vmatpush1.msra.mxu0 %v3175
        %3177 = vmatprep.subr.mxu0 0.0
        %v3178 = vand.u32 %v1653, 4294901760
        %v3179 = vsub.f32 %v1653, %v3178
        %3180 = vmatpush1.msra.mxu0 %v3179
        %3181 = vmatprep.subr.mxu0 0.0
        %v3182 = vand.u32 %v1660, 4294901760
        %v3183 = vsub.f32 %v1660, %v3182
        %3184 = vmatpush1.msra.mxu0 %v3183
        %3185 = vmatprep.subr.mxu0 0.0
        %v3186 = vand.u32 %v1667, 4294901760
        %v3187 = vsub.f32 %v1667, %v3186
        %3188 = vmatpush1.msra.mxu0 %v3187
        %3189 = vmatprep.subr.mxu0 0.0
        %v3190 = vand.u32 %v1674, 4294901760
        %v3191 = vsub.f32 %v1674, %v3190
        %3192 = vmatpush1.msra.mxu0 %v3191
        %3193 = vmatprep.subr.mxu0 0.0
        %v3194 = vand.u32 %v1681, 4294901760
        %v3195 = vsub.f32 %v1681, %v3194
        %3196 = vmatpush1.msra.mxu0 %v3195
        %3197 = vmatprep.subr.mxu0 0.0
        %v3198 = vand.u32 %v1688, 4294901760
        %v3199 = vsub.f32 %v1688, %v3198
        %3200 = vmatpush1.msra.mxu0 %v3199
        %3201 = vmatprep.subr.mxu0 0.0
        %v3202 = vand.u32 %v1695, 4294901760
        %v3203 = vsub.f32 %v1695, %v3202
        %3204 = vmatpush1.msra.mxu0 %v3203
        %3205 = vmatprep.subr.mxu0 0.0
        %3206 = vmatpush1.msra.mxu0 0.0
        %3207 = vmatprep.subr.mxu0 0.0
        %3208 = vmatpush1.msra.mxu0 0.0
        %3209 = vmatprep.subr.mxu0 0.0
        %3210 = vmatpush1.msra.mxu0 0.0
        %3211 = vmatprep.subr.mxu0 0.0
        %3212 = vmatpush1.msra.mxu0 0.0
        %3213 = vmatprep.subr.mxu0 0.0
        %3214 = vmatpush1.msra.mxu0 0.0
        %3215 = vmatprep.subr.mxu0 0.0
        %3216 = vmatpush1.msra.mxu0 0.0
        %3217 = vmatprep.subr.mxu0 0.0
        %3218 = vmatpush1.msra.mxu0 0.0
        %3219 = vmatprep.subr.mxu0 0.0
        %3220 = vmatpush1.msra.mxu0 0.0
        %3221 = vmatprep.subr.mxu0 0.0
        %3222 = vmatpush1.msra.mxu0 0.0
        %3223 = vmatprep.subr.mxu0 0.0
        %3224 = vmatpush1.msra.mxu0 0.0
        %3225 = vmatprep.subr.mxu0 0.0
        %3226 = vmatpush1.msra.mxu0 0.0
        %3227 = vmatprep.subr.mxu0 0.0
        %3228 = vmatpush1.msra.mxu0 0.0
        %3229 = vmatprep.subr.mxu0 0.0
        %3230 = vmatpush1.msra.mxu0 0.0
        %3231 = vmatprep.subr.mxu0 0.0
        %3232 = vmatpush1.msra.mxu0 0.0
        %3233 = vmatprep.subr.mxu0 0.0
        %3234 = vmatpush1.msra.mxu0 0.0
        %3235 = vmatprep.subr.mxu0 0.0
        %3236 = vmatpush1.msra.mxu0 0.0
        %3237 = vmatprep.mubr.f32.mxu0 0.0
        %v3238 = vand.u32 %v2898, 4294901760
        %v3239 = vsub.f32 %v2898, %v3238
        %3240 = vmatmul.mubr.f32.gmra.mrb[0].mxu0 %v3239
        %v3241 = vpop.f32.mrb[0].mxu0
        %v3242 = vadd.f32 %v3138, %v3241
        %v3243 = vpop.f32.mrb[0].mxu0
        %3244 = vdwg.mxu0
        %3245 = vmatprep.subr.mxu0 0.0
        %v3246 = vand.u32 %v1590, 4294901760
        %3247 = vmatpush1.msra.mxu0 %v3246
        %3248 = vmatprep.subr.mxu0 0.0
        %v3249 = vand.u32 %v1597, 4294901760
        %3250 = vmatpush1.msra.mxu0 %v3249
        %3251 = vmatprep.subr.mxu0 0.0
        %v3252 = vand.u32 %v1604, 4294901760
        %3253 = vmatpush1.msra.mxu0 %v3252
        %3254 = vmatprep.subr.mxu0 0.0
        %v3255 = vand.u32 %v1611, 4294901760
        %3256 = vmatpush1.msra.mxu0 %v3255
        %3257 = vmatprep.subr.mxu0 0.0
        %v3258 = vand.u32 %v1618, 4294901760
        %3259 = vmatpush1.msra.mxu0 %v3258
        %3260 = vmatprep.subr.mxu0 0.0
        %v3261 = vand.u32 %v1625, 4294901760
        %3262 = vmatpush1.msra.mxu0 %v3261
        %3263 = vmatprep.subr.mxu0 0.0
        %v3264 = vand.u32 %v1632, 4294901760
        %3265 = vmatpush1.msra.mxu0 %v3264
        %3266 = vmatprep.subr.mxu0 0.0
        %v3267 = vand.u32 %v1639, 4294901760
        %3268 = vmatpush1.msra.mxu0 %v3267
        %3269 = vmatprep.subr.mxu0 0.0
        %v3270 = vand.u32 %v1646, 4294901760
        %3271 = vmatpush1.msra.mxu0 %v3270
        %3272 = vmatprep.subr.mxu0 0.0
        %v3273 = vand.u32 %v1653, 4294901760
        %3274 = vmatpush1.msra.mxu0 %v3273
        %3275 = vmatprep.subr.mxu0 0.0
        %v3276 = vand.u32 %v1660, 4294901760
        %3277 = vmatpush1.msra.mxu0 %v3276
        %3278 = vmatprep.subr.mxu0 0.0
        %v3279 = vand.u32 %v1667, 4294901760
        %3280 = vmatpush1.msra.mxu0 %v3279
        %3281 = vmatprep.subr.mxu0 0.0
        %v3282 = vand.u32 %v1674, 4294901760
        %3283 = vmatpush1.msra.mxu0 %v3282
        %3284 = vmatprep.subr.mxu0 0.0
        %v3285 = vand.u32 %v1681, 4294901760
        %3286 = vmatpush1.msra.mxu0 %v3285
        %3287 = vmatprep.subr.mxu0 0.0
        %v3288 = vand.u32 %v1688, 4294901760
        %3289 = vmatpush1.msra.mxu0 %v3288
        %3290 = vmatprep.subr.mxu0 0.0
        %v3291 = vand.u32 %v1695, 4294901760
        %3292 = vmatpush1.msra.mxu0 %v3291
        %3293 = vmatprep.subr.mxu0 0.0
        %3294 = vmatpush1.msra.mxu0 0.0
        %3295 = vmatprep.subr.mxu0 0.0
        %3296 = vmatpush1.msra.mxu0 0.0
        %3297 = vmatprep.subr.mxu0 0.0
        %3298 = vmatpush1.msra.mxu0 0.0
        %3299 = vmatprep.subr.mxu0 0.0
        %3300 = vmatpush1.msra.mxu0 0.0
        %3301 = vmatprep.subr.mxu0 0.0
        %3302 = vmatpush1.msra.mxu0 0.0
        %3303 = vmatprep.subr.mxu0 0.0
        %3304 = vmatpush1.msra.mxu0 0.0
        %3305 = vmatprep.subr.mxu0 0.0
        %3306 = vmatpush1.msra.mxu0 0.0
        %3307 = vmatprep.subr.mxu0 0.0
        %3308 = vmatpush1.msra.mxu0 0.0
        %3309 = vmatprep.subr.mxu0 0.0
        %3310 = vmatpush1.msra.mxu0 0.0
        %3311 = vmatprep.subr.mxu0 0.0
        %3312 = vmatpush1.msra.mxu0 0.0
        %3313 = vmatprep.subr.mxu0 0.0
        %3314 = vmatpush1.msra.mxu0 0.0
        %3315 = vmatprep.subr.mxu0 0.0
        %3316 = vmatpush1.msra.mxu0 0.0
        %3317 = vmatprep.subr.mxu0 0.0
        %3318 = vmatpush1.msra.mxu0 0.0
        %3319 = vmatprep.subr.mxu0 0.0
        %3320 = vmatpush1.msra.mxu0 0.0
        %3321 = vmatprep.subr.mxu0 0.0
        %3322 = vmatpush1.msra.mxu0 0.0
        %3323 = vmatprep.subr.mxu0 0.0
        %3324 = vmatpush1.msra.mxu0 0.0
        %3325 = vmatprep.mubr.f32.mxu0 0.0
        %v3326 = vand.u32 %v2898, 4294901760
        %v3327 = vsub.f32 %v2898, %v3326
        %v3328 = vand.u32 %v3327, 4294901760
        %3329 = vmatmul.mubr.f32.gmra.mrb[0].mxu0 %v3328
        %v3330 = vpop.f32.mrb[0].mxu0
        %v3331 = vadd.f32 %v3242, %v3330
        %v3332 = vpop.f32.mrb[0].mxu0
        %3333 = vdwg.mxu0
        %3334 = vmatprep.subr.mxu0 0.0
        %v3335 = vand.u32 %v1590, 4294901760
        %v3336 = vsub.f32 %v1590, %v3335
        %v3337 = vand.u32 %v3336, 4294901760
        %3338 = vmatpush1.msra.mxu0 %v3337
        %3339 = vmatprep.subr.mxu0 0.0
        %v3340 = vand.u32 %v1597, 4294901760
        %v3341 = vsub.f32 %v1597, %v3340
        %v3342 = vand.u32 %v3341, 4294901760
        %3343 = vmatpush1.msra.mxu0 %v3342
        %3344 = vmatprep.subr.mxu0 0.0
        %v3345 = vand.u32 %v1604, 4294901760
        %v3346 = vsub.f32 %v1604, %v3345
        %v3347 = vand.u32 %v3346, 4294901760
        %3348 = vmatpush1.msra.mxu0 %v3347
        %3349 = vmatprep.subr.mxu0 0.0
        %v3350 = vand.u32 %v1611, 4294901760
        %v3351 = vsub.f32 %v1611, %v3350
        %v3352 = vand.u32 %v3351, 4294901760
        %3353 = vmatpush1.msra.mxu0 %v3352
        %3354 = vmatprep.subr.mxu0 0.0
        %v3355 = vand.u32 %v1618, 4294901760
        %v3356 = vsub.f32 %v1618, %v3355
        %v3357 = vand.u32 %v3356, 4294901760
        %3358 = vmatpush1.msra.mxu0 %v3357
        %3359 = vmatprep.subr.mxu0 0.0
        %v3360 = vand.u32 %v1625, 4294901760
        %v3361 = vsub.f32 %v1625, %v3360
        %v3362 = vand.u32 %v3361, 4294901760
        %3363 = vmatpush1.msra.mxu0 %v3362
        %3364 = vmatprep.subr.mxu0 0.0
        %v3365 = vand.u32 %v1632, 4294901760
        %v3366 = vsub.f32 %v1632, %v3365
        %v3367 = vand.u32 %v3366, 4294901760
        %3368 = vmatpush1.msra.mxu0 %v3367
        %3369 = vmatprep.subr.mxu0 0.0
        %v3370 = vand.u32 %v1639, 4294901760
        %v3371 = vsub.f32 %v1639, %v3370
        %v3372 = vand.u32 %v3371, 4294901760
        %3373 = vmatpush1.msra.mxu0 %v3372
        %3374 = vmatprep.subr.mxu0 0.0
        %v3375 = vand.u32 %v1646, 4294901760
        %v3376 = vsub.f32 %v1646, %v3375
        %v3377 = vand.u32 %v3376, 4294901760
        %3378 = vmatpush1.msra.mxu0 %v3377
        %3379 = vmatprep.subr.mxu0 0.0
        %v3380 = vand.u32 %v1653, 4294901760
        %v3381 = vsub.f32 %v1653, %v3380
        %v3382 = vand.u32 %v3381, 4294901760
        %3383 = vmatpush1.msra.mxu0 %v3382
        %3384 = vmatprep.subr.mxu0 0.0
        %v3385 = vand.u32 %v1660, 4294901760
        %v3386 = vsub.f32 %v1660, %v3385
        %v3387 = vand.u32 %v3386, 4294901760
        %3388 = vmatpush1.msra.mxu0 %v3387
        %3389 = vmatprep.subr.mxu0 0.0
        %v3390 = vand.u32 %v1667, 4294901760
        %v3391 = vsub.f32 %v1667, %v3390
        %v3392 = vand.u32 %v3391, 4294901760
        %3393 = vmatpush1.msra.mxu0 %v3392
        %3394 = vmatprep.subr.mxu0 0.0
        %v3395 = vand.u32 %v1674, 4294901760
        %v3396 = vsub.f32 %v1674, %v3395
        %v3397 = vand.u32 %v3396, 4294901760
        %3398 = vmatpush1.msra.mxu0 %v3397
        %3399 = vmatprep.subr.mxu0 0.0
        %v3400 = vand.u32 %v1681, 4294901760
        %v3401 = vsub.f32 %v1681, %v3400
        %v3402 = vand.u32 %v3401, 4294901760
        %3403 = vmatpush1.msra.mxu0 %v3402
        %3404 = vmatprep.subr.mxu0 0.0
        %v3405 = vand.u32 %v1688, 4294901760
        %v3406 = vsub.f32 %v1688, %v3405
        %v3407 = vand.u32 %v3406, 4294901760
        %3408 = vmatpush1.msra.mxu0 %v3407
        %3409 = vmatprep.subr.mxu0 0.0
        %v3410 = vand.u32 %v1695, 4294901760
        %v3411 = vsub.f32 %v1695, %v3410
        %v3412 = vand.u32 %v3411, 4294901760
        %3413 = vmatpush1.msra.mxu0 %v3412
        %3414 = vmatprep.subr.mxu0 0.0
        %3415 = vmatpush1.msra.mxu0 0.0
        %3416 = vmatprep.subr.mxu0 0.0
        %3417 = vmatpush1.msra.mxu0 0.0
        %3418 = vmatprep.subr.mxu0 0.0
        %3419 = vmatpush1.msra.mxu0 0.0
        %3420 = vmatprep.subr.mxu0 0.0
        %3421 = vmatpush1.msra.mxu0 0.0
        %3422 = vmatprep.subr.mxu0 0.0
        %3423 = vmatpush1.msra.mxu0 0.0
        %3424 = vmatprep.subr.mxu0 0.0
        %3425 = vmatpush1.msra.mxu0 0.0
        %3426 = vmatprep.subr.mxu0 0.0
        %3427 = vmatpush1.msra.mxu0 0.0
        %3428 = vmatprep.subr.mxu0 0.0
        %3429 = vmatpush1.msra.mxu0 0.0
        %3430 = vmatprep.subr.mxu0 0.0
        %3431 = vmatpush1.msra.mxu0 0.0
        %3432 = vmatprep.subr.mxu0 0.0
        %3433 = vmatpush1.msra.mxu0 0.0
        %3434 = vmatprep.subr.mxu0 0.0
        %3435 = vmatpush1.msra.mxu0 0.0
        %3436 = vmatprep.subr.mxu0 0.0
        %3437 = vmatpush1.msra.mxu0 0.0
        %3438 = vmatprep.subr.mxu0 0.0
        %3439 = vmatpush1.msra.mxu0 0.0
        %3440 = vmatprep.subr.mxu0 0.0
        %3441 = vmatpush1.msra.mxu0 0.0
        %3442 = vmatprep.subr.mxu0 0.0
        %3443 = vmatpush1.msra.mxu0 0.0
        %3444 = vmatprep.subr.mxu0 0.0
        %3445 = vmatpush1.msra.mxu0 0.0
        %3446 = vmatprep.mubr.f32.mxu0 0.0
        %v3447 = vand.u32 %v2898, 4294901760
        %3448 = vmatmul.mubr.f32.gmra.mrb[0].mxu0 %v3447
        %v3449 = vpop.f32.mrb[0].mxu0
        %v3450 = vadd.f32 %v3331, %v3449
        %v3451 = vpop.f32.mrb[0].mxu0
        %3452 = vdwg.mxu0
        %3453 = vmatprep.subr.mxu0 0.0
        %v3454 = vand.u32 %v1590, 4294901760
        %3455 = vmatpush1.msra.mxu0 %v3454
        %3456 = vmatprep.subr.mxu0 0.0
        %v3457 = vand.u32 %v1597, 4294901760
        %3458 = vmatpush1.msra.mxu0 %v3457
        %3459 = vmatprep.subr.mxu0 0.0
        %v3460 = vand.u32 %v1604, 4294901760
        %3461 = vmatpush1.msra.mxu0 %v3460
        %3462 = vmatprep.subr.mxu0 0.0
        %v3463 = vand.u32 %v1611, 4294901760
        %3464 = vmatpush1.msra.mxu0 %v3463
        %3465 = vmatprep.subr.mxu0 0.0
        %v3466 = vand.u32 %v1618, 4294901760
        %3467 = vmatpush1.msra.mxu0 %v3466
        %3468 = vmatprep.subr.mxu0 0.0
        %v3469 = vand.u32 %v1625, 4294901760
        %3470 = vmatpush1.msra.mxu0 %v3469
        %3471 = vmatprep.subr.mxu0 0.0
        %v3472 = vand.u32 %v1632, 4294901760
        %3473 = vmatpush1.msra.mxu0 %v3472
        %3474 = vmatprep.subr.mxu0 0.0
        %v3475 = vand.u32 %v1639, 4294901760
        %3476 = vmatpush1.msra.mxu0 %v3475
        %3477 = vmatprep.subr.mxu0 0.0
        %v3478 = vand.u32 %v1646, 4294901760
        %3479 = vmatpush1.msra.mxu0 %v3478
        %3480 = vmatprep.subr.mxu0 0.0
        %v3481 = vand.u32 %v1653, 4294901760
        %3482 = vmatpush1.msra.mxu0 %v3481
        %3483 = vmatprep.subr.mxu0 0.0
        %v3484 = vand.u32 %v1660, 4294901760
        %3485 = vmatpush1.msra.mxu0 %v3484
        %3486 = vmatprep.subr.mxu0 0.0
        %v3487 = vand.u32 %v1667, 4294901760
        %3488 = vmatpush1.msra.mxu0 %v3487
        %3489 = vmatprep.subr.mxu0 0.0
        %v3490 = vand.u32 %v1674, 4294901760
        %3491 = vmatpush1.msra.mxu0 %v3490
        %3492 = vmatprep.subr.mxu0 0.0
        %v3493 = vand.u32 %v1681, 4294901760
        %3494 = vmatpush1.msra.mxu0 %v3493
        %3495 = vmatprep.subr.mxu0 0.0
        %v3496 = vand.u32 %v1688, 4294901760
        %3497 = vmatpush1.msra.mxu0 %v3496
        %3498 = vmatprep.subr.mxu0 0.0
        %v3499 = vand.u32 %v1695, 4294901760
        %3500 = vmatpush1.msra.mxu0 %v3499
        %3501 = vmatprep.subr.mxu0 0.0
        %3502 = vmatpush1.msra.mxu0 0.0
        %3503 = vmatprep.subr.mxu0 0.0
        %3504 = vmatpush1.msra.mxu0 0.0
        %3505 = vmatprep.subr.mxu0 0.0
        %3506 = vmatpush1.msra.mxu0 0.0
        %3507 = vmatprep.subr.mxu0 0.0
        %3508 = vmatpush1.msra.mxu0 0.0
        %3509 = vmatprep.subr.mxu0 0.0
        %3510 = vmatpush1.msra.mxu0 0.0
        %3511 = vmatprep.subr.mxu0 0.0
        %3512 = vmatpush1.msra.mxu0 0.0
        %3513 = vmatprep.subr.mxu0 0.0
        %3514 = vmatpush1.msra.mxu0 0.0
        %3515 = vmatprep.subr.mxu0 0.0
        %3516 = vmatpush1.msra.mxu0 0.0
        %3517 = vmatprep.subr.mxu0 0.0
        %3518 = vmatpush1.msra.mxu0 0.0
        %3519 = vmatprep.subr.mxu0 0.0
        %3520 = vmatpush1.msra.mxu0 0.0
        %3521 = vmatprep.subr.mxu0 0.0
        %3522 = vmatpush1.msra.mxu0 0.0
        %3523 = vmatprep.subr.mxu0 0.0
        %3524 = vmatpush1.msra.mxu0 0.0
        %3525 = vmatprep.subr.mxu0 0.0
        %3526 = vmatpush1.msra.mxu0 0.0
        %3527 = vmatprep.subr.mxu0 0.0
        %3528 = vmatpush1.msra.mxu0 0.0
        %3529 = vmatprep.subr.mxu0 0.0
        %3530 = vmatpush1.msra.mxu0 0.0
        %3531 = vmatprep.subr.mxu0 0.0
        %3532 = vmatpush1.msra.mxu0 0.0
        %3533 = vmatprep.mubr.f32.mxu0 0.0
        %v3534 = vand.u32 %v2898, 4294901760
        %3535 = vmatmul.mubr.f32.gmra.mrb[0].mxu0 %v3534
        %v3536 = vpop.f32.mrb[0].mxu0
        %v3537 = vadd.f32 %v3450, %v3536
        %v3538 = vpop.f32.mrb[0].mxu0
        %3539 = vdwg.mxu0
        %3540 = vst [vmem:[%s216] sm:$0x1] %v3537
        %s3541 = sand.u32 %s137, 1
        %s3542 = scalar_lea.sflag [#allocation3], %s3541
        %s3543 = sand.u32 %s137, 1
        %s3544 = scalar_lea.vmem [#allocation2], %s3543
        // Predicated region
        $region41: #{tpu_custom_call.1} parent=39 // pred_check
          %p3545 = pneg %p147
        $region42: #{tpu_custom_call.1} parent=39 // pred_check_branch
          %3547 = sbr.rel (%p3545) target = $region44
        $region43: #{tpu_custom_call.1} parent=39 // pred_region
          %s3549 = ssub.s32 16, 16
          %3550 = vsyncadd %s3542, %s3549
          %s3551 = smul.addr %s19, 16
          %s3552 = scalar_lea.hbm %s5, %s3551
          %s3554 = sshll.u32 %s3544, 4
          %s3555 = int_to_ptr.vmem [resolvable:$true] %s3554
          %3557 = dma.vmem_to_hbm [thread:$0]  %s3555, 16, %s3552, %s3542
        $region44: #{tpu_custom_call.1} parent=39 // pred_fallthru
          _
      $region40: #{tpu_custom_call.1} parent=5 // pred_fallthru
        _
      %p3558 = scmp.le.s32.totalorder 2, %s14
      // Predicated region
      $region45: #{tpu_custom_call.1} parent=5 // pred_check
        %p3559 = pneg %p3558
      $region46: #{tpu_custom_call.1} parent=5 // pred_check_branch
        %3561 = sbr.rel (%p3559) target = $region48
      $region47: #{tpu_custom_call.1} parent=5 // pred_region
        %s3562 = ssub.s32 %s14, 2
        // Predicated region
        $region49: #{tpu_custom_call.1} parent=47 // pred_check
          %p3563 = pneg %p153
        $region50: #{tpu_custom_call.1} parent=47 // pred_check_branch
          %3565 = sbr.rel (%p3563) target = $region52
        $region51: #{tpu_custom_call.1} parent=47 // pred_region
          %s3566 = sand.u32 %s138, 1
          %s3567 = scalar_lea.sflag [#allocation3], %s3566
          %s3568 = sand.u32 %s138, 1
          %s3569 = scalar_lea.vmem [#allocation2], %s3568
          %3570 = dma.done %s3567, 16
        $region52: #{tpu_custom_call.1} parent=47 // pred_fallthru
          _
      $region48: #{tpu_custom_call.1} parent=5 // pred_fallthru
        _
    $region6: #{tpu_custom_call.1} parent=1 // loop_footer
      %s18 = sadd.s32 1, %s14
    $region7: #{tpu_custom_call.1} parent=1 // loop_footer_branch
      %13 = sbr.rel target = $region3
    $region8: #{tpu_custom_call.1} parent=1 // loop_exit
      _
    %3571 = vsyncpa [#allocation3], 1
    %s3572 = scalar_lea.sflag [#allocation3], 1
    %3573 = vsyncpa %s3572, 1

</llo_original>
